<compile_context>
chip_gen: v6e
topology: v6e:2x2x1
jax: 0.10.0
libtpu: 0.0.40
codegen_flags: <defaults>
</compile_context>

<pallas_src>
import functools

import jax
import jax.numpy as jnp
from jax.experimental import pallas as pl
from jax.experimental.pallas import tpu as pltpu


# Model hyper-parameters (CNN10_settings defaults of the PyTorch module).
WIN = 1024        # STFT window
HOP = 320         # STFT hop
MEL = 64          # mel bins
MEL_PAD = 128     # mel bins padded to a full lane (consumers get zero rows)
COND_H = 512      # CNN10 embedding width (fc1 out)
EMB = 128         # emb_fc output width
TSD_H = 256       # TSD detection-head hidden width
CLS_NUM = 50      # classifier classes
UPSAMPLE = 4      # TSD nearest-neighbor upsample factor
LANE = 128        # TPU lane width (cls output padded to this, sliced off)
NEG_INF = -1e30


def _round_up(n, m):
    return (n + m - 1) // m * m


# ----------------------------------------------------------------------------
# Kernel 1: conditioner (CNN10-like) + emb_fc + cls head + emb half of TSD fc1
# ----------------------------------------------------------------------------
def _conditioner_kernel(fr_r_ref, w_mel_ref, b_mel_ref, w_conv_ref, b_conv_ref,
                        w_fc1_ref, b_fc1_ref, w_emb_ref, b_emb_ref,
                        w_cls1_ref, b_cls1_ref, w_cls2_ref, b_cls2_ref,
                        w_t1e_ref, b_t1_ref, alpha_ref,
                        cls_ref, embp_ref, *, B, F_r, FR_PAD, cls_num):
    f32, bf16 = jnp.float32, jnp.bfloat16
    # Shared nn.PReLU scalar slope (one module reused for emb and cls1), SMEM.
    alpha = alpha_ref[0, 0]

    def prelu(v):
        return jnp.where(v >= 0.0, v, alpha * v)

    # TODO(synk): STFT + log-mel approximated by framed linear + log-relu.
    frames = fr_r_ref[...].reshape(B * FR_PAD, WIN)                 # bf16
    y = jnp.dot(frames, w_mel_ref[...],
                preferred_element_type=f32) + b_mel_ref[...]
    feat = jnp.log(jnp.maximum(y, 0.0) + 1e-4)                      # [B*FR_PAD, MEL_PAD]

    h = jnp.dot(feat.astype(bf16), w_conv_ref[...],
                preferred_element_type=f32) + b_conv_ref[...]
    h = jnp.maximum(h, 0.0).reshape(B, FR_PAD, COND_H)

    # PANNs-style (mean_t + max_t) pooling, vectorized over batch; padded
    # frames masked with a single broadcasted_iota.
    fidx = jax.lax.broadcasted_iota(jnp.int32, h.shape, 1)
    valid = fidx < F_r
    mean_p = jnp.sum(jnp.where(valid, h, 0.0), axis=1) * (1.0 / F_r)
    max_p = jnp.max(jnp.where(valid, h, NEG_INF), axis=1)
    pooled = mean_p + max_p                                         # [B, COND_H]

    out_enc = jnp.maximum(
        jnp.dot(pooled.astype(bf16), w_fc1_ref[...],
                preferred_element_type=f32) + b_fc1_ref[...], 0.0)  # [B, COND_H]

    # emb_fc + PReLU
    emb = prelu(jnp.dot(out_enc.astype(bf16), w_emb_ref[...],
                        preferred_element_type=f32) + b_emb_ref[...])
    emb_b = emb.astype(bf16)                                        # [B, EMB]

    # emb half of the TSD first layer (+ b_tsd1 folded in), once per batch row.
    embp = jnp.dot(emb_b, w_t1e_ref[...],
                   preferred_element_type=f32) + b_t1_ref[...]      # [B, TSD_H]
    embp_ref[...] = embp.reshape(B, 1, TSD_H)

    # classification head
    hc = prelu(jnp.dot(emb_b, w_cls1_ref[...],
                       preferred_element_type=f32) + b_cls1_ref[...])
    # TODO(synk): F.dropout(p=0.5, training=False) -> identity (eval semantics).
    logits = jnp.dot(hc.astype(bf16), w_cls2_ref[...],
                     preferred_element_type=f32) + b_cls2_ref[...]  # [B, LANE]
    col = jax.lax.broadcasted_iota(jnp.int32, logits.shape, 1)
    logits = jnp.where(col < cls_num, logits, NEG_INF)              # mask padded classes
    m = jnp.max(logits, axis=-1, keepdims=True)
    z = logits - m
    cls_ref[...] = z - jnp.log(jnp.sum(jnp.exp(z), axis=-1, keepdims=True))


# ----------------------------------------------------------------------------
# Kernel 2: TSD detection head, gridded over (batch, frame tiles)
# ----------------------------------------------------------------------------
def _tsd_kernel(fr_x_ref, emb_proj_ref, w_mel_ref, b_mel_ref, w_t1m_ref,
                w_t2_ref, b_t2_ref, tsd_ref):
    f32, bf16 = jnp.float32, jnp.bfloat16

    frames = fr_x_ref[0]                                            # [TF, WIN] bf16
    # TODO(synk): STFT + log-mel approximated by framed linear + log-relu.
    y = jnp.dot(frames, w_mel_ref[...],
                preferred_element_type=f32) + b_mel_ref[...]
    feat = jnp.log(jnp.maximum(y, 0.0) + 1e-4)                      # [TF, MEL_PAD]

    mel_proj = jnp.dot(feat.astype(bf16), w_t1m_ref[...],
                       preferred_element_type=f32)                  # [TF, TSD_H]
    emb_proj = emb_proj_ref[...].reshape(1, TSD_H)                  # b_tsd1 folded in
    ht = jnp.maximum(mel_proj + emb_proj, 0.0)                      # [TF, TSD_H]

    # Final projection to ONE useful lane: VPU multiply + XLU lane reduction
    # (no 128-lane-padded matmul, sigmoid, or writeback).
    lt = jnp.sum(ht * w_t2_ref[...], axis=-1, keepdims=True) + b_t2_ref[0, 0]
    tsd_ref[...] = jax.nn.sigmoid(lt)[None]                         # [1, TF, 1]


# ----------------------------------------------------------------------------
# Glue (framing, padding) + parameter setup
# ----------------------------------------------------------------------------
def frame_signal(x, win=WIN, hop=HOP):
    """[B, T] -> [B, n_frames, win]."""
    # TODO(synk): for long T, frame inside the kernel (memory_space=pl.ANY +
    #             WIN-length DMAs per frame) to avoid this ~3.2x overlap copy.
    B, T = x.shape
    n = (T - win) // hop + 1
    idx = jnp.arange(n)[:, None] * hop + jnp.arange(win)[None, :]
    return x[:, idx]                                  # [B, n, win]


def init_params(key):
    ks = jax.random.split(key, 10)
    s = 0.02

    def w(k, shape):
        return (s * jax.random.normal(k, shape)).astype(jnp.float32)

    return {
        # CNN10-like conditioner
        "w_mel": w(ks[0], (WIN, MEL)),       "b_mel": jnp.zeros((MEL,), jnp.float32),
        "w_conv": w(ks[1], (MEL, COND_H)),   "b_conv": jnp.zeros((COND_H,), jnp.float32),
        "w_fc1": w(ks[2], (COND_H, COND_H)), "b_fc1": jnp.zeros((COND_H,), jnp.float32),
        # emb_fc: Linear(512, 128)
        "w_emb": w(ks[3], (COND_H, EMB)),    "b_emb": jnp.zeros((EMB,), jnp.float32),
        # single shared nn.PReLU() (PyTorch default init 0.25)
        "prelu": jnp.full((1, 1), 0.25, jnp.float32),
        # cls1: Linear(128,128), cls2: Linear(128, cls_num)
        "w_cls1": w(ks[4], (EMB, EMB)),      "b_cls1": jnp.zeros((EMB,), jnp.float32),
        "w_cls2": w(ks[5], (EMB, CLS_NUM)),  "b_cls2": jnp.zeros((CLS_NUM,), jnp.float32),
        # TSD head: w_tsd1 pre-split into mel / emb halves (== concat(feat,emb) @ W)
        "w_tsd1_mel": w(ks[6], (MEL, TSD_H)),
        "w_tsd1_emb": w(ks[7], (EMB, TSD_H)),
        "b_tsd1": jnp.zeros((TSD_H,), jnp.float32),
        "w_tsd2": w(ks[8], (TSD_H, 1)),      "b_tsd2": jnp.zeros((1,), jnp.float32),
    }


def _full_spec(a):
    zeros = (0,) * a.ndim
    return pl.BlockSpec(a.shape, lambda z=zeros: z)


def tsdnet_forward(p, x, ref):
    B, T_x = x.shape
    _, T_r = ref.shape
    F_x = (T_x - WIN) // HOP + 1
    F_r = (T_r - WIN) // HOP + 1
    FR_PAD = _round_up(F_r, 8)
    TF = min(256, _round_up(F_x, 8))          # TSD frame-tile rows (sublane aligned)
    FX_PAD = _round_up(F_x, TF)
    NT = FX_PAD // TF

    bf = lambda a: a.astype(jnp.bfloat16)
    row = lambda a: a.reshape(1, -1).astype(jnp.float32)

    # bf16 framing halves the framed-waveform HBM traffic.
    fr_r = jnp.pad(frame_signal(bf(ref)), ((0, 0), (0, FR_PAD - F_r), (0, 0)))
    fr_x = jnp.pad(frame_signal(bf(x)), ((0, 0), (0, FX_PAD - F_x), (0, 0)))

    # mel axis padded 64 -> 128 for lane-dense feat; consuming weights get zero rows.
    w_mel_p = jnp.pad(p["w_mel"], ((0, 0), (0, MEL_PAD - MEL)))
    b_mel_p = jnp.pad(p["b_mel"], (0, MEL_PAD - MEL))
    w_conv_p = jnp.pad(p["w_conv"], ((0, MEL_PAD - MEL), (0, 0)))
    w_t1m_p = jnp.pad(p["w_tsd1_mel"], ((0, MEL_PAD - MEL), (0, 0)))
    # cls classes padded to a full lane; masked before log_softmax in kernel.
    w_cls2_p = jnp.pad(p["w_cls2"], ((0, 0), (0, LANE - CLS_NUM)))
    b_cls2_p = jnp.pad(p["b_cls2"], (0, LANE - CLS_NUM))

    # ---------------- conditioner + cls head (small separate launch) ----------
    cond_args = (
        fr_r,
        bf(w_mel_p), row(b_mel_p),
        bf(w_conv_p), row(p["b_conv"]),
        bf(p["w_fc1"]), row(p["b_fc1"]),
        bf(p["w_emb"]), row(p["b_emb"]),
        bf(p["w_cls1"]), row(p["b_cls1"]),
        bf(w_cls2_p), row(b_cls2_p),
        bf(p["w_tsd1_emb"]), row(p["b_tsd1"]),
        p["prelu"].astype(jnp.float32),          # PReLU slope -> SMEM scalar
    )
    cond_specs = [_full_spec(a) for a in cond_args[:-1]]
    cond_specs.append(pl.BlockSpec(memory_space=pltpu.MemorySpace.SMEM))
    cond_kernel = functools.partial(_conditioner_kernel, B=B, F_r=F_r,
                                    FR_PAD=FR_PAD, cls_num=CLS_NUM)
    cls_out, emb_proj = pl.pallas_call(
        cond_kernel,
        out_shape=(jax.ShapeDtypeStruct((B, LANE), jnp.float32),
                   jax.ShapeDtypeStruct((B, 1, TSD_H), jnp.float32)),
        in_specs=cond_specs,
        out_specs=(pl.BlockSpec((B, LANE), lambda: (0, 0)),
                   pl.BlockSpec((B, 1, TSD_H), lambda: (0, 0, 0))),
    )(*cond_args)

    # ---------------- TSD head: gridded over (batch, frame tiles) -------------
    w_t2_row = p["w_tsd2"].reshape(1, TSD_H).astype(jnp.float32)
    b_t2 = p["b_tsd2"].reshape(1, 1).astype(jnp.float32)
    tsd_out = pl.pallas_call(
        _tsd_kernel,
        out_shape=jax.ShapeDtypeStruct((B, FX_PAD, 1), jnp.float32),
        grid=(B, NT),
        in_specs=[
            pl.BlockSpec((1, TF, WIN), lambda b, t: (b, t, 0)),       # frame tile
            pl.BlockSpec((1, 1, TSD_H), lambda b, t: (b, 0, 0)),      # emb_proj row
            pl.BlockSpec((WIN, MEL_PAD), lambda b, t: (0, 0)),        # w_mel (resident)
            pl.BlockSpec((1, MEL_PAD), lambda b, t: (0, 0)),          # b_mel
            pl.BlockSpec((MEL_PAD, TSD_H), lambda b, t: (0, 0)),      # w_tsd1_mel
            pl.BlockSpec((1, TSD_H), lambda b, t: (0, 0)),            # w_tsd2 row
            pl.BlockSpec(memory_space=pltpu.MemorySpace.SMEM),        # b_tsd2 scalar
        ],
        out_specs=pl.BlockSpec((1, TF, 1), lambda b, t: (b, t, 0)),
        compiler_params=pltpu.CompilerParams(
            dimension_semantics=("parallel", "parallel")),
    )(fr_x, emb_proj, bf(w_mel_p), row(b_mel_p), bf(w_t1m_p), w_t2_row, b_t2)

    x_cls = cls_out[:, :CLS_NUM]                   # drop class padding
    out_tsd_time = tsd_out[:, :F_x, 0]             # drop frame padding, single lane
    out_tsd_up = jnp.repeat(out_tsd_time, UPSAMPLE, axis=1)
    return x_cls, out_tsd_time, out_tsd_up


# ----------------------------------------------------------------------------
if __name__ == "__main__":
    key = jax.random.PRNGKey(0)
    k_p, k_x, k_r = jax.random.split(key, 3)

    params = init_params(k_p)

    B = 2
    T_x, T_ref = 6400, 4000                 # small waveform lengths
    x = jax.random.normal(k_x, (B, T_x), dtype=jnp.float32)
    ref = jax.random.normal(k_r, (B, T_ref), dtype=jnp.float32)

    fwd = jax.jit(tsdnet_forward)
    x_cls, out_tsd_time, out_tsd_up = fwd(params, x, ref)
    jax.block_until_ready((x_cls, out_tsd_time, out_tsd_up))

    assert x_cls.shape == (B, CLS_NUM)
    n_frames_x = (T_x - WIN) // HOP + 1
    assert out_tsd_time.shape == (B, n_frames_x)
    assert out_tsd_up.shape == (B, n_frames_x * UPSAMPLE)
    # log_softmax rows must (log-)sum to ~1
    assert jnp.allclose(jnp.sum(jnp.exp(x_cls), axis=-1), 1.0, atol=1e-4)
    # TSD outputs are probabilities
    assert bool(jnp.all((out_tsd_time >= 0.0) & (out_tsd_time <= 1.0)))

    print("KERNEL_OK")
</pallas_src>

<mosaic_0001>
module attributes {stable_mosaic.version = 11 : i64} {
  func.func @_conditioner_kernel(%arg0: memref<2x16x1024xbf16, #tpu.memory_space<vmem>>, %arg1: memref<1024x128xbf16, #tpu.memory_space<vmem>>, %arg2: memref<1x128xf32, #tpu.memory_space<vmem>>, %arg3: memref<128x512xbf16, #tpu.memory_space<vmem>>, %arg4: memref<1x512xf32, #tpu.memory_space<vmem>>, %arg5: memref<512x512xbf16, #tpu.memory_space<vmem>>, %arg6: memref<1x512xf32, #tpu.memory_space<vmem>>, %arg7: memref<512x128xbf16, #tpu.memory_space<vmem>>, %arg8: memref<1x128xf32, #tpu.memory_space<vmem>>, %arg9: memref<128x128xbf16, #tpu.memory_space<vmem>>, %arg10: memref<1x128xf32, #tpu.memory_space<vmem>>, %arg11: memref<128x128xbf16, #tpu.memory_space<vmem>>, %arg12: memref<1x128xf32, #tpu.memory_space<vmem>>, %arg13: memref<128x256xbf16, #tpu.memory_space<vmem>>, %arg14: memref<1x256xf32, #tpu.memory_space<vmem>>, %arg15: memref<1x1xf32, #tpu.memory_space<smem>>, %arg16: memref<2x128xf32, #tpu.memory_space<vmem>>, %arg17: memref<2x1x256xf32, #tpu.memory_space<vmem>>) attributes {dimension_semantics = [], scalar_prefetch = 0 : i64, scratch_operands = 0 : i64, tpu.core_type = #tpu.core_type<tc>} {
    %c0 = arith.constant 0 : index
    %c0_0 = arith.constant 0 : index
    %0 = memref.load %arg15[%c0, %c0_0] : memref<1x1xf32, #tpu.memory_space<smem>>
    %c0_1 = arith.constant 0 : index
    %c0_2 = arith.constant 0 : index
    %c0_3 = arith.constant 0 : index
    %1 = vector.load %arg0[%c0_1, %c0_2, %c0_3] : memref<2x16x1024xbf16, #tpu.memory_space<vmem>>, vector<2x16x1024xbf16>
    %2 = vector.shape_cast %1 : vector<2x16x1024xbf16> to vector<32x1024xbf16>
    %c0_4 = arith.constant 0 : index
    %c0_5 = arith.constant 0 : index
    %3 = vector.load %arg1[%c0_4, %c0_5] : memref<1024x128xbf16, #tpu.memory_space<vmem>>, vector<1024x128xbf16>
    %cst = arith.constant dense<0.000000e+00> : vector<32x128xf32>
    %4 = tpu.matmul %2, %3, %cst {dimension_numbers = #tpu.dot_dimension_numbers<[1], [0], [0], [1], [0, 0, 1, 1], [], []>} : vector<32x1024xbf16>, vector<1024x128xbf16>, vector<32x128xf32> -> vector<32x128xf32>
    %c0_6 = arith.constant 0 : index
    %c0_7 = arith.constant 0 : index
    %5 = vector.load %arg2[%c0_6, %c0_7] : memref<1x128xf32, #tpu.memory_space<vmem>>, vector<1x128xf32>
    %6 = vector.broadcast %5 : vector<1x128xf32> to vector<32x128xf32>
    %7 = arith.addf %4, %6 : vector<32x128xf32>
    %cst_8 = arith.constant 0.000000e+00 : f32
    %8 = vector.broadcast %cst_8 : f32 to vector<32x128xf32>
    %9 = arith.maximumf %7, %8 : vector<32x128xf32>
    %cst_9 = arith.constant 9.99999974E-5 : f32
    %10 = vector.broadcast %cst_9 : f32 to vector<32x128xf32>
    %11 = arith.addf %9, %10 : vector<32x128xf32>
    %12 = math.log %11 : vector<32x128xf32>
    %13 = arith.truncf %12 : vector<32x128xf32> to vector<32x128xbf16>
    %c0_10 = arith.constant 0 : index
    %c0_11 = arith.constant 0 : index
    %14 = vector.load %arg3[%c0_10, %c0_11] : memref<128x512xbf16, #tpu.memory_space<vmem>>, vector<128x512xbf16>
    %cst_12 = arith.constant dense<0.000000e+00> : vector<32x512xf32>
    %15 = tpu.matmul %13, %14, %cst_12 {dimension_numbers = #tpu.dot_dimension_numbers<[1], [0], [0], [1], [0, 0, 1, 1], [], []>} : vector<32x128xbf16>, vector<128x512xbf16>, vector<32x512xf32> -> vector<32x512xf32>
    %c0_13 = arith.constant 0 : index
    %c0_14 = arith.constant 0 : index
    %16 = vector.load %arg4[%c0_13, %c0_14] : memref<1x512xf32, #tpu.memory_space<vmem>>, vector<1x512xf32>
    %17 = vector.broadcast %16 : vector<1x512xf32> to vector<32x512xf32>
    %18 = arith.addf %15, %17 : vector<32x512xf32>
    %cst_15 = arith.constant 0.000000e+00 : f32
    %19 = vector.broadcast %cst_15 : f32 to vector<32x512xf32>
    %20 = arith.maximumf %18, %19 : vector<32x512xf32>
    %21 = vector.shape_cast %20 : vector<32x512xf32> to vector<2x16x512xf32>
    %22 = tpu.iota {dimensions = array<i32: 1>} : vector<2x16x512xi32>
    %c10_i32 = arith.constant 10 : i32
    %23 = vector.broadcast %c10_i32 : i32 to vector<2x16x512xi32>
    %24 = arith.cmpi slt, %22, %23 : vector<2x16x512xi32>
    %cst_16 = arith.constant 0.000000e+00 : f32
    %25 = vector.broadcast %cst_16 : f32 to vector<2x16x512xf32>
    %26 = arith.select %24, %21, %25 : vector<2x16x512xi1>, vector<2x16x512xf32>
    %cst_17 = arith.constant dense<0.000000e+00> : vector<2x512xf32>
    %27 = vector.multi_reduction <add>, %26, %cst_17 [1] : vector<2x16x512xf32> to vector<2x512xf32>
    %cst_18 = arith.constant 1.000000e-01 : f32
    %28 = vector.broadcast %cst_18 : f32 to vector<2x512xf32>
    %29 = arith.mulf %27, %28 : vector<2x512xf32>
    %cst_19 = arith.constant -1.000000e+30 : f32
    %30 = vector.broadcast %cst_19 : f32 to vector<2x16x512xf32>
    %31 = arith.select %24, %21, %30 : vector<2x16x512xi1>, vector<2x16x512xf32>
    %cst_20 = arith.constant dense<0xFF800000> : vector<2x512xf32>
    %32 = vector.multi_reduction <maximumf>, %31, %cst_20 [1] : vector<2x16x512xf32> to vector<2x512xf32>
    %33 = arith.addf %29, %32 : vector<2x512xf32>
    %34 = arith.truncf %33 : vector<2x512xf32> to vector<2x512xbf16>
    %c0_21 = arith.constant 0 : index
    %c0_22 = arith.constant 0 : index
    %35 = vector.load %arg5[%c0_21, %c0_22] : memref<512x512xbf16, #tpu.memory_space<vmem>>, vector<512x512xbf16>
    %cst_23 = arith.constant dense<0.000000e+00> : vector<2x512xf32>
    %36 = tpu.matmul %34, %35, %cst_23 {dimension_numbers = #tpu.dot_dimension_numbers<[1], [0], [0], [1], [0, 0, 1, 1], [], []>} : vector<2x512xbf16>, vector<512x512xbf16>, vector<2x512xf32> -> vector<2x512xf32>
    %c0_24 = arith.constant 0 : index
    %c0_25 = arith.constant 0 : index
    %37 = vector.load %arg6[%c0_24, %c0_25] : memref<1x512xf32, #tpu.memory_space<vmem>>, vector<1x512xf32>
    %38 = vector.broadcast %37 : vector<1x512xf32> to vector<2x512xf32>
    %39 = arith.addf %36, %38 : vector<2x512xf32>
    %cst_26 = arith.constant 0.000000e+00 : f32
    %40 = vector.broadcast %cst_26 : f32 to vector<2x512xf32>
    %41 = arith.maximumf %39, %40 : vector<2x512xf32>
    %42 = arith.truncf %41 : vector<2x512xf32> to vector<2x512xbf16>
    %c0_27 = arith.constant 0 : index
    %c0_28 = arith.constant 0 : index
    %43 = vector.load %arg7[%c0_27, %c0_28] : memref<512x128xbf16, #tpu.memory_space<vmem>>, vector<512x128xbf16>
    %cst_29 = arith.constant dense<0.000000e+00> : vector<2x128xf32>
    %44 = tpu.matmul %42, %43, %cst_29 {dimension_numbers = #tpu.dot_dimension_numbers<[1], [0], [0], [1], [0, 0, 1, 1], [], []>} : vector<2x512xbf16>, vector<512x128xbf16>, vector<2x128xf32> -> vector<2x128xf32>
    %c0_30 = arith.constant 0 : index
    %c0_31 = arith.constant 0 : index
    %45 = vector.load %arg8[%c0_30, %c0_31] : memref<1x128xf32, #tpu.memory_space<vmem>>, vector<1x128xf32>
    %46 = vector.broadcast %45 : vector<1x128xf32> to vector<2x128xf32>
    %47 = arith.addf %44, %46 : vector<2x128xf32>
    %cst_32 = arith.constant 0.000000e+00 : f32
    %48 = vector.broadcast %cst_32 : f32 to vector<2x128xf32>
    %49 = arith.cmpf oge, %47, %48 : vector<2x128xf32>
    %50 = vector.broadcast %0 : f32 to vector<2x128xf32>
    %51 = arith.mulf %50, %47 : vector<2x128xf32>
    %52 = arith.select %49, %47, %51 : vector<2x128xi1>, vector<2x128xf32>
    %53 = arith.truncf %52 : vector<2x128xf32> to vector<2x128xbf16>
    %c0_33 = arith.constant 0 : index
    %c0_34 = arith.constant 0 : index
    %54 = vector.load %arg13[%c0_33, %c0_34] : memref<128x256xbf16, #tpu.memory_space<vmem>>, vector<128x256xbf16>
    %cst_35 = arith.constant dense<0.000000e+00> : vector<2x256xf32>
    %55 = tpu.matmul %53, %54, %cst_35 {dimension_numbers = #tpu.dot_dimension_numbers<[1], [0], [0], [1], [0, 0, 1, 1], [], []>} : vector<2x128xbf16>, vector<128x256xbf16>, vector<2x256xf32> -> vector<2x256xf32>
    %c0_36 = arith.constant 0 : index
    %c0_37 = arith.constant 0 : index
    %56 = vector.load %arg14[%c0_36, %c0_37] : memref<1x256xf32, #tpu.memory_space<vmem>>, vector<1x256xf32>
    %57 = vector.broadcast %56 : vector<1x256xf32> to vector<2x256xf32>
    %58 = arith.addf %55, %57 : vector<2x256xf32>
    %59 = vector.shape_cast %58 : vector<2x256xf32> to vector<2x1x256xf32>
    %c0_38 = arith.constant 0 : index
    %c0_39 = arith.constant 0 : index
    %c0_40 = arith.constant 0 : index
    %60 = vector.load %arg17[%c0_38, %c0_39, %c0_40] : memref<2x1x256xf32, #tpu.memory_space<vmem>>, vector<2x1x256xf32>
    tpu.vector_store %arg17[%c0_38, %c0_39, %c0_40], %59 {strides = array<i32>} : memref<2x1x256xf32, #tpu.memory_space<vmem>>, vector<2x1x256xf32>,
    %c0_41 = arith.constant 0 : index
    %c0_42 = arith.constant 0 : index
    %61 = vector.load %arg9[%c0_41, %c0_42] : memref<128x128xbf16, #tpu.memory_space<vmem>>, vector<128x128xbf16>
    %cst_43 = arith.constant dense<0.000000e+00> : vector<2x128xf32>
    %62 = tpu.matmul %53, %61, %cst_43 {dimension_numbers = #tpu.dot_dimension_numbers<[1], [0], [0], [1], [0, 0, 1, 1], [], []>} : vector<2x128xbf16>, vector<128x128xbf16>, vector<2x128xf32> -> vector<2x128xf32>
    %c0_44 = arith.constant 0 : index
    %c0_45 = arith.constant 0 : index
    %63 = vector.load %arg10[%c0_44, %c0_45] : memref<1x128xf32, #tpu.memory_space<vmem>>, vector<1x128xf32>
    %64 = vector.broadcast %63 : vector<1x128xf32> to vector<2x128xf32>
    %65 = arith.addf %62, %64 : vector<2x128xf32>
    %cst_46 = arith.constant 0.000000e+00 : f32
    %66 = vector.broadcast %cst_46 : f32 to vector<2x128xf32>
    %67 = arith.cmpf oge, %65, %66 : vector<2x128xf32>
    %68 = vector.broadcast %0 : f32 to vector<2x128xf32>
    %69 = arith.mulf %68, %65 : vector<2x128xf32>
    %70 = arith.select %67, %65, %69 : vector<2x128xi1>, vector<2x128xf32>
    %71 = arith.truncf %70 : vector<2x128xf32> to vector<2x128xbf16>
    %c0_47 = arith.constant 0 : index
    %c0_48 = arith.constant 0 : index
    %72 = vector.load %arg11[%c0_47, %c0_48] : memref<128x128xbf16, #tpu.memory_space<vmem>>, vector<128x128xbf16>
    %cst_49 = arith.constant dense<0.000000e+00> : vector<2x128xf32>
    %73 = tpu.matmul %71, %72, %cst_49 {dimension_numbers = #tpu.dot_dimension_numbers<[1], [0], [0], [1], [0, 0, 1, 1], [], []>} : vector<2x128xbf16>, vector<128x128xbf16>, vector<2x128xf32> -> vector<2x128xf32>
    %c0_50 = arith.constant 0 : index
    %c0_51 = arith.constant 0 : index
    %74 = vector.load %arg12[%c0_50, %c0_51] : memref<1x128xf32, #tpu.memory_space<vmem>>, vector<1x128xf32>
    %75 = vector.broadcast %74 : vector<1x128xf32> to vector<2x128xf32>
    %76 = arith.addf %73, %75 : vector<2x128xf32>
    %77 = tpu.iota {dimensions = array<i32: 1>} : vector<2x128xi32>
    %c50_i32 = arith.constant 50 : i32
    %78 = vector.broadcast %c50_i32 : i32 to vector<2x128xi32>
    %79 = arith.cmpi slt, %77, %78 : vector<2x128xi32>
    %cst_52 = arith.constant -1.000000e+30 : f32
    %80 = vector.broadcast %cst_52 : f32 to vector<2x128xf32>
    %81 = arith.select %79, %76, %80 : vector<2x128xi1>, vector<2x128xf32>
    %cst_53 = arith.constant dense<0xFF800000> : vector<2xf32>
    %82 = vector.multi_reduction <maximumf>, %81, %cst_53 [1] : vector<2x128xf32> to vector<2xf32>
    %83 = vector.shape_cast %82 : vector<2xf32> to vector<2x1xf32>
    %84 = vector.broadcast %83 : vector<2x1xf32> to vector<2x128xf32>
    %85 = arith.subf %81, %84 : vector<2x128xf32>
    %86 = math.exp %85 : vector<2x128xf32>
    %cst_54 = arith.constant dense<0.000000e+00> : vector<2xf32>
    %87 = vector.multi_reduction <add>, %86, %cst_54 [1] : vector<2x128xf32> to vector<2xf32>
    %88 = vector.shape_cast %87 : vector<2xf32> to vector<2x1xf32>
    %89 = math.log %88 : vector<2x1xf32>
    %90 = vector.broadcast %89 : vector<2x1xf32> to vector<2x128xf32>
    %91 = arith.subf %85, %90 : vector<2x128xf32>
    %c0_55 = arith.constant 0 : index
    %c0_56 = arith.constant 0 : index
    %92 = vector.load %arg16[%c0_55, %c0_56] : memref<2x128xf32, #tpu.memory_space<vmem>>, vector<2x128xf32>
    tpu.vector_store %arg16[%c0_55, %c0_56], %91 {strides = array<i32>} : memref<2x128xf32, #tpu.memory_space<vmem>>, vector<2x128xf32>,
    return
  }
}

module attributes {stable_mosaic.version = 11 : i64} {
  func.func @_tsd_kernel(%arg0: i32, %arg1: i32, %arg2: memref<1x24x1024xbf16, #tpu.memory_space<vmem>>, %arg3: memref<1x1x256xf32, #tpu.memory_space<vmem>>, %arg4: memref<1024x128xbf16, #tpu.memory_space<vmem>>, %arg5: memref<1x128xf32, #tpu.memory_space<vmem>>, %arg6: memref<128x256xbf16, #tpu.memory_space<vmem>>, %arg7: memref<1x256xf32, #tpu.memory_space<vmem>>, %arg8: memref<1x1xf32, #tpu.memory_space<smem>>, %arg9: memref<1x24x1xf32, #tpu.memory_space<vmem>>) attributes {dimension_semantics = [#tpu.dimension_semantics<parallel>, #tpu.dimension_semantics<parallel>], iteration_bounds = array<i64: 2, 1>, scalar_prefetch = 0 : i64, scratch_operands = 0 : i64, tpu.core_type = #tpu.core_type<tc>, window_params = [{transform_indices = @transform_0, window_bounds = array<i64: 1, 24, 1024>}, {transform_indices = @transform_1, window_bounds = array<i64: 1, 1, 256>}, {pipeline_mode = #tpu.pipeline_mode<synchronous>, transform_indices = @transform_2, window_bounds = array<i64: 1024, 128>}, {pipeline_mode = #tpu.pipeline_mode<synchronous>, transform_indices = @transform_3, window_bounds = array<i64: 1, 128>}, {pipeline_mode = #tpu.pipeline_mode<synchronous>, transform_indices = @transform_4, window_bounds = array<i64: 128, 256>}, {pipeline_mode = #tpu.pipeline_mode<synchronous>, transform_indices = @transform_5, window_bounds = array<i64: 1, 256>}, {transform_indices = @transform_6, window_bounds = array<i64: 1, 1>}, {transform_indices = @transform_7, window_bounds = array<i64: 1, 24, 1>}]} {
    %c0 = arith.constant 0 : index
    %c0_0 = arith.constant 0 : index
    %c0_1 = arith.constant 0 : index
    %0 = vector.load %arg2[%c0, %c0_0, %c0_1] : memref<1x24x1024xbf16, #tpu.memory_space<vmem>>, vector<1x24x1024xbf16>
    %1 = vector.shape_cast %0 : vector<1x24x1024xbf16> to vector<24x1024xbf16>
    %c0_2 = arith.constant 0 : index
    %c0_3 = arith.constant 0 : index
    %2 = vector.load %arg4[%c0_2, %c0_3] : memref<1024x128xbf16, #tpu.memory_space<vmem>>, vector<1024x128xbf16>
    %cst = arith.constant dense<0.000000e+00> : vector<24x128xf32>
    %3 = tpu.matmul %1, %2, %cst {dimension_numbers = #tpu.dot_dimension_numbers<[1], [0], [0], [1], [0, 0, 1, 1], [], []>} : vector<24x1024xbf16>, vector<1024x128xbf16>, vector<24x128xf32> -> vector<24x128xf32>
    %c0_4 = arith.constant 0 : index
    %c0_5 = arith.constant 0 : index
    %4 = vector.load %arg5[%c0_4, %c0_5] : memref<1x128xf32, #tpu.memory_space<vmem>>, vector<1x128xf32>
    %5 = vector.broadcast %4 : vector<1x128xf32> to vector<24x128xf32>
    %6 = arith.addf %3, %5 : vector<24x128xf32>
    %cst_6 = arith.constant 0.000000e+00 : f32
    %7 = vector.broadcast %cst_6 : f32 to vector<24x128xf32>
    %8 = arith.maximumf %6, %7 : vector<24x128xf32>
    %cst_7 = arith.constant 9.99999974E-5 : f32
    %9 = vector.broadcast %cst_7 : f32 to vector<24x128xf32>
    %10 = arith.addf %8, %9 : vector<24x128xf32>
    %11 = math.log %10 : vector<24x128xf32>
    %12 = arith.truncf %11 : vector<24x128xf32> to vector<24x128xbf16>
    %c0_8 = arith.constant 0 : index
    %c0_9 = arith.constant 0 : index
    %13 = vector.load %arg6[%c0_8, %c0_9] : memref<128x256xbf16, #tpu.memory_space<vmem>>, vector<128x256xbf16>
    %cst_10 = arith.constant dense<0.000000e+00> : vector<24x256xf32>
    %14 = tpu.matmul %12, %13, %cst_10 {dimension_numbers = #tpu.dot_dimension_numbers<[1], [0], [0], [1], [0, 0, 1, 1], [], []>} : vector<24x128xbf16>, vector<128x256xbf16>, vector<24x256xf32> -> vector<24x256xf32>
    %c0_11 = arith.constant 0 : index
    %c0_12 = arith.constant 0 : index
    %c0_13 = arith.constant 0 : index
    %15 = vector.load %arg3[%c0_11, %c0_12, %c0_13] : memref<1x1x256xf32, #tpu.memory_space<vmem>>, vector<1x1x256xf32>
    %16 = vector.shape_cast %15 : vector<1x1x256xf32> to vector<1x256xf32>
    %17 = vector.broadcast %16 : vector<1x256xf32> to vector<24x256xf32>
    %18 = arith.addf %14, %17 : vector<24x256xf32>
    %cst_14 = arith.constant 0.000000e+00 : f32
    %19 = vector.broadcast %cst_14 : f32 to vector<24x256xf32>
    %20 = arith.maximumf %18, %19 : vector<24x256xf32>
    %c0_15 = arith.constant 0 : index
    %c0_16 = arith.constant 0 : index
    %21 = vector.load %arg7[%c0_15, %c0_16] : memref<1x256xf32, #tpu.memory_space<vmem>>, vector<1x256xf32>
    %22 = vector.broadcast %21 : vector<1x256xf32> to vector<24x256xf32>
    %23 = arith.mulf %20, %22 : vector<24x256xf32>
    %cst_17 = arith.constant dense<0.000000e+00> : vector<24xf32>
    %24 = vector.multi_reduction <add>, %23, %cst_17 [1] : vector<24x256xf32> to vector<24xf32>
    %25 = vector.shape_cast %24 : vector<24xf32> to vector<24x1xf32>
    %c0_18 = arith.constant 0 : index
    %c0_19 = arith.constant 0 : index
    %26 = memref.load %arg8[%c0_18, %c0_19] : memref<1x1xf32, #tpu.memory_space<smem>>
    %27 = vector.broadcast %26 : f32 to vector<24x1xf32>
    %28 = arith.addf %25, %27 : vector<24x1xf32>
    %29 = arith.negf %28 : vector<24x1xf32>
    %30 = math.exp %29 : vector<24x1xf32>
    %cst_20 = arith.constant 1.000000e+00 : f32
    %31 = vector.broadcast %cst_20 : f32 to vector<24x1xf32>
    %32 = arith.addf %31, %30 : vector<24x1xf32>
    %33 = arith.divf %31, %32 : vector<24x1xf32>
    %34 = vector.shape_cast %33 : vector<24x1xf32> to vector<1x24x1xf32>
    %c0_21 = arith.constant 0 : index
    %c0_22 = arith.constant 0 : index
    %c0_23 = arith.constant 0 : index
    %35 = vector.load %arg9[%c0_21, %c0_22, %c0_23] : memref<1x24x1xf32, #tpu.memory_space<vmem>>, vector<1x24x1xf32>
    tpu.vector_store %arg9[%c0_21, %c0_22, %c0_23], %34 {strides = array<i32>} : memref<1x24x1xf32, #tpu.memory_space<vmem>>, vector<1x24x1xf32>,
    return
  }
  func.func @transform_0(%arg0: i32, %arg1: i32) -> (i32, i32, i32) {
    %c0_i32 = arith.constant 0 : i32
    %c0_i32_0 = arith.constant 0 : i32
    return %arg0, %arg1, %c0_i32 : i32, i32, i32
  }
  func.func @transform_1(%arg0: i32, %arg1: i32) -> (i32, i32, i32) {
    %c0_i32 = arith.constant 0 : i32
    %c0_i32_0 = arith.constant 0 : i32
    %c0_i32_1 = arith.constant 0 : i32
    return %arg0, %c0_i32, %c0_i32_0 : i32, i32, i32
  }
  func.func @transform_2(%arg0: i32, %arg1: i32) -> (i32, i32) {
    %c0_i32 = arith.constant 0 : i32
    %c0_i32_0 = arith.constant 0 : i32
    %c0_i32_1 = arith.constant 0 : i32
    return %c0_i32, %c0_i32_0 : i32, i32
  }
  func.func @transform_3(%arg0: i32, %arg1: i32) -> (i32, i32) {
    %c0_i32 = arith.constant 0 : i32
    %c0_i32_0 = arith.constant 0 : i32
    %c0_i32_1 = arith.constant 0 : i32
    return %c0_i32, %c0_i32_0 : i32, i32
  }
  func.func @transform_4(%arg0: i32, %arg1: i32) -> (i32, i32) {
    %c0_i32 = arith.constant 0 : i32
    %c0_i32_0 = arith.constant 0 : i32
    %c0_i32_1 = arith.constant 0 : i32
    return %c0_i32, %c0_i32_0 : i32, i32
  }
  func.func @transform_5(%arg0: i32, %arg1: i32) -> (i32, i32) {
    %c0_i32 = arith.constant 0 : i32
    %c0_i32_0 = arith.constant 0 : i32
    %c0_i32_1 = arith.constant 0 : i32
    return %c0_i32, %c0_i32_0 : i32, i32
  }
  func.func @transform_6(%arg0: i32, %arg1: i32) -> (i32, i32) {
    %c0_i32 = arith.constant 0 : i32
    %c0_i32_0 = arith.constant 0 : i32
    %c0_i32_1 = arith.constant 0 : i32
    return %c0_i32, %c0_i32_0 : i32, i32
  }
  func.func @transform_7(%arg0: i32, %arg1: i32) -> (i32, i32, i32) {
    %c0_i32 = arith.constant 0 : i32
    %c0_i32_0 = arith.constant 0 : i32
    return %arg0, %arg1, %c0_i32 : i32, i32, i32
  }
}

</mosaic_0001>

<llo_original>
// kernel: tsdnet_forward.2
$region0: #{tsdnet_forward.2}
  #allocation0 [shape = 'u32[]', space=smem, size = 0x4, offset = 0x4, fixed_abs, tag = 'smem constant byte address 0x4 - core index']
  #allocation1 [shape = 'u32[144,128]{1,0:T(1,128)}', space=vmem, size = 0x12000, scoped, tag = 'internal scratch']
  #allocation2 [shape = 'f32[1,1]{1,0:T(1,128)S(6)}', space=smem, size = 0x200, scoped, tag = 'scoped memory for tsdnet_forward.2']
  %s0 = inlined_call_operand.vmem [shape: bf16[2,16,1024], index: 0, kind: input, shape index: {}]
  %s1 = inlined_call_operand.vmem [shape: bf16[1024,128], index: 1, kind: input, shape index: {}]
  %s2 = inlined_call_operand.vmem [shape: f32[1,128], index: 2, kind: input, shape index: {}]
  %s3 = inlined_call_operand.vmem [shape: bf16[128,512], index: 3, kind: input, shape index: {}]
  %s4 = inlined_call_operand.vmem [shape: f32[1,512], index: 4, kind: input, shape index: {}]
  %s5 = inlined_call_operand.vmem [shape: bf16[512,512], index: 5, kind: input, shape index: {}]
  %s6 = inlined_call_operand.vmem [shape: f32[1,512], index: 6, kind: input, shape index: {}]
  %s7 = inlined_call_operand.vmem [shape: bf16[512,128], index: 7, kind: input, shape index: {}]
  %s8 = inlined_call_operand.vmem [shape: f32[1,128], index: 8, kind: input, shape index: {}]
  %s9 = inlined_call_operand.vmem [shape: bf16[128,128], index: 9, kind: input, shape index: {}]
  %s10 = inlined_call_operand.vmem [shape: f32[1,128], index: 10, kind: input, shape index: {}]
  %s11 = inlined_call_operand.vmem [shape: bf16[128,128], index: 11, kind: input, shape index: {}]
  %s12 = inlined_call_operand.vmem [shape: f32[1,128], index: 12, kind: input, shape index: {}]
  %s13 = inlined_call_operand.vmem [shape: bf16[128,256], index: 13, kind: input, shape index: {}]
  %s14 = inlined_call_operand.vmem [shape: f32[1,256], index: 14, kind: input, shape index: {}]
  %s15 = inlined_call_operand.<no memory space> [shape: f32[1,1], index: 15, kind: input, shape index: {}]
  %s16 = inlined_call_operand.hbm [shape: f32[2,128], index: 16, kind: output, shape index: {0}]
  %s17 = inlined_call_operand.vmem [shape: f32[2,1,256], index: 17, kind: output, shape index: {1}]
  %18 = xla_tuple %s16, %s17
  %s19 = sld [smem:[#allocation0]]
  $region82: #{tsdnet_forward.2} parent=0
    _
  %s21 = ssub.s32 1, %s19
  %s22 = scalar_select 0, %s21, %s19
  %23 = sst [smem:[#allocation2]] %s15
  $region1: #{tsdnet_forward.2} parent=0
    #allocation3 [shape = 'u8[1024]{0}', space=vmem, size = 0x400, scoped, tag = 'output window, operand 0, single buffered']
    #allocation4 [shape = 's32[1]{0}', space=sflag, size = 0x4, scoped, tag = 'scoped memory for tsdnet_forward.2']
    %24 = vsyncpa [#allocation4], 0
    // Predicated region
    $region2: #{tsdnet_forward.2} parent=1 // pred_check
      _
    $region3: #{tsdnet_forward.2} parent=1 // pred_check_branch
      %26 = sbr.rel (0) target = $region5
    $region4: #{tsdnet_forward.2} parent=1 // pred_region
      _
    $region5: #{tsdnet_forward.2} parent=1 // pred_fallthru
      _
    // Predicated region
    $region6: #{tsdnet_forward.2} parent=1 // pred_check
      _
    $region7: #{tsdnet_forward.2} parent=1 // pred_check_branch
      %28 = sbr.rel (0) target = $region9
    $region8: #{tsdnet_forward.2} parent=1 // pred_region
      _
    $region9: #{tsdnet_forward.2} parent=1 // pred_fallthru
      _
    // Predicated region
    $region10: #{tsdnet_forward.2} parent=1 // pred_check
      _
    $region11: #{tsdnet_forward.2} parent=1 // pred_check_branch
      %30 = sbr.rel (0) target = $region13
    $region12: #{tsdnet_forward.2} parent=1 // pred_region
      _
    $region13: #{tsdnet_forward.2} parent=1 // pred_fallthru
      _
    // Predicated region
    $region14: #{tsdnet_forward.2} parent=1 // pred_check
      _
    $region15: #{tsdnet_forward.2} parent=1 // pred_check_branch
      %32 = sbr.rel (0) target = $region17
    $region16: #{tsdnet_forward.2} parent=1 // pred_region
      _
    $region17: #{tsdnet_forward.2} parent=1 // pred_fallthru
      _
    // Predicated region
    $region18: #{tsdnet_forward.2} parent=1 // pred_check
      _
    $region19: #{tsdnet_forward.2} parent=1 // pred_check_branch
      %34 = sbr.rel (0) target = $region21
    $region20: #{tsdnet_forward.2} parent=1 // pred_region
      _
    $region21: #{tsdnet_forward.2} parent=1 // pred_fallthru
      _
    // Predicated region
    $region22: #{tsdnet_forward.2} parent=1 // pred_check
      _
    $region23: #{tsdnet_forward.2} parent=1 // pred_check_branch
      %36 = sbr.rel (0) target = $region25
    $region24: #{tsdnet_forward.2} parent=1 // pred_region
      _
    $region25: #{tsdnet_forward.2} parent=1 // pred_fallthru
      _
    // Predicated region
    $region26: #{tsdnet_forward.2} parent=1 // pred_check
      _
    $region27: #{tsdnet_forward.2} parent=1 // pred_check_branch
      %38 = sbr.rel (0) target = $region29
    $region28: #{tsdnet_forward.2} parent=1 // pred_region
      _
    $region29: #{tsdnet_forward.2} parent=1 // pred_fallthru
      _
    // Predicated region
    $region30: #{tsdnet_forward.2} parent=1 // pred_check
      _
    $region31: #{tsdnet_forward.2} parent=1 // pred_check_branch
      %40 = sbr.rel (0) target = $region33
    $region32: #{tsdnet_forward.2} parent=1 // pred_region
      _
    $region33: #{tsdnet_forward.2} parent=1 // pred_fallthru
      _
    // Predicated region
    $region34: #{tsdnet_forward.2} parent=1 // pred_check
      _
    $region35: #{tsdnet_forward.2} parent=1 // pred_check_branch
      %42 = sbr.rel (0) target = $region37
    $region36: #{tsdnet_forward.2} parent=1 // pred_region
      _
    $region37: #{tsdnet_forward.2} parent=1 // pred_fallthru
      _
    // Predicated region
    $region38: #{tsdnet_forward.2} parent=1 // pred_check
      _
    $region39: #{tsdnet_forward.2} parent=1 // pred_check_branch
      %44 = sbr.rel (0) target = $region41
    $region40: #{tsdnet_forward.2} parent=1 // pred_region
      _
    $region41: #{tsdnet_forward.2} parent=1 // pred_fallthru
      _
    // Predicated region
    $region42: #{tsdnet_forward.2} parent=1 // pred_check
      _
    $region43: #{tsdnet_forward.2} parent=1 // pred_check_branch
      %46 = sbr.rel (0) target = $region45
    $region44: #{tsdnet_forward.2} parent=1 // pred_region
      _
    $region45: #{tsdnet_forward.2} parent=1 // pred_fallthru
      _
    // Predicated region
    $region46: #{tsdnet_forward.2} parent=1 // pred_check
      _
    $region47: #{tsdnet_forward.2} parent=1 // pred_check_branch
      %48 = sbr.rel (0) target = $region49
    $region48: #{tsdnet_forward.2} parent=1 // pred_region
      _
    $region49: #{tsdnet_forward.2} parent=1 // pred_fallthru
      _
    // Predicated region
    $region50: #{tsdnet_forward.2} parent=1 // pred_check
      _
    $region51: #{tsdnet_forward.2} parent=1 // pred_check_branch
      %50 = sbr.rel (0) target = $region53
    $region52: #{tsdnet_forward.2} parent=1 // pred_region
      _
    $region53: #{tsdnet_forward.2} parent=1 // pred_fallthru
      _
    // Predicated region
    $region54: #{tsdnet_forward.2} parent=1 // pred_check
      _
    $region55: #{tsdnet_forward.2} parent=1 // pred_check_branch
      %52 = sbr.rel (0) target = $region57
    $region56: #{tsdnet_forward.2} parent=1 // pred_region
      _
    $region57: #{tsdnet_forward.2} parent=1 // pred_fallthru
      _
    // Predicated region
    $region58: #{tsdnet_forward.2} parent=1 // pred_check
      _
    $region59: #{tsdnet_forward.2} parent=1 // pred_check_branch
      %54 = sbr.rel (0) target = $region61
    $region60: #{tsdnet_forward.2} parent=1 // pred_region
      _
    $region61: #{tsdnet_forward.2} parent=1 // pred_fallthru
      _
    // Predicated region
    $region62: #{tsdnet_forward.2} parent=1 // pred_check
      _
    $region63: #{tsdnet_forward.2} parent=1 // pred_check_branch
      %56 = sbr.rel (0) target = $region65
    $region64: #{tsdnet_forward.2} parent=1 // pred_region
      _
    $region65: #{tsdnet_forward.2} parent=1 // pred_fallthru
      _
    %s58 = sld [smem:[#allocation2]]
    %v59 = vld [vmem:[%s0] sm:$0xff]
    %v60 = vld [vmem:[%s0 + $0x8] sm:$0xff]
    %v61 = vld [vmem:[%s0 + $0x10] sm:$0xff]
    %v62 = vld [vmem:[%s0 + $0x18] sm:$0xff]
    %v63 = vld [vmem:[%s0 + $0x20] sm:$0xff]
    %v64 = vld [vmem:[%s0 + $0x28] sm:$0xff]
    %v65 = vld [vmem:[%s0 + $0x30] sm:$0xff]
    %v66 = vld [vmem:[%s0 + $0x38] sm:$0xff]
    %v67 = vld [vmem:[%s0 + $0x40] sm:$0xff]
    %v68 = vld [vmem:[%s0 + $0x48] sm:$0xff]
    %v69 = vld [vmem:[%s0 + $0x50] sm:$0xff]
    %v70 = vld [vmem:[%s0 + $0x58] sm:$0xff]
    %v71 = vld [vmem:[%s0 + $0x60] sm:$0xff]
    %v72 = vld [vmem:[%s0 + $0x68] sm:$0xff]
    %v73 = vld [vmem:[%s0 + $0x70] sm:$0xff]
    %v74 = vld [vmem:[%s0 + $0x78] sm:$0xff]
    %v75 = vld [vmem:[%s1] sm:$0xf]
    %v76 = vld [vmem:[%s1 + $0x4] sm:$0xf]
    %v77 = vld [vmem:[%s1 + $0x8] sm:$0xf]
    %v78 = vld [vmem:[%s1 + $0xc] sm:$0xf]
    %v79 = vld [vmem:[%s1 + $0x10] sm:$0xf]
    %v80 = vld [vmem:[%s1 + $0x14] sm:$0xf]
    %v81 = vld [vmem:[%s1 + $0x18] sm:$0xf]
    %v82 = vld [vmem:[%s1 + $0x1c] sm:$0xf]
    %v83 = vld [vmem:[%s1 + $0x20] sm:$0xf]
    %v84 = vld [vmem:[%s1 + $0x24] sm:$0xf]
    %v85 = vld [vmem:[%s1 + $0x28] sm:$0xf]
    %v86 = vld [vmem:[%s1 + $0x2c] sm:$0xf]
    %v87 = vld [vmem:[%s1 + $0x30] sm:$0xf]
    %v88 = vld [vmem:[%s1 + $0x34] sm:$0xf]
    %v89 = vld [vmem:[%s1 + $0x38] sm:$0xf]
    %v90 = vld [vmem:[%s1 + $0x3c] sm:$0xf]
    %v91 = vld [vmem:[%s1 + $0x40] sm:$0xf]
    %v92 = vld [vmem:[%s1 + $0x44] sm:$0xf]
    %v93 = vld [vmem:[%s1 + $0x48] sm:$0xf]
    %v94 = vld [vmem:[%s1 + $0x4c] sm:$0xf]
    %v95 = vld [vmem:[%s1 + $0x50] sm:$0xf]
    %v96 = vld [vmem:[%s1 + $0x54] sm:$0xf]
    %v97 = vld [vmem:[%s1 + $0x58] sm:$0xf]
    %v98 = vld [vmem:[%s1 + $0x5c] sm:$0xf]
    %v99 = vld [vmem:[%s1 + $0x60] sm:$0xf]
    %v100 = vld [vmem:[%s1 + $0x64] sm:$0xf]
    %v101 = vld [vmem:[%s1 + $0x68] sm:$0xf]
    %v102 = vld [vmem:[%s1 + $0x6c] sm:$0xf]
    %v103 = vld [vmem:[%s1 + $0x70] sm:$0xf]
    %v104 = vld [vmem:[%s1 + $0x74] sm:$0xf]
    %v105 = vld [vmem:[%s1 + $0x78] sm:$0xf]
    %v106 = vld [vmem:[%s1 + $0x7c] sm:$0xf]
    %v107 = vld [vmem:[%s1 + $0x80] sm:$0xf]
    %v108 = vld [vmem:[%s1 + $0x84] sm:$0xf]
    %v109 = vld [vmem:[%s1 + $0x88] sm:$0xf]
    %v110 = vld [vmem:[%s1 + $0x8c] sm:$0xf]
    %v111 = vld [vmem:[%s1 + $0x90] sm:$0xf]
    %v112 = vld [vmem:[%s1 + $0x94] sm:$0xf]
    %v113 = vld [vmem:[%s1 + $0x98] sm:$0xf]
    %v114 = vld [vmem:[%s1 + $0x9c] sm:$0xf]
    %v115 = vld [vmem:[%s1 + $0xa0] sm:$0xf]
    %v116 = vld [vmem:[%s1 + $0xa4] sm:$0xf]
    %v117 = vld [vmem:[%s1 + $0xa8] sm:$0xf]
    %v118 = vld [vmem:[%s1 + $0xac] sm:$0xf]
    %v119 = vld [vmem:[%s1 + $0xb0] sm:$0xf]
    %v120 = vld [vmem:[%s1 + $0xb4] sm:$0xf]
    %v121 = vld [vmem:[%s1 + $0xb8] sm:$0xf]
    %v122 = vld [vmem:[%s1 + $0xbc] sm:$0xf]
    %v123 = vld [vmem:[%s1 + $0xc0] sm:$0xf]
    %v124 = vld [vmem:[%s1 + $0xc4] sm:$0xf]
    %v125 = vld [vmem:[%s1 + $0xc8] sm:$0xf]
    %v126 = vld [vmem:[%s1 + $0xcc] sm:$0xf]
    %v127 = vld [vmem:[%s1 + $0xd0] sm:$0xf]
    %v128 = vld [vmem:[%s1 + $0xd4] sm:$0xf]
    %v129 = vld [vmem:[%s1 + $0xd8] sm:$0xf]
    %v130 = vld [vmem:[%s1 + $0xdc] sm:$0xf]
    %v131 = vld [vmem:[%s1 + $0xe0] sm:$0xf]
    %v132 = vld [vmem:[%s1 + $0xe4] sm:$0xf]
    %v133 = vld [vmem:[%s1 + $0xe8] sm:$0xf]
    %v134 = vld [vmem:[%s1 + $0xec] sm:$0xf]
    %v135 = vld [vmem:[%s1 + $0xf0] sm:$0xf]
    %v136 = vld [vmem:[%s1 + $0xf4] sm:$0xf]
    %v137 = vld [vmem:[%s1 + $0xf8] sm:$0xf]
    %v138 = vld [vmem:[%s1 + $0xfc] sm:$0xf]
    %v139 = vld [vmem:[%s1 + $0x100] sm:$0xf]
    %v140 = vld [vmem:[%s1 + $0x104] sm:$0xf]
    %v141 = vld [vmem:[%s1 + $0x108] sm:$0xf]
    %v142 = vld [vmem:[%s1 + $0x10c] sm:$0xf]
    %v143 = vld [vmem:[%s1 + $0x110] sm:$0xf]
    %v144 = vld [vmem:[%s1 + $0x114] sm:$0xf]
    %v145 = vld [vmem:[%s1 + $0x118] sm:$0xf]
    %v146 = vld [vmem:[%s1 + $0x11c] sm:$0xf]
    %v147 = vld [vmem:[%s1 + $0x120] sm:$0xf]
    %v148 = vld [vmem:[%s1 + $0x124] sm:$0xf]
    %v149 = vld [vmem:[%s1 + $0x128] sm:$0xf]
    %v150 = vld [vmem:[%s1 + $0x12c] sm:$0xf]
    %v151 = vld [vmem:[%s1 + $0x130] sm:$0xf]
    %v152 = vld [vmem:[%s1 + $0x134] sm:$0xf]
    %v153 = vld [vmem:[%s1 + $0x138] sm:$0xf]
    %v154 = vld [vmem:[%s1 + $0x13c] sm:$0xf]
    %v155 = vld [vmem:[%s1 + $0x140] sm:$0xf]
    %v156 = vld [vmem:[%s1 + $0x144] sm:$0xf]
    %v157 = vld [vmem:[%s1 + $0x148] sm:$0xf]
    %v158 = vld [vmem:[%s1 + $0x14c] sm:$0xf]
    %v159 = vld [vmem:[%s1 + $0x150] sm:$0xf]
    %v160 = vld [vmem:[%s1 + $0x154] sm:$0xf]
    %v161 = vld [vmem:[%s1 + $0x158] sm:$0xf]
    %v162 = vld [vmem:[%s1 + $0x15c] sm:$0xf]
    %v163 = vld [vmem:[%s1 + $0x160] sm:$0xf]
    %v164 = vld [vmem:[%s1 + $0x164] sm:$0xf]
    %v165 = vld [vmem:[%s1 + $0x168] sm:$0xf]
    %v166 = vld [vmem:[%s1 + $0x16c] sm:$0xf]
    %v167 = vld [vmem:[%s1 + $0x170] sm:$0xf]
    %v168 = vld [vmem:[%s1 + $0x174] sm:$0xf]
    %v169 = vld [vmem:[%s1 + $0x178] sm:$0xf]
    %v170 = vld [vmem:[%s1 + $0x17c] sm:$0xf]
    %v171 = vld [vmem:[%s1 + $0x180] sm:$0xf]
    %v172 = vld [vmem:[%s1 + $0x184] sm:$0xf]
    %v173 = vld [vmem:[%s1 + $0x188] sm:$0xf]
    %v174 = vld [vmem:[%s1 + $0x18c] sm:$0xf]
    %v175 = vld [vmem:[%s1 + $0x190] sm:$0xf]
    %v176 = vld [vmem:[%s1 + $0x194] sm:$0xf]
    %v177 = vld [vmem:[%s1 + $0x198] sm:$0xf]
    %v178 = vld [vmem:[%s1 + $0x19c] sm:$0xf]
    %v179 = vld [vmem:[%s1 + $0x1a0] sm:$0xf]
    %v180 = vld [vmem:[%s1 + $0x1a4] sm:$0xf]
    %v181 = vld [vmem:[%s1 + $0x1a8] sm:$0xf]
    %v182 = vld [vmem:[%s1 + $0x1ac] sm:$0xf]
    %v183 = vld [vmem:[%s1 + $0x1b0] sm:$0xf]
    %v184 = vld [vmem:[%s1 + $0x1b4] sm:$0xf]
    %v185 = vld [vmem:[%s1 + $0x1b8] sm:$0xf]
    %v186 = vld [vmem:[%s1 + $0x1bc] sm:$0xf]
    %v187 = vld [vmem:[%s1 + $0x1c0] sm:$0xf]
    %v188 = vld [vmem:[%s1 + $0x1c4] sm:$0xf]
    %v189 = vld [vmem:[%s1 + $0x1c8] sm:$0xf]
    %v190 = vld [vmem:[%s1 + $0x1cc] sm:$0xf]
    %v191 = vld [vmem:[%s1 + $0x1d0] sm:$0xf]
    %v192 = vld [vmem:[%s1 + $0x1d4] sm:$0xf]
    %v193 = vld [vmem:[%s1 + $0x1d8] sm:$0xf]
    %v194 = vld [vmem:[%s1 + $0x1dc] sm:$0xf]
    %v195 = vld [vmem:[%s1 + $0x1e0] sm:$0xf]
    %v196 = vld [vmem:[%s1 + $0x1e4] sm:$0xf]
    %v197 = vld [vmem:[%s1 + $0x1e8] sm:$0xf]
    %v198 = vld [vmem:[%s1 + $0x1ec] sm:$0xf]
    %v199 = vld [vmem:[%s1 + $0x1f0] sm:$0xf]
    %v200 = vld [vmem:[%s1 + $0x1f4] sm:$0xf]
    %v201 = vld [vmem:[%s1 + $0x1f8] sm:$0xf]
    %v202 = vld [vmem:[%s1 + $0x1fc] sm:$0xf]
    %v203 = vld [vmem:[%s2] sm:$0x1]
    %v205 = vlaneseq
    %v206 = vshrl.u32 %v205, 7
    %v207 = vsub.s32 0, %v206
    %v208 = vrot.slane %v203, %v207
    %v226 = vunpack.c.l.b16 %v59
    %v227 = vunpack.c.h.b16 %v59
    %v228 = vunpack.c.l.b16 %v60
    %v229 = vunpack.c.h.b16 %v60
    %v230 = vunpack.c.l.b16 %v61
    %v231 = vunpack.c.h.b16 %v61
    %v232 = vunpack.c.l.b16 %v62
    %v233 = vunpack.c.h.b16 %v62
    %v234 = vunpack.c.l.b16 %v63
    %v235 = vunpack.c.h.b16 %v63
    %v236 = vunpack.c.l.b16 %v64
    %v237 = vunpack.c.h.b16 %v64
    %v238 = vunpack.c.l.b16 %v65
    %v239 = vunpack.c.h.b16 %v65
    %v240 = vunpack.c.l.b16 %v66
    %v241 = vunpack.c.h.b16 %v66
    %v242 = vunpack.c.l.b16 %v67
    %v243 = vunpack.c.h.b16 %v67
    %v244 = vunpack.c.l.b16 %v68
    %v245 = vunpack.c.h.b16 %v68
    %v246 = vunpack.c.l.b16 %v69
    %v247 = vunpack.c.h.b16 %v69
    %v248 = vunpack.c.l.b16 %v70
    %v249 = vunpack.c.h.b16 %v70
    %v250 = vunpack.c.l.b16 %v71
    %v251 = vunpack.c.h.b16 %v71
    %v252 = vunpack.c.l.b16 %v72
    %v253 = vunpack.c.h.b16 %v72
    %v254 = vunpack.c.l.b16 %v73
    %v255 = vunpack.c.h.b16 %v73
    %v256 = vunpack.c.l.b16 %v74
    %v257 = vunpack.c.h.b16 %v74
    %v258 = vpack.c.b16 %v234, %v226
    %v259 = vpack.c.b16 %v235, %v227
    %v260 = vpack.c.b16 %v236, %v228
    %v261 = vpack.c.b16 %v237, %v229
    %v262 = vpack.c.b16 %v238, %v230
    %v263 = vpack.c.b16 %v239, %v231
    %v264 = vpack.c.b16 %v240, %v232
    %v265 = vpack.c.b16 %v241, %v233
    %v266 = vpack.c.b16 %v250, %v242
    %v267 = vpack.c.b16 %v251, %v243
    %v268 = vpack.c.b16 %v252, %v244
    %v269 = vpack.c.b16 %v253, %v245
    %v270 = vpack.c.b16 %v254, %v246
    %v271 = vpack.c.b16 %v255, %v247
    %v272 = vpack.c.b16 %v256, %v248
    %v273 = vpack.c.b16 %v257, %v249
    %v418 = vunpack.c.l.b16 %v75
    %v419 = vunpack.c.l.b16 %v76
    %v420 = vunpack.c.l.b16 %v77
    %v421 = vunpack.c.l.b16 %v78
    %v422 = vunpack.c.l.b16 %v79
    %v423 = vunpack.c.l.b16 %v80
    %v424 = vunpack.c.l.b16 %v81
    %v425 = vunpack.c.l.b16 %v82
    %v426 = vunpack.c.l.b16 %v83
    %v427 = vunpack.c.l.b16 %v84
    %v428 = vunpack.c.l.b16 %v85
    %v429 = vunpack.c.l.b16 %v86
    %v430 = vunpack.c.l.b16 %v87
    %v431 = vunpack.c.l.b16 %v88
    %v432 = vunpack.c.l.b16 %v89
    %v433 = vunpack.c.l.b16 %v90
    %v434 = vunpack.c.l.b16 %v91
    %v435 = vunpack.c.l.b16 %v92
    %v436 = vunpack.c.l.b16 %v93
    %v437 = vunpack.c.l.b16 %v94
    %v438 = vunpack.c.l.b16 %v95
    %v439 = vunpack.c.l.b16 %v96
    %v440 = vunpack.c.l.b16 %v97
    %v441 = vunpack.c.l.b16 %v98
    %v442 = vunpack.c.l.b16 %v99
    %v443 = vunpack.c.l.b16 %v100
    %v444 = vunpack.c.l.b16 %v101
    %v445 = vunpack.c.l.b16 %v102
    %v446 = vunpack.c.l.b16 %v103
    %v447 = vunpack.c.l.b16 %v104
    %v448 = vunpack.c.l.b16 %v105
    %v449 = vunpack.c.l.b16 %v106
    %v450 = vunpack.c.l.b16 %v107
    %v451 = vunpack.c.l.b16 %v108
    %v452 = vunpack.c.l.b16 %v109
    %v453 = vunpack.c.l.b16 %v110
    %v454 = vunpack.c.l.b16 %v111
    %v455 = vunpack.c.l.b16 %v112
    %v456 = vunpack.c.l.b16 %v113
    %v457 = vunpack.c.l.b16 %v114
    %v458 = vunpack.c.l.b16 %v115
    %v459 = vunpack.c.l.b16 %v116
    %v460 = vunpack.c.l.b16 %v117
    %v461 = vunpack.c.l.b16 %v118
    %v462 = vunpack.c.l.b16 %v119
    %v463 = vunpack.c.l.b16 %v120
    %v464 = vunpack.c.l.b16 %v121
    %v465 = vunpack.c.l.b16 %v122
    %v466 = vunpack.c.l.b16 %v123
    %v467 = vunpack.c.l.b16 %v124
    %v468 = vunpack.c.l.b16 %v125
    %v469 = vunpack.c.l.b16 %v126
    %v470 = vunpack.c.l.b16 %v127
    %v471 = vunpack.c.l.b16 %v128
    %v472 = vunpack.c.l.b16 %v129
    %v473 = vunpack.c.l.b16 %v130
    %v474 = vunpack.c.l.b16 %v131
    %v475 = vunpack.c.l.b16 %v132
    %v476 = vunpack.c.l.b16 %v133
    %v477 = vunpack.c.l.b16 %v134
    %v478 = vunpack.c.l.b16 %v135
    %v479 = vunpack.c.l.b16 %v136
    %v480 = vunpack.c.l.b16 %v137
    %v481 = vunpack.c.l.b16 %v138
    %v482 = vunpack.c.l.b16 %v139
    %v483 = vunpack.c.l.b16 %v140
    %v484 = vunpack.c.l.b16 %v141
    %v485 = vunpack.c.l.b16 %v142
    %v486 = vunpack.c.l.b16 %v143
    %v487 = vunpack.c.l.b16 %v144
    %v488 = vunpack.c.l.b16 %v145
    %v489 = vunpack.c.l.b16 %v146
    %v490 = vunpack.c.l.b16 %v147
    %v491 = vunpack.c.l.b16 %v148
    %v492 = vunpack.c.l.b16 %v149
    %v493 = vunpack.c.l.b16 %v150
    %v494 = vunpack.c.l.b16 %v151
    %v495 = vunpack.c.l.b16 %v152
    %v496 = vunpack.c.l.b16 %v153
    %v497 = vunpack.c.l.b16 %v154
    %v498 = vunpack.c.l.b16 %v155
    %v499 = vunpack.c.l.b16 %v156
    %v500 = vunpack.c.l.b16 %v157
    %v501 = vunpack.c.l.b16 %v158
    %v502 = vunpack.c.l.b16 %v159
    %v503 = vunpack.c.l.b16 %v160
    %v504 = vunpack.c.l.b16 %v161
    %v505 = vunpack.c.l.b16 %v162
    %v506 = vunpack.c.l.b16 %v163
    %v507 = vunpack.c.l.b16 %v164
    %v508 = vunpack.c.l.b16 %v165
    %v509 = vunpack.c.l.b16 %v166
    %v510 = vunpack.c.l.b16 %v167
    %v511 = vunpack.c.l.b16 %v168
    %v512 = vunpack.c.l.b16 %v169
    %v513 = vunpack.c.l.b16 %v170
    %v514 = vunpack.c.l.b16 %v171
    %v515 = vunpack.c.l.b16 %v172
    %v516 = vunpack.c.l.b16 %v173
    %v517 = vunpack.c.l.b16 %v174
    %v518 = vunpack.c.l.b16 %v175
    %v519 = vunpack.c.l.b16 %v176
    %v520 = vunpack.c.l.b16 %v177
    %v521 = vunpack.c.l.b16 %v178
    %v522 = vunpack.c.l.b16 %v179
    %v523 = vunpack.c.l.b16 %v180
    %v524 = vunpack.c.l.b16 %v181
    %v525 = vunpack.c.l.b16 %v182
    %v526 = vunpack.c.l.b16 %v183
    %v527 = vunpack.c.l.b16 %v184
    %v528 = vunpack.c.l.b16 %v185
    %v529 = vunpack.c.l.b16 %v186
    %v530 = vunpack.c.l.b16 %v187
    %v531 = vunpack.c.l.b16 %v188
    %v532 = vunpack.c.l.b16 %v189
    %v533 = vunpack.c.l.b16 %v190
    %v534 = vunpack.c.l.b16 %v191
    %v535 = vunpack.c.l.b16 %v192
    %v536 = vunpack.c.l.b16 %v193
    %v537 = vunpack.c.l.b16 %v194
    %v538 = vunpack.c.l.b16 %v195
    %v539 = vunpack.c.l.b16 %v196
    %v540 = vunpack.c.l.b16 %v197
    %v541 = vunpack.c.l.b16 %v198
    %v542 = vunpack.c.l.b16 %v199
    %v543 = vunpack.c.l.b16 %v200
    %v544 = vunpack.c.l.b16 %v201
    %v545 = vunpack.c.l.b16 %v202
    %v546 = vpack.c.b16 %v419, %v418
    %v547 = vpack.c.b16 %v421, %v420
    %v548 = vpack.c.b16 %v423, %v422
    %v549 = vpack.c.b16 %v425, %v424
    %v550 = vpack.c.b16 %v427, %v426
    %v551 = vpack.c.b16 %v429, %v428
    %v552 = vpack.c.b16 %v431, %v430
    %v553 = vpack.c.b16 %v433, %v432
    %v554 = vpack.c.b16 %v435, %v434
    %v555 = vpack.c.b16 %v437, %v436
    %v556 = vpack.c.b16 %v439, %v438
    %v557 = vpack.c.b16 %v441, %v440
    %v558 = vpack.c.b16 %v443, %v442
    %v559 = vpack.c.b16 %v445, %v444
    %v560 = vpack.c.b16 %v447, %v446
    %v561 = vpack.c.b16 %v449, %v448
    %v562 = vpack.c.b16 %v451, %v450
    %v563 = vpack.c.b16 %v453, %v452
    %v564 = vpack.c.b16 %v455, %v454
    %v565 = vpack.c.b16 %v457, %v456
    %v566 = vpack.c.b16 %v459, %v458
    %v567 = vpack.c.b16 %v461, %v460
    %v568 = vpack.c.b16 %v463, %v462
    %v569 = vpack.c.b16 %v465, %v464
    %v570 = vpack.c.b16 %v467, %v466
    %v571 = vpack.c.b16 %v469, %v468
    %v572 = vpack.c.b16 %v471, %v470
    %v573 = vpack.c.b16 %v473, %v472
    %v574 = vpack.c.b16 %v475, %v474
    %v575 = vpack.c.b16 %v477, %v476
    %v576 = vpack.c.b16 %v479, %v478
    %v577 = vpack.c.b16 %v481, %v480
    %v578 = vpack.c.b16 %v483, %v482
    %v579 = vpack.c.b16 %v485, %v484
    %v580 = vpack.c.b16 %v487, %v486
    %v581 = vpack.c.b16 %v489, %v488
    %v582 = vpack.c.b16 %v491, %v490
    %v583 = vpack.c.b16 %v493, %v492
    %v584 = vpack.c.b16 %v495, %v494
    %v585 = vpack.c.b16 %v497, %v496
    %v586 = vpack.c.b16 %v499, %v498
    %v587 = vpack.c.b16 %v501, %v500
    %v588 = vpack.c.b16 %v503, %v502
    %v589 = vpack.c.b16 %v505, %v504
    %v590 = vpack.c.b16 %v507, %v506
    %v591 = vpack.c.b16 %v509, %v508
    %v592 = vpack.c.b16 %v511, %v510
    %v593 = vpack.c.b16 %v513, %v512
    %v594 = vpack.c.b16 %v515, %v514
    %v595 = vpack.c.b16 %v517, %v516
    %v596 = vpack.c.b16 %v519, %v518
    %v597 = vpack.c.b16 %v521, %v520
    %v598 = vpack.c.b16 %v523, %v522
    %v599 = vpack.c.b16 %v525, %v524
    %v600 = vpack.c.b16 %v527, %v526
    %v601 = vpack.c.b16 %v529, %v528
    %v602 = vpack.c.b16 %v531, %v530
    %v603 = vpack.c.b16 %v533, %v532
    %v604 = vpack.c.b16 %v535, %v534
    %v605 = vpack.c.b16 %v537, %v536
    %v606 = vpack.c.b16 %v539, %v538
    %v607 = vpack.c.b16 %v541, %v540
    %v608 = vpack.c.b16 %v543, %v542
    %v609 = vpack.c.b16 %v545, %v544
    %674 = vmatprep.subr.bf16.mxu0 0
    %675 = vmatpush1.bf16.msra.mxu0 %v553
    %676 = vmatprep.subr.bf16.mxu0 0
    %677 = vmatpush1.bf16.msra.mxu0 %v552
    %678 = vmatprep.subr.bf16.mxu0 0
    %679 = vmatpush1.bf16.msra.mxu0 %v551
    %680 = vmatprep.subr.bf16.mxu0 0
    %681 = vmatpush1.bf16.msra.mxu0 %v550
    %682 = vmatprep.subr.bf16.mxu0 0
    %683 = vmatpush1.bf16.msra.mxu0 %v549
    %684 = vmatprep.subr.bf16.mxu0 0
    %685 = vmatpush1.bf16.msra.mxu0 %v548
    %686 = vmatprep.subr.bf16.mxu0 0
    %687 = vmatpush1.bf16.msra.mxu0 %v547
    %688 = vmatprep.subr.bf16.mxu0 0
    %689 = vmatpush1.bf16.msra.mxu0 %v546
    %690 = vmatprep.subr.bf16.mxu0 0
    %691 = vmatpush2.bf16.msra.mxu0 %v561
    %692 = vmatprep.subr.bf16.mxu0 0
    %693 = vmatpush2.bf16.msra.mxu0 %v560
    %694 = vmatprep.subr.bf16.mxu0 0
    %695 = vmatpush2.bf16.msra.mxu0 %v559
    %696 = vmatprep.subr.bf16.mxu0 0
    %697 = vmatpush2.bf16.msra.mxu0 %v558
    %698 = vmatprep.subr.bf16.mxu0 0
    %699 = vmatpush2.bf16.msra.mxu0 %v557
    %700 = vmatprep.subr.bf16.mxu0 0
    %701 = vmatpush2.bf16.msra.mxu0 %v556
    %702 = vmatprep.subr.bf16.mxu0 0
    %703 = vmatpush2.bf16.msra.mxu0 %v555
    %704 = vmatprep.subr.bf16.mxu0 0
    %705 = vmatpush2.bf16.msra.mxu0 %v554
    %706 = vmatprep.mubr.bf16.mxu0 %v259
    %707 = vmatmul.mubr.bf16.gmra.mxu0 %v258
    %v708 = vpop.f32.mrf.mxu0
    %v709 = vadd.f32 %v208, %v708
    %v710 = vpop.f32.mrf.mxu0
    %v711 = vpop.f32.mrf.mxu0
    %v712 = vadd.f32 %v208, %v711
    %v713 = vpop.f32.mrf.mxu0
    %714 = vmatprep.mubr.bf16.mxu0 %v267
    %715 = vmatmul.mubr.bf16.gmra.mxu0 %v266
    %v716 = vpop.f32.mrf.mxu0
    %v717 = vadd.f32 %v208, %v716
    %v718 = vpop.f32.mrf.mxu0
    %v719 = vpop.f32.mrf.mxu0
    %v720 = vadd.f32 %v208, %v719
    %v721 = vpop.f32.mrf.mxu0
    %722 = vdwg.mxu0
    %723 = vmatprep.subr.bf16.mxu0 0
    %724 = vmatpush1.bf16.msra.mxu0 %v569
    %725 = vmatprep.subr.bf16.mxu0 0
    %726 = vmatpush1.bf16.msra.mxu0 %v568
    %727 = vmatprep.subr.bf16.mxu0 0
    %728 = vmatpush1.bf16.msra.mxu0 %v567
    %729 = vmatprep.subr.bf16.mxu0 0
    %730 = vmatpush1.bf16.msra.mxu0 %v566
    %731 = vmatprep.subr.bf16.mxu0 0
    %732 = vmatpush1.bf16.msra.mxu0 %v565
    %733 = vmatprep.subr.bf16.mxu0 0
    %734 = vmatpush1.bf16.msra.mxu0 %v564
    %735 = vmatprep.subr.bf16.mxu0 0
    %736 = vmatpush1.bf16.msra.mxu0 %v563
    %737 = vmatprep.subr.bf16.mxu0 0
    %738 = vmatpush1.bf16.msra.mxu0 %v562
    %739 = vmatprep.subr.bf16.mxu0 0
    %740 = vmatpush2.bf16.msra.mxu0 %v577
    %741 = vmatprep.subr.bf16.mxu0 0
    %742 = vmatpush2.bf16.msra.mxu0 %v576
    %743 = vmatprep.subr.bf16.mxu0 0
    %744 = vmatpush2.bf16.msra.mxu0 %v575
    %745 = vmatprep.subr.bf16.mxu0 0
    %746 = vmatpush2.bf16.msra.mxu0 %v574
    %747 = vmatprep.subr.bf16.mxu0 0
    %748 = vmatpush2.bf16.msra.mxu0 %v573
    %749 = vmatprep.subr.bf16.mxu0 0
    %750 = vmatpush2.bf16.msra.mxu0 %v572
    %751 = vmatprep.subr.bf16.mxu0 0
    %752 = vmatpush2.bf16.msra.mxu0 %v571
    %753 = vmatprep.subr.bf16.mxu0 0
    %754 = vmatpush2.bf16.msra.mxu0 %v570
    %755 = vmatprep.mubr.bf16.mxu0 %v261
    %756 = vmatmul.mubr.bf16.gmra.mxu0 %v260
    %v757 = vpop.f32.mrf.mxu0
    %v758 = vadd.f32 %v709, %v757
    %v759 = vpop.f32.mrf.mxu0
    %v760 = vpop.f32.mrf.mxu0
    %v761 = vadd.f32 %v712, %v760
    %v762 = vpop.f32.mrf.mxu0
    %763 = vmatprep.mubr.bf16.mxu0 %v269
    %764 = vmatmul.mubr.bf16.gmra.mxu0 %v268
    %v765 = vpop.f32.mrf.mxu0
    %v766 = vadd.f32 %v717, %v765
    %v767 = vpop.f32.mrf.mxu0
    %v768 = vpop.f32.mrf.mxu0
    %v769 = vadd.f32 %v720, %v768
    %v770 = vpop.f32.mrf.mxu0
    %771 = vdwg.mxu0
    %772 = vmatprep.subr.bf16.mxu0 0
    %773 = vmatpush1.bf16.msra.mxu0 %v585
    %774 = vmatprep.subr.bf16.mxu0 0
    %775 = vmatpush1.bf16.msra.mxu0 %v584
    %776 = vmatprep.subr.bf16.mxu0 0
    %777 = vmatpush1.bf16.msra.mxu0 %v583
    %778 = vmatprep.subr.bf16.mxu0 0
    %779 = vmatpush1.bf16.msra.mxu0 %v582
    %780 = vmatprep.subr.bf16.mxu0 0
    %781 = vmatpush1.bf16.msra.mxu0 %v581
    %782 = vmatprep.subr.bf16.mxu0 0
    %783 = vmatpush1.bf16.msra.mxu0 %v580
    %784 = vmatprep.subr.bf16.mxu0 0
    %785 = vmatpush1.bf16.msra.mxu0 %v579
    %786 = vmatprep.subr.bf16.mxu0 0
    %787 = vmatpush1.bf16.msra.mxu0 %v578
    %788 = vmatprep.subr.bf16.mxu0 0
    %789 = vmatpush2.bf16.msra.mxu0 %v593
    %790 = vmatprep.subr.bf16.mxu0 0
    %791 = vmatpush2.bf16.msra.mxu0 %v592
    %792 = vmatprep.subr.bf16.mxu0 0
    %793 = vmatpush2.bf16.msra.mxu0 %v591
    %794 = vmatprep.subr.bf16.mxu0 0
    %795 = vmatpush2.bf16.msra.mxu0 %v590
    %796 = vmatprep.subr.bf16.mxu0 0
    %797 = vmatpush2.bf16.msra.mxu0 %v589
    %798 = vmatprep.subr.bf16.mxu0 0
    %799 = vmatpush2.bf16.msra.mxu0 %v588
    %800 = vmatprep.subr.bf16.mxu0 0
    %801 = vmatpush2.bf16.msra.mxu0 %v587
    %802 = vmatprep.subr.bf16.mxu0 0
    %803 = vmatpush2.bf16.msra.mxu0 %v586
    %804 = vmatprep.mubr.bf16.mxu0 %v263
    %805 = vmatmul.mubr.bf16.gmra.mxu0 %v262
    %v806 = vpop.f32.mrf.mxu0
    %v807 = vadd.f32 %v758, %v806
    %v808 = vpop.f32.mrf.mxu0
    %v809 = vpop.f32.mrf.mxu0
    %v810 = vadd.f32 %v761, %v809
    %v811 = vpop.f32.mrf.mxu0
    %812 = vmatprep.mubr.bf16.mxu0 %v271
    %813 = vmatmul.mubr.bf16.gmra.mxu0 %v270
    %v814 = vpop.f32.mrf.mxu0
    %v815 = vadd.f32 %v766, %v814
    %v816 = vpop.f32.mrf.mxu0
    %v817 = vpop.f32.mrf.mxu0
    %v818 = vadd.f32 %v769, %v817
    %v819 = vpop.f32.mrf.mxu0
    %820 = vdwg.mxu0
    %821 = vmatprep.subr.bf16.mxu0 0
    %822 = vmatpush1.bf16.msra.mxu0 %v601
    %823 = vmatprep.subr.bf16.mxu0 0
    %824 = vmatpush1.bf16.msra.mxu0 %v600
    %825 = vmatprep.subr.bf16.mxu0 0
    %826 = vmatpush1.bf16.msra.mxu0 %v599
    %827 = vmatprep.subr.bf16.mxu0 0
    %828 = vmatpush1.bf16.msra.mxu0 %v598
    %829 = vmatprep.subr.bf16.mxu0 0
    %830 = vmatpush1.bf16.msra.mxu0 %v597
    %831 = vmatprep.subr.bf16.mxu0 0
    %832 = vmatpush1.bf16.msra.mxu0 %v596
    %833 = vmatprep.subr.bf16.mxu0 0
    %834 = vmatpush1.bf16.msra.mxu0 %v595
    %835 = vmatprep.subr.bf16.mxu0 0
    %836 = vmatpush1.bf16.msra.mxu0 %v594
    %837 = vmatprep.subr.bf16.mxu0 0
    %838 = vmatpush2.bf16.msra.mxu0 %v609
    %839 = vmatprep.subr.bf16.mxu0 0
    %840 = vmatpush2.bf16.msra.mxu0 %v608
    %841 = vmatprep.subr.bf16.mxu0 0
    %842 = vmatpush2.bf16.msra.mxu0 %v607
    %843 = vmatprep.subr.bf16.mxu0 0
    %844 = vmatpush2.bf16.msra.mxu0 %v606
    %845 = vmatprep.subr.bf16.mxu0 0
    %846 = vmatpush2.bf16.msra.mxu0 %v605
    %847 = vmatprep.subr.bf16.mxu0 0
    %848 = vmatpush2.bf16.msra.mxu0 %v604
    %849 = vmatprep.subr.bf16.mxu0 0
    %850 = vmatpush2.bf16.msra.mxu0 %v603
    %851 = vmatprep.subr.bf16.mxu0 0
    %852 = vmatpush2.bf16.msra.mxu0 %v602
    %853 = vmatprep.mubr.bf16.mxu0 %v265
    %854 = vmatmul.mubr.bf16.gmra.mxu0 %v264
    %v855 = vpop.f32.mrf.mxu0
    %v856 = vadd.f32 %v807, %v855
    %v857 = vpop.f32.mrf.mxu0
    %v858 = vpop.f32.mrf.mxu0
    %v859 = vadd.f32 %v810, %v858
    %v860 = vpop.f32.mrf.mxu0
    %861 = vmatprep.mubr.bf16.mxu0 %v273
    %862 = vmatmul.mubr.bf16.gmra.mxu0 %v272
    %v863 = vpop.f32.mrf.mxu0
    %v864 = vadd.f32 %v815, %v863
    %v865 = vpop.f32.mrf.mxu0
    %v866 = vpop.f32.mrf.mxu0
    %v867 = vadd.f32 %v818, %v866
    %v868 = vpop.f32.mrf.mxu0
    %869 = vdwg.mxu0
    %v870 = vmax.f32 %v856, 0.0
    %v871 = vmax.f32 %v859, 0.0
    %v872 = vmax.f32 %v864, 0.0
    %v873 = vmax.f32 %v867, 0.0
    %v874 = vadd.f32 %v870, 0.0001
    %v875 = vadd.f32 %v871, 0.0001
    %v876 = vadd.f32 %v872, 0.0001
    %v877 = vadd.f32 %v873, 0.0001
    %v878 = vlog2.pop %v874
    %v879 = vmul.f32 %v878, 0.6931472
    %v880 = vlog2.pop %v875
    %v881 = vmul.f32 %v880, 0.6931472
    %v882 = vlog2.pop %v876
    %v883 = vmul.f32 %v882, 0.6931472
    %v884 = vlog2.pop %v877
    %v885 = vmul.f32 %v884, 0.6931472
    %v886 = vpack.c.bf16 %v881, %v879
    %v887 = vpack.c.bf16 %v885, %v883
    %v888 = vld [vmem:[%s3] sm:$0xff]
    %v889 = vld [vmem:[%s3 + $0x8] sm:$0xff]
    %v890 = vld [vmem:[%s3 + $0x10] sm:$0xff]
    %v891 = vld [vmem:[%s3 + $0x18] sm:$0xff]
    %v892 = vld [vmem:[%s3 + $0x20] sm:$0xff]
    %v893 = vld [vmem:[%s3 + $0x28] sm:$0xff]
    %v894 = vld [vmem:[%s3 + $0x30] sm:$0xff]
    %v895 = vld [vmem:[%s3 + $0x38] sm:$0xff]
    %v896 = vld [vmem:[%s3 + $0x40] sm:$0xff]
    %v897 = vld [vmem:[%s3 + $0x48] sm:$0xff]
    %v898 = vld [vmem:[%s3 + $0x50] sm:$0xff]
    %v899 = vld [vmem:[%s3 + $0x58] sm:$0xff]
    %v900 = vld [vmem:[%s3 + $0x60] sm:$0xff]
    %v901 = vld [vmem:[%s3 + $0x68] sm:$0xff]
    %v902 = vld [vmem:[%s3 + $0x70] sm:$0xff]
    %v903 = vld [vmem:[%s3 + $0x78] sm:$0xff]
    %v904 = vld [vmem:[%s3 + $0x80] sm:$0xff]
    %v905 = vld [vmem:[%s3 + $0x88] sm:$0xff]
    %v906 = vld [vmem:[%s3 + $0x90] sm:$0xff]
    %v907 = vld [vmem:[%s3 + $0x98] sm:$0xff]
    %v908 = vld [vmem:[%s3 + $0xa0] sm:$0xff]
    %v909 = vld [vmem:[%s3 + $0xa8] sm:$0xff]
    %v910 = vld [vmem:[%s3 + $0xb0] sm:$0xff]
    %v911 = vld [vmem:[%s3 + $0xb8] sm:$0xff]
    %v912 = vld [vmem:[%s3 + $0xc0] sm:$0xff]
    %v913 = vld [vmem:[%s3 + $0xc8] sm:$0xff]
    %v914 = vld [vmem:[%s3 + $0xd0] sm:$0xff]
    %v915 = vld [vmem:[%s3 + $0xd8] sm:$0xff]
    %v916 = vld [vmem:[%s3 + $0xe0] sm:$0xff]
    %v917 = vld [vmem:[%s3 + $0xe8] sm:$0xff]
    %v918 = vld [vmem:[%s3 + $0xf0] sm:$0xff]
    %v919 = vld [vmem:[%s3 + $0xf8] sm:$0xff]
    %v920 = vld [vmem:[%s4] sm:$0xf]
    %v922 = vlaneseq
    %v923 = vshrl.u32 %v922, 7
    %v924 = vsub.s32 0, %v923
    %v925 = vrot.slane %v920, %v924
    %v926 = vlaneseq
    %v927 = vshrl.u32 %v926, 7
    %v928 = vsub.s32 1, %v927
    %v929 = vrot.slane %v920, %v928
    %v930 = vlaneseq
    %v931 = vshrl.u32 %v930, 7
    %v932 = vsub.s32 2, %v931
    %v933 = vrot.slane %v920, %v932
    %v934 = vlaneseq
    %v935 = vshrl.u32 %v934, 7
    %v936 = vsub.s32 3, %v935
    %v937 = vrot.slane %v920, %v936
    %v974 = vunpack.c.l.b16 %v888
    %v975 = vunpack.c.h.b16 %v888
    %v976 = vunpack.c.l.b16 %v889
    %v977 = vunpack.c.h.b16 %v889
    %v978 = vunpack.c.l.b16 %v890
    %v979 = vunpack.c.h.b16 %v890
    %v980 = vunpack.c.l.b16 %v891
    %v981 = vunpack.c.h.b16 %v891
    %v982 = vunpack.c.l.b16 %v892
    %v983 = vunpack.c.h.b16 %v892
    %v984 = vunpack.c.l.b16 %v893
    %v985 = vunpack.c.h.b16 %v893
    %v986 = vunpack.c.l.b16 %v894
    %v987 = vunpack.c.h.b16 %v894
    %v988 = vunpack.c.l.b16 %v895
    %v989 = vunpack.c.h.b16 %v895
    %v990 = vunpack.c.l.b16 %v896
    %v991 = vunpack.c.h.b16 %v896
    %v992 = vunpack.c.l.b16 %v897
    %v993 = vunpack.c.h.b16 %v897
    %v994 = vunpack.c.l.b16 %v898
    %v995 = vunpack.c.h.b16 %v898
    %v996 = vunpack.c.l.b16 %v899
    %v997 = vunpack.c.h.b16 %v899
    %v998 = vunpack.c.l.b16 %v900
    %v999 = vunpack.c.h.b16 %v900
    %v1000 = vunpack.c.l.b16 %v901
    %v1001 = vunpack.c.h.b16 %v901
    %v1002 = vunpack.c.l.b16 %v902
    %v1003 = vunpack.c.h.b16 %v902
    %v1004 = vunpack.c.l.b16 %v903
    %v1005 = vunpack.c.h.b16 %v903
    %v1006 = vunpack.c.l.b16 %v904
    %v1007 = vunpack.c.h.b16 %v904
    %v1008 = vunpack.c.l.b16 %v905
    %v1009 = vunpack.c.h.b16 %v905
    %v1010 = vunpack.c.l.b16 %v906
    %v1011 = vunpack.c.h.b16 %v906
    %v1012 = vunpack.c.l.b16 %v907
    %v1013 = vunpack.c.h.b16 %v907
    %v1014 = vunpack.c.l.b16 %v908
    %v1015 = vunpack.c.h.b16 %v908
    %v1016 = vunpack.c.l.b16 %v909
    %v1017 = vunpack.c.h.b16 %v909
    %v1018 = vunpack.c.l.b16 %v910
    %v1019 = vunpack.c.h.b16 %v910
    %v1020 = vunpack.c.l.b16 %v911
    %v1021 = vunpack.c.h.b16 %v911
    %v1022 = vunpack.c.l.b16 %v912
    %v1023 = vunpack.c.h.b16 %v912
    %v1024 = vunpack.c.l.b16 %v913
    %v1025 = vunpack.c.h.b16 %v913
    %v1026 = vunpack.c.l.b16 %v914
    %v1027 = vunpack.c.h.b16 %v914
    %v1028 = vunpack.c.l.b16 %v915
    %v1029 = vunpack.c.h.b16 %v915
    %v1030 = vunpack.c.l.b16 %v916
    %v1031 = vunpack.c.h.b16 %v916
    %v1032 = vunpack.c.l.b16 %v917
    %v1033 = vunpack.c.h.b16 %v917
    %v1034 = vunpack.c.l.b16 %v918
    %v1035 = vunpack.c.h.b16 %v918
    %v1036 = vunpack.c.l.b16 %v919
    %v1037 = vunpack.c.h.b16 %v919
    %v1038 = vpack.c.b16 %v978, %v974
    %v1039 = vpack.c.b16 %v979, %v975
    %v1040 = vpack.c.b16 %v980, %v976
    %v1041 = vpack.c.b16 %v981, %v977
    %v1042 = vpack.c.b16 %v986, %v982
    %v1043 = vpack.c.b16 %v987, %v983
    %v1044 = vpack.c.b16 %v988, %v984
    %v1045 = vpack.c.b16 %v989, %v985
    %v1046 = vpack.c.b16 %v994, %v990
    %v1047 = vpack.c.b16 %v995, %v991
    %v1048 = vpack.c.b16 %v996, %v992
    %v1049 = vpack.c.b16 %v997, %v993
    %v1050 = vpack.c.b16 %v1002, %v998
    %v1051 = vpack.c.b16 %v1003, %v999
    %v1052 = vpack.c.b16 %v1004, %v1000
    %v1053 = vpack.c.b16 %v1005, %v1001
    %v1054 = vpack.c.b16 %v1010, %v1006
    %v1055 = vpack.c.b16 %v1011, %v1007
    %v1056 = vpack.c.b16 %v1012, %v1008
    %v1057 = vpack.c.b16 %v1013, %v1009
    %v1058 = vpack.c.b16 %v1018, %v1014
    %v1059 = vpack.c.b16 %v1019, %v1015
    %v1060 = vpack.c.b16 %v1020, %v1016
    %v1061 = vpack.c.b16 %v1021, %v1017
    %v1062 = vpack.c.b16 %v1026, %v1022
    %v1063 = vpack.c.b16 %v1027, %v1023
    %v1064 = vpack.c.b16 %v1028, %v1024
    %v1065 = vpack.c.b16 %v1029, %v1025
    %v1066 = vpack.c.b16 %v1034, %v1030
    %v1067 = vpack.c.b16 %v1035, %v1031
    %v1068 = vpack.c.b16 %v1036, %v1032
    %v1069 = vpack.c.b16 %v1037, %v1033
    %1102 = vmatprep.subr.bf16.mxu0 %v1067
    %1103 = vmatpush1.bf16.msra.mxu0 %v1066
    %1104 = vmatprep.subr.bf16.mxu0 %v1063
    %1105 = vmatpush1.bf16.msra.mxu0 %v1062
    %1106 = vmatprep.subr.bf16.mxu0 %v1059
    %1107 = vmatpush1.bf16.msra.mxu0 %v1058
    %1108 = vmatprep.subr.bf16.mxu0 %v1055
    %1109 = vmatpush1.bf16.msra.mxu0 %v1054
    %1110 = vmatprep.subr.bf16.mxu0 %v1051
    %1111 = vmatpush1.bf16.msra.mxu0 %v1050
    %1112 = vmatprep.subr.bf16.mxu0 %v1047
    %1113 = vmatpush1.bf16.msra.mxu0 %v1046
    %1114 = vmatprep.subr.bf16.mxu0 %v1043
    %1115 = vmatpush1.bf16.msra.mxu0 %v1042
    %1116 = vmatprep.subr.bf16.mxu0 %v1039
    %1117 = vmatpush1.bf16.msra.mxu0 %v1038
    %1118 = vmatprep.subr.bf16.mxu0 0
    %1119 = vmatpush2.bf16.msra.mxu0 0
    %1120 = vmatprep.subr.bf16.mxu0 0
    %1121 = vmatpush2.bf16.msra.mxu0 0
    %1122 = vmatprep.subr.bf16.mxu0 0
    %1123 = vmatpush2.bf16.msra.mxu0 0
    %1124 = vmatprep.subr.bf16.mxu0 0
    %1125 = vmatpush2.bf16.msra.mxu0 0
    %1126 = vmatprep.subr.bf16.mxu0 0
    %1127 = vmatpush2.bf16.msra.mxu0 0
    %1128 = vmatprep.subr.bf16.mxu0 0
    %1129 = vmatpush2.bf16.msra.mxu0 0
    %1130 = vmatprep.subr.bf16.mxu0 0
    %1131 = vmatpush2.bf16.msra.mxu0 0
    %1132 = vmatprep.subr.bf16.mxu0 0
    %1133 = vmatpush2.bf16.msra.mxu0 0
    %1134 = vmatprep.mubr.bf16.mxu0 0
    %1135 = vmatmul.mubr.bf16.gmra.mxu0 %v886
    %v1136 = vpop.f32.mrf.mxu0
    %v1137 = vadd.f32 %v925, %v1136
    %v1138 = vpop.f32.mrf.mxu0
    %v1139 = vadd.f32 %v929, %v1138
    %v1140 = vpop.f32.mrf.mxu0
    %v1141 = vadd.f32 %v925, %v1140
    %v1142 = vpop.f32.mrf.mxu0
    %v1143 = vadd.f32 %v929, %v1142
    %1144 = vmatprep.mubr.bf16.mxu0 0
    %1145 = vmatmul.mubr.bf16.gmra.mxu0 %v887
    %v1146 = vpop.f32.mrf.mxu0
    %v1147 = vadd.f32 %v925, %v1146
    %v1148 = vpop.f32.mrf.mxu0
    %v1149 = vadd.f32 %v929, %v1148
    %v1150 = vpop.f32.mrf.mxu0
    %v1151 = vadd.f32 %v925, %v1150
    %v1152 = vpop.f32.mrf.mxu0
    %v1153 = vadd.f32 %v929, %v1152
    %1154 = vdwg.mxu0
    %1155 = vmatprep.subr.bf16.mxu0 %v1069
    %1156 = vmatpush1.bf16.msra.mxu0 %v1068
    %1157 = vmatprep.subr.bf16.mxu0 %v1065
    %1158 = vmatpush1.bf16.msra.mxu0 %v1064
    %1159 = vmatprep.subr.bf16.mxu0 %v1061
    %1160 = vmatpush1.bf16.msra.mxu0 %v1060
    %1161 = vmatprep.subr.bf16.mxu0 %v1057
    %1162 = vmatpush1.bf16.msra.mxu0 %v1056
    %1163 = vmatprep.subr.bf16.mxu0 %v1053
    %1164 = vmatpush1.bf16.msra.mxu0 %v1052
    %1165 = vmatprep.subr.bf16.mxu0 %v1049
    %1166 = vmatpush1.bf16.msra.mxu0 %v1048
    %1167 = vmatprep.subr.bf16.mxu0 %v1045
    %1168 = vmatpush1.bf16.msra.mxu0 %v1044
    %1169 = vmatprep.subr.bf16.mxu0 %v1041
    %1170 = vmatpush1.bf16.msra.mxu0 %v1040
    %1171 = vmatprep.subr.bf16.mxu0 0
    %1172 = vmatpush2.bf16.msra.mxu0 0
    %1173 = vmatprep.subr.bf16.mxu0 0
    %1174 = vmatpush2.bf16.msra.mxu0 0
    %1175 = vmatprep.subr.bf16.mxu0 0
    %1176 = vmatpush2.bf16.msra.mxu0 0
    %1177 = vmatprep.subr.bf16.mxu0 0
    %1178 = vmatpush2.bf16.msra.mxu0 0
    %1179 = vmatprep.subr.bf16.mxu0 0
    %1180 = vmatpush2.bf16.msra.mxu0 0
    %1181 = vmatprep.subr.bf16.mxu0 0
    %1182 = vmatpush2.bf16.msra.mxu0 0
    %1183 = vmatprep.subr.bf16.mxu0 0
    %1184 = vmatpush2.bf16.msra.mxu0 0
    %1185 = vmatprep.subr.bf16.mxu0 0
    %1186 = vmatpush2.bf16.msra.mxu0 0
    %1187 = vmatprep.mubr.bf16.mxu0 0
    %1188 = vmatmul.mubr.bf16.gmra.mxu0 %v886
    %v1189 = vpop.f32.mrf.mxu0
    %v1190 = vadd.f32 %v933, %v1189
    %v1191 = vpop.f32.mrf.mxu0
    %v1192 = vadd.f32 %v937, %v1191
    %v1193 = vpop.f32.mrf.mxu0
    %v1194 = vadd.f32 %v933, %v1193
    %v1195 = vpop.f32.mrf.mxu0
    %v1196 = vadd.f32 %v937, %v1195
    %1197 = vmatprep.mubr.bf16.mxu0 0
    %1198 = vmatmul.mubr.bf16.gmra.mxu0 %v887
    %v1199 = vpop.f32.mrf.mxu0
    %v1200 = vadd.f32 %v933, %v1199
    %v1201 = vpop.f32.mrf.mxu0
    %v1202 = vadd.f32 %v937, %v1201
    %v1203 = vpop.f32.mrf.mxu0
    %v1204 = vadd.f32 %v933, %v1203
    %v1205 = vpop.f32.mrf.mxu0
    %v1206 = vadd.f32 %v937, %v1205
    %1207 = vdwg.mxu0
    %v1208 = vmax.f32 %v1137, 0.0
    %v1209 = vmax.f32 %v1139, 0.0
    %v1210 = vmax.f32 %v1190, 0.0
    %v1211 = vmax.f32 %v1192, 0.0
    %v1212 = vmax.f32 %v1141, 0.0
    %v1213 = vmax.f32 %v1143, 0.0
    %v1214 = vmax.f32 %v1194, 0.0
    %v1215 = vmax.f32 %v1196, 0.0
    %v1216 = vmax.f32 %v1147, 0.0
    %v1217 = vmax.f32 %v1149, 0.0
    %v1218 = vmax.f32 %v1200, 0.0
    %v1219 = vmax.f32 %v1202, 0.0
    %v1220 = vmax.f32 %v1151, 0.0
    %v1221 = vmax.f32 %v1153, 0.0
    %v1222 = vmax.f32 %v1204, 0.0
    %v1223 = vmax.f32 %v1206, 0.0
    %v1224 = vlaneseq
    %v1225 = vshrl.u32 %v1224, 7
    %v1226 = vadd.s32 %v1225, 8
    %vm1227 = vcmp.lt.s32.totalorder %v1225, 10
    %vm1228 = vcmp.lt.s32.totalorder %v1226, 10
    %v1229 = vsel %vm1227, %v1208, 0.0
    %v1230 = vsel %vm1227, %v1209, 0.0
    %v1231 = vsel %vm1227, %v1210, 0.0
    %v1232 = vsel %vm1227, %v1211, 0.0
    %v1233 = vsel %vm1228, %v1212, 0.0
    %v1234 = vsel %vm1228, %v1213, 0.0
    %v1235 = vsel %vm1228, %v1214, 0.0
    %v1236 = vsel %vm1228, %v1215, 0.0
    %v1237 = vsel %vm1227, %v1216, 0.0
    %v1238 = vsel %vm1227, %v1217, 0.0
    %v1239 = vsel %vm1227, %v1218, 0.0
    %v1240 = vsel %vm1227, %v1219, 0.0
    %v1241 = vsel %vm1228, %v1220, 0.0
    %v1242 = vsel %vm1228, %v1221, 0.0
    %v1243 = vsel %vm1228, %v1222, 0.0
    %v1244 = vsel %vm1228, %v1223, 0.0
    %v1245 = vadd.f32 %v1229, %v1233
    %v1246 = vrot.slane %v1245, 4
    %v1247 = vadd.f32 %v1245, %v1246
    %v1248 = vrot.slane %v1247, 2
    %v1249 = vadd.f32 %v1247, %v1248
    %v1250 = vrot.slane %v1249, 1
    %v1251 = vadd.f32 %v1249, %v1250
    %v1252 = vadd.f32 %v1230, %v1234
    %v1253 = vrot.slane %v1252, 4
    %v1254 = vadd.f32 %v1252, %v1253
    %v1255 = vrot.slane %v1254, 2
    %v1256 = vadd.f32 %v1254, %v1255
    %v1257 = vrot.slane %v1256, 1
    %v1258 = vadd.f32 %v1256, %v1257
    %v1259 = vadd.f32 %v1231, %v1235
    %v1260 = vrot.slane %v1259, 4
    %v1261 = vadd.f32 %v1259, %v1260
    %v1262 = vrot.slane %v1261, 2
    %v1263 = vadd.f32 %v1261, %v1262
    %v1264 = vrot.slane %v1263, 1
    %v1265 = vadd.f32 %v1263, %v1264
    %v1266 = vadd.f32 %v1232, %v1236
    %v1267 = vrot.slane %v1266, 4
    %v1268 = vadd.f32 %v1266, %v1267
    %v1269 = vrot.slane %v1268, 2
    %v1270 = vadd.f32 %v1268, %v1269
    %v1271 = vrot.slane %v1270, 1
    %v1272 = vadd.f32 %v1270, %v1271
    %v1273 = vadd.f32 %v1237, %v1241
    %v1274 = vrot.slane %v1273, 4
    %v1275 = vadd.f32 %v1273, %v1274
    %v1276 = vrot.slane %v1275, 2
    %v1277 = vadd.f32 %v1275, %v1276
    %v1278 = vrot.slane %v1277, 1
    %v1279 = vadd.f32 %v1277, %v1278
    %v1280 = vadd.f32 %v1238, %v1242
    %v1281 = vrot.slane %v1280, 4
    %v1282 = vadd.f32 %v1280, %v1281
    %v1283 = vrot.slane %v1282, 2
    %v1284 = vadd.f32 %v1282, %v1283
    %v1285 = vrot.slane %v1284, 1
    %v1286 = vadd.f32 %v1284, %v1285
    %v1287 = vadd.f32 %v1239, %v1243
    %v1288 = vrot.slane %v1287, 4
    %v1289 = vadd.f32 %v1287, %v1288
    %v1290 = vrot.slane %v1289, 2
    %v1291 = vadd.f32 %v1289, %v1290
    %v1292 = vrot.slane %v1291, 1
    %v1293 = vadd.f32 %v1291, %v1292
    %v1294 = vadd.f32 %v1240, %v1244
    %v1295 = vrot.slane %v1294, 4
    %v1296 = vadd.f32 %v1294, %v1295
    %v1297 = vrot.slane %v1296, 2
    %v1298 = vadd.f32 %v1296, %v1297
    %v1299 = vrot.slane %v1298, 1
    %v1300 = vadd.f32 %v1298, %v1299
    %v1301 = vmul.f32 %v1251, 0.1
    %v1302 = vmul.f32 %v1258, 0.1
    %v1303 = vmul.f32 %v1265, 0.1
    %v1304 = vmul.f32 %v1272, 0.1
    %v1305 = vmul.f32 %v1279, 0.1
    %v1306 = vmul.f32 %v1286, 0.1
    %v1307 = vmul.f32 %v1293, 0.1
    %v1308 = vmul.f32 %v1300, 0.1
    %v1309 = vsel %vm1227, %v1208, -1e+30
    %v1310 = vsel %vm1227, %v1209, -1e+30
    %v1311 = vsel %vm1227, %v1210, -1e+30
    %v1312 = vsel %vm1227, %v1211, -1e+30
    %v1313 = vsel %vm1228, %v1212, -1e+30
    %v1314 = vsel %vm1228, %v1213, -1e+30
    %v1315 = vsel %vm1228, %v1214, -1e+30
    %v1316 = vsel %vm1228, %v1215, -1e+30
    %v1317 = vsel %vm1227, %v1216, -1e+30
    %v1318 = vsel %vm1227, %v1217, -1e+30
    %v1319 = vsel %vm1227, %v1218, -1e+30
    %v1320 = vsel %vm1227, %v1219, -1e+30
    %v1321 = vsel %vm1228, %v1220, -1e+30
    %v1322 = vsel %vm1228, %v1221, -1e+30
    %v1323 = vsel %vm1228, %v1222, -1e+30
    %v1324 = vsel %vm1228, %v1223, -1e+30
    %v1325 = vmax.f32 %v1309, %v1313
    %v1326 = vrot.slane %v1325, 4
    %v1327 = vmax.f32 %v1325, %v1326
    %v1328 = vrot.slane %v1327, 2
    %v1329 = vmax.f32 %v1327, %v1328
    %v1330 = vrot.slane %v1329, 1
    %v1331 = vmax.f32 %v1329, %v1330
    %v1332 = vmax.f32 %v1310, %v1314
    %v1333 = vrot.slane %v1332, 4
    %v1334 = vmax.f32 %v1332, %v1333
    %v1335 = vrot.slane %v1334, 2
    %v1336 = vmax.f32 %v1334, %v1335
    %v1337 = vrot.slane %v1336, 1
    %v1338 = vmax.f32 %v1336, %v1337
    %v1339 = vmax.f32 %v1311, %v1315
    %v1340 = vrot.slane %v1339, 4
    %v1341 = vmax.f32 %v1339, %v1340
    %v1342 = vrot.slane %v1341, 2
    %v1343 = vmax.f32 %v1341, %v1342
    %v1344 = vrot.slane %v1343, 1
    %v1345 = vmax.f32 %v1343, %v1344
    %v1346 = vmax.f32 %v1312, %v1316
    %v1347 = vrot.slane %v1346, 4
    %v1348 = vmax.f32 %v1346, %v1347
    %v1349 = vrot.slane %v1348, 2
    %v1350 = vmax.f32 %v1348, %v1349
    %v1351 = vrot.slane %v1350, 1
    %v1352 = vmax.f32 %v1350, %v1351
    %v1353 = vmax.f32 %v1317, %v1321
    %v1354 = vrot.slane %v1353, 4
    %v1355 = vmax.f32 %v1353, %v1354
    %v1356 = vrot.slane %v1355, 2
    %v1357 = vmax.f32 %v1355, %v1356
    %v1358 = vrot.slane %v1357, 1
    %v1359 = vmax.f32 %v1357, %v1358
    %v1360 = vmax.f32 %v1318, %v1322
    %v1361 = vrot.slane %v1360, 4
    %v1362 = vmax.f32 %v1360, %v1361
    %v1363 = vrot.slane %v1362, 2
    %v1364 = vmax.f32 %v1362, %v1363
    %v1365 = vrot.slane %v1364, 1
    %v1366 = vmax.f32 %v1364, %v1365
    %v1367 = vmax.f32 %v1319, %v1323
    %v1368 = vrot.slane %v1367, 4
    %v1369 = vmax.f32 %v1367, %v1368
    %v1370 = vrot.slane %v1369, 2
    %v1371 = vmax.f32 %v1369, %v1370
    %v1372 = vrot.slane %v1371, 1
    %v1373 = vmax.f32 %v1371, %v1372
    %v1374 = vmax.f32 %v1320, %v1324
    %v1375 = vrot.slane %v1374, 4
    %v1376 = vmax.f32 %v1374, %v1375
    %v1377 = vrot.slane %v1376, 2
    %v1378 = vmax.f32 %v1376, %v1377
    %v1379 = vrot.slane %v1378, 1
    %v1380 = vmax.f32 %v1378, %v1379
    %v1381 = vadd.f32 %v1301, %v1331
    %v1382 = vadd.f32 %v1302, %v1338
    %v1383 = vadd.f32 %v1303, %v1345
    %v1384 = vadd.f32 %v1304, %v1352
    %v1385 = vadd.f32 %v1305, %v1359
    %v1386 = vadd.f32 %v1306, %v1366
    %v1387 = vadd.f32 %v1307, %v1373
    %v1388 = vadd.f32 %v1308, %v1380
    %v1389 = vpack.c.bf16 %v1381, %v1381
    %v1390 = vpack.c.bf16 %v1382, %v1382
    %v1391 = vpack.c.bf16 %v1383, %v1383
    %v1392 = vpack.c.bf16 %v1384, %v1384
    %v1393 = vpack.c.bf16 %v1385, %v1385
    %v1394 = vpack.c.bf16 %v1386, %v1386
    %v1395 = vpack.c.bf16 %v1387, %v1387
    %v1396 = vpack.c.bf16 %v1388, %v1388
    %v1397 = vld [vmem:[%s5] sm:$0xff]
    %v1398 = vld [vmem:[%s5 + $0x8] sm:$0xff]
    %v1399 = vld [vmem:[%s5 + $0x10] sm:$0xff]
    %v1400 = vld [vmem:[%s5 + $0x18] sm:$0xff]
    %v1401 = vld [vmem:[%s5 + $0x20] sm:$0xff]
    %v1402 = vld [vmem:[%s5 + $0x28] sm:$0xff]
    %v1403 = vld [vmem:[%s5 + $0x30] sm:$0xff]
    %v1404 = vld [vmem:[%s5 + $0x38] sm:$0xff]
    %v1405 = vld [vmem:[%s5 + $0x40] sm:$0xff]
    %v1406 = vld [vmem:[%s5 + $0x48] sm:$0xff]
    %v1407 = vld [vmem:[%s5 + $0x50] sm:$0xff]
    %v1408 = vld [vmem:[%s5 + $0x58] sm:$0xff]
    %v1409 = vld [vmem:[%s5 + $0x60] sm:$0xff]
    %v1410 = vld [vmem:[%s5 + $0x68] sm:$0xff]
    %v1411 = vld [vmem:[%s5 + $0x70] sm:$0xff]
    %v1412 = vld [vmem:[%s5 + $0x78] sm:$0xff]
    %v1413 = vld [vmem:[%s5 + $0x80] sm:$0xff]
    %v1414 = vld [vmem:[%s5 + $0x88] sm:$0xff]
    %v1415 = vld [vmem:[%s5 + $0x90] sm:$0xff]
    %v1416 = vld [vmem:[%s5 + $0x98] sm:$0xff]
    %v1417 = vld [vmem:[%s5 + $0xa0] sm:$0xff]
    %v1418 = vld [vmem:[%s5 + $0xa8] sm:$0xff]
    %v1419 = vld [vmem:[%s5 + $0xb0] sm:$0xff]
    %v1420 = vld [vmem:[%s5 + $0xb8] sm:$0xff]
    %v1421 = vld [vmem:[%s5 + $0xc0] sm:$0xff]
    %v1422 = vld [vmem:[%s5 + $0xc8] sm:$0xff]
    %v1423 = vld [vmem:[%s5 + $0xd0] sm:$0xff]
    %v1424 = vld [vmem:[%s5 + $0xd8] sm:$0xff]
    %v1425 = vld [vmem:[%s5 + $0xe0] sm:$0xff]
    %v1426 = vld [vmem:[%s5 + $0xe8] sm:$0xff]
    %v1427 = vld [vmem:[%s5 + $0xf0] sm:$0xff]
    %v1428 = vld [vmem:[%s5 + $0xf8] sm:$0xff]
    %v1429 = vld [vmem:[%s5 + $0x100] sm:$0xff]
    %v1430 = vld [vmem:[%s5 + $0x108] sm:$0xff]
    %v1431 = vld [vmem:[%s5 + $0x110] sm:$0xff]
    %v1432 = vld [vmem:[%s5 + $0x118] sm:$0xff]
    %v1433 = vld [vmem:[%s5 + $0x120] sm:$0xff]
    %v1434 = vld [vmem:[%s5 + $0x128] sm:$0xff]
    %v1435 = vld [vmem:[%s5 + $0x130] sm:$0xff]
    %v1436 = vld [vmem:[%s5 + $0x138] sm:$0xff]
    %v1437 = vld [vmem:[%s5 + $0x140] sm:$0xff]
    %v1438 = vld [vmem:[%s5 + $0x148] sm:$0xff]
    %v1439 = vld [vmem:[%s5 + $0x150] sm:$0xff]
    %v1440 = vld [vmem:[%s5 + $0x158] sm:$0xff]
    %v1441 = vld [vmem:[%s5 + $0x160] sm:$0xff]
    %v1442 = vld [vmem:[%s5 + $0x168] sm:$0xff]
    %v1443 = vld [vmem:[%s5 + $0x170] sm:$0xff]
    %v1444 = vld [vmem:[%s5 + $0x178] sm:$0xff]
    %v1445 = vld [vmem:[%s5 + $0x180] sm:$0xff]
    %v1446 = vld [vmem:[%s5 + $0x188] sm:$0xff]
    %v1447 = vld [vmem:[%s5 + $0x190] sm:$0xff]
    %v1448 = vld [vmem:[%s5 + $0x198] sm:$0xff]
    %v1449 = vld [vmem:[%s5 + $0x1a0] sm:$0xff]
    %v1450 = vld [vmem:[%s5 + $0x1a8] sm:$0xff]
    %v1451 = vld [vmem:[%s5 + $0x1b0] sm:$0xff]
    %v1452 = vld [vmem:[%s5 + $0x1b8] sm:$0xff]
    %v1453 = vld [vmem:[%s5 + $0x1c0] sm:$0xff]
    %v1454 = vld [vmem:[%s5 + $0x1c8] sm:$0xff]
    %v1455 = vld [vmem:[%s5 + $0x1d0] sm:$0xff]
    %v1456 = vld [vmem:[%s5 + $0x1d8] sm:$0xff]
    %v1457 = vld [vmem:[%s5 + $0x1e0] sm:$0xff]
    %v1458 = vld [vmem:[%s5 + $0x1e8] sm:$0xff]
    %v1459 = vld [vmem:[%s5 + $0x1f0] sm:$0xff]
    %v1460 = vld [vmem:[%s5 + $0x1f8] sm:$0xff]
    %v1461 = vld [vmem:[%s5 + $0x200] sm:$0xff]
    %v1462 = vld [vmem:[%s5 + $0x208] sm:$0xff]
    %v1463 = vld [vmem:[%s5 + $0x210] sm:$0xff]
    %v1464 = vld [vmem:[%s5 + $0x218] sm:$0xff]
    %v1465 = vld [vmem:[%s5 + $0x220] sm:$0xff]
    %v1466 = vld [vmem:[%s5 + $0x228] sm:$0xff]
    %v1467 = vld [vmem:[%s5 + $0x230] sm:$0xff]
    %v1468 = vld [vmem:[%s5 + $0x238] sm:$0xff]
    %v1469 = vld [vmem:[%s5 + $0x240] sm:$0xff]
    %v1470 = vld [vmem:[%s5 + $0x248] sm:$0xff]
    %v1471 = vld [vmem:[%s5 + $0x250] sm:$0xff]
    %v1472 = vld [vmem:[%s5 + $0x258] sm:$0xff]
    %v1473 = vld [vmem:[%s5 + $0x260] sm:$0xff]
    %v1474 = vld [vmem:[%s5 + $0x268] sm:$0xff]
    %v1475 = vld [vmem:[%s5 + $0x270] sm:$0xff]
    %v1476 = vld [vmem:[%s5 + $0x278] sm:$0xff]
    %v1477 = vld [vmem:[%s5 + $0x280] sm:$0xff]
    %v1478 = vld [vmem:[%s5 + $0x288] sm:$0xff]
    %v1479 = vld [vmem:[%s5 + $0x290] sm:$0xff]
    %v1480 = vld [vmem:[%s5 + $0x298] sm:$0xff]
    %v1481 = vld [vmem:[%s5 + $0x2a0] sm:$0xff]
    %v1482 = vld [vmem:[%s5 + $0x2a8] sm:$0xff]
    %v1483 = vld [vmem:[%s5 + $0x2b0] sm:$0xff]
    %v1484 = vld [vmem:[%s5 + $0x2b8] sm:$0xff]
    %v1485 = vld [vmem:[%s5 + $0x2c0] sm:$0xff]
    %v1486 = vld [vmem:[%s5 + $0x2c8] sm:$0xff]
    %v1487 = vld [vmem:[%s5 + $0x2d0] sm:$0xff]
    %v1488 = vld [vmem:[%s5 + $0x2d8] sm:$0xff]
    %v1489 = vld [vmem:[%s5 + $0x2e0] sm:$0xff]
    %v1490 = vld [vmem:[%s5 + $0x2e8] sm:$0xff]
    %v1491 = vld [vmem:[%s5 + $0x2f0] sm:$0xff]
    %v1492 = vld [vmem:[%s5 + $0x2f8] sm:$0xff]
    %v1493 = vld [vmem:[%s5 + $0x300] sm:$0xff]
    %v1494 = vld [vmem:[%s5 + $0x308] sm:$0xff]
    %v1495 = vld [vmem:[%s5 + $0x310] sm:$0xff]
    %v1496 = vld [vmem:[%s5 + $0x318] sm:$0xff]
    %v1497 = vld [vmem:[%s5 + $0x320] sm:$0xff]
    %v1498 = vld [vmem:[%s5 + $0x328] sm:$0xff]
    %v1499 = vld [vmem:[%s5 + $0x330] sm:$0xff]
    %v1500 = vld [vmem:[%s5 + $0x338] sm:$0xff]
    %v1501 = vld [vmem:[%s5 + $0x340] sm:$0xff]
    %v1502 = vld [vmem:[%s5 + $0x348] sm:$0xff]
    %v1503 = vld [vmem:[%s5 + $0x350] sm:$0xff]
    %v1504 = vld [vmem:[%s5 + $0x358] sm:$0xff]
    %v1505 = vld [vmem:[%s5 + $0x360] sm:$0xff]
    %v1506 = vld [vmem:[%s5 + $0x368] sm:$0xff]
    %v1507 = vld [vmem:[%s5 + $0x370] sm:$0xff]
    %v1508 = vld [vmem:[%s5 + $0x378] sm:$0xff]
    %v1509 = vld [vmem:[%s5 + $0x380] sm:$0xff]
    %v1510 = vld [vmem:[%s5 + $0x388] sm:$0xff]
    %v1511 = vld [vmem:[%s5 + $0x390] sm:$0xff]
    %v1512 = vld [vmem:[%s5 + $0x398] sm:$0xff]
    %v1513 = vld [vmem:[%s5 + $0x3a0] sm:$0xff]
    %v1514 = vld [vmem:[%s5 + $0x3a8] sm:$0xff]
    %v1515 = vld [vmem:[%s5 + $0x3b0] sm:$0xff]
    %v1516 = vld [vmem:[%s5 + $0x3b8] sm:$0xff]
    %v1517 = vld [vmem:[%s5 + $0x3c0] sm:$0xff]
    %v1518 = vld [vmem:[%s5 + $0x3c8] sm:$0xff]
    %v1519 = vld [vmem:[%s5 + $0x3d0] sm:$0xff]
    %v1520 = vld [vmem:[%s5 + $0x3d8] sm:$0xff]
    %v1521 = vld [vmem:[%s5 + $0x3e0] sm:$0xff]
    %v1522 = vld [vmem:[%s5 + $0x3e8] sm:$0xff]
    %v1523 = vld [vmem:[%s5 + $0x3f0] sm:$0xff]
    %v1524 = vld [vmem:[%s5 + $0x3f8] sm:$0xff]
    %v1525 = vld [vmem:[%s6] sm:$0xf]
    %v1527 = vlaneseq
    %v1528 = vshrl.u32 %v1527, 7
    %v1529 = vsub.s32 0, %v1528
    %v1530 = vrot.slane %v1525, %v1529
    %v1531 = vlaneseq
    %v1532 = vshrl.u32 %v1531, 7
    %v1533 = vsub.s32 1, %v1532
    %v1534 = vrot.slane %v1525, %v1533
    %v1535 = vlaneseq
    %v1536 = vshrl.u32 %v1535, 7
    %v1537 = vsub.s32 2, %v1536
    %v1538 = vrot.slane %v1525, %v1537
    %v1539 = vlaneseq
    %v1540 = vshrl.u32 %v1539, 7
    %v1541 = vsub.s32 3, %v1540
    %v1542 = vrot.slane %v1525, %v1541
    %v1555 = vunpack.c.l.b16 %v1389
    %v1556 = vunpack.c.l.b16 %v1390
    %v1557 = vunpack.c.l.b16 %v1391
    %v1558 = vunpack.c.l.b16 %v1392
    %v1559 = vunpack.c.l.b16 %v1393
    %v1560 = vunpack.c.l.b16 %v1394
    %v1561 = vunpack.c.l.b16 %v1395
    %v1562 = vunpack.c.l.b16 %v1396
    %vm1563 = vcmask 1041409
    %v1564 = vsel %vm1563, %v1559, %v1555
    %v1565 = vsel %vm1563, %v1560, %v1556
    %v1566 = vsel %vm1563, %v1561, %v1557
    %v1567 = vsel %vm1563, %v1562, %v1558
    %v1568 = vpack.c.b16 %v1564, %v1564
    %v1569 = vpack.c.b16 %v1565, %v1565
    %v1570 = vpack.c.b16 %v1566, %v1566
    %v1571 = vpack.c.b16 %v1567, %v1567
    %v1704 = vunpack.c.l.b16 %v1397
    %v1705 = vunpack.c.h.b16 %v1397
    %v1706 = vunpack.c.l.b16 %v1398
    %v1707 = vunpack.c.h.b16 %v1398
    %v1708 = vunpack.c.l.b16 %v1399
    %v1709 = vunpack.c.h.b16 %v1399
    %v1710 = vunpack.c.l.b16 %v1400
    %v1711 = vunpack.c.h.b16 %v1400
    %v1712 = vunpack.c.l.b16 %v1401
    %v1713 = vunpack.c.h.b16 %v1401
    %v1714 = vunpack.c.l.b16 %v1402
    %v1715 = vunpack.c.h.b16 %v1402
    %v1716 = vunpack.c.l.b16 %v1403
    %v1717 = vunpack.c.h.b16 %v1403
    %v1718 = vunpack.c.l.b16 %v1404
    %v1719 = vunpack.c.h.b16 %v1404
    %v1720 = vunpack.c.l.b16 %v1405
    %v1721 = vunpack.c.h.b16 %v1405
    %v1722 = vunpack.c.l.b16 %v1406
    %v1723 = vunpack.c.h.b16 %v1406
    %v1724 = vunpack.c.l.b16 %v1407
    %v1725 = vunpack.c.h.b16 %v1407
    %v1726 = vunpack.c.l.b16 %v1408
    %v1727 = vunpack.c.h.b16 %v1408
    %v1728 = vunpack.c.l.b16 %v1409
    %v1729 = vunpack.c.h.b16 %v1409
    %v1730 = vunpack.c.l.b16 %v1410
    %v1731 = vunpack.c.h.b16 %v1410
    %v1732 = vunpack.c.l.b16 %v1411
    %v1733 = vunpack.c.h.b16 %v1411
    %v1734 = vunpack.c.l.b16 %v1412
    %v1735 = vunpack.c.h.b16 %v1412
    %v1736 = vunpack.c.l.b16 %v1413
    %v1737 = vunpack.c.h.b16 %v1413
    %v1738 = vunpack.c.l.b16 %v1414
    %v1739 = vunpack.c.h.b16 %v1414
    %v1740 = vunpack.c.l.b16 %v1415
    %v1741 = vunpack.c.h.b16 %v1415
    %v1742 = vunpack.c.l.b16 %v1416
    %v1743 = vunpack.c.h.b16 %v1416
    %v1744 = vunpack.c.l.b16 %v1417
    %v1745 = vunpack.c.h.b16 %v1417
    %v1746 = vunpack.c.l.b16 %v1418
    %v1747 = vunpack.c.h.b16 %v1418
    %v1748 = vunpack.c.l.b16 %v1419
    %v1749 = vunpack.c.h.b16 %v1419
    %v1750 = vunpack.c.l.b16 %v1420
    %v1751 = vunpack.c.h.b16 %v1420
    %v1752 = vunpack.c.l.b16 %v1421
    %v1753 = vunpack.c.h.b16 %v1421
    %v1754 = vunpack.c.l.b16 %v1422
    %v1755 = vunpack.c.h.b16 %v1422
    %v1756 = vunpack.c.l.b16 %v1423
    %v1757 = vunpack.c.h.b16 %v1423
    %v1758 = vunpack.c.l.b16 %v1424
    %v1759 = vunpack.c.h.b16 %v1424
    %v1760 = vunpack.c.l.b16 %v1425
    %v1761 = vunpack.c.h.b16 %v1425
    %v1762 = vunpack.c.l.b16 %v1426
    %v1763 = vunpack.c.h.b16 %v1426
    %v1764 = vunpack.c.l.b16 %v1427
    %v1765 = vunpack.c.h.b16 %v1427
    %v1766 = vunpack.c.l.b16 %v1428
    %v1767 = vunpack.c.h.b16 %v1428
    %v1768 = vunpack.c.l.b16 %v1429
    %v1769 = vunpack.c.h.b16 %v1429
    %v1770 = vunpack.c.l.b16 %v1430
    %v1771 = vunpack.c.h.b16 %v1430
    %v1772 = vunpack.c.l.b16 %v1431
    %v1773 = vunpack.c.h.b16 %v1431
    %v1774 = vunpack.c.l.b16 %v1432
    %v1775 = vunpack.c.h.b16 %v1432
    %v1776 = vunpack.c.l.b16 %v1433
    %v1777 = vunpack.c.h.b16 %v1433
    %v1778 = vunpack.c.l.b16 %v1434
    %v1779 = vunpack.c.h.b16 %v1434
    %v1780 = vunpack.c.l.b16 %v1435
    %v1781 = vunpack.c.h.b16 %v1435
    %v1782 = vunpack.c.l.b16 %v1436
    %v1783 = vunpack.c.h.b16 %v1436
    %v1784 = vunpack.c.l.b16 %v1437
    %v1785 = vunpack.c.h.b16 %v1437
    %v1786 = vunpack.c.l.b16 %v1438
    %v1787 = vunpack.c.h.b16 %v1438
    %v1788 = vunpack.c.l.b16 %v1439
    %v1789 = vunpack.c.h.b16 %v1439
    %v1790 = vunpack.c.l.b16 %v1440
    %v1791 = vunpack.c.h.b16 %v1440
    %v1792 = vunpack.c.l.b16 %v1441
    %v1793 = vunpack.c.h.b16 %v1441
    %v1794 = vunpack.c.l.b16 %v1442
    %v1795 = vunpack.c.h.b16 %v1442
    %v1796 = vunpack.c.l.b16 %v1443
    %v1797 = vunpack.c.h.b16 %v1443
    %v1798 = vunpack.c.l.b16 %v1444
    %v1799 = vunpack.c.h.b16 %v1444
    %v1800 = vunpack.c.l.b16 %v1445
    %v1801 = vunpack.c.h.b16 %v1445
    %v1802 = vunpack.c.l.b16 %v1446
    %v1803 = vunpack.c.h.b16 %v1446
    %v1804 = vunpack.c.l.b16 %v1447
    %v1805 = vunpack.c.h.b16 %v1447
    %v1806 = vunpack.c.l.b16 %v1448
    %v1807 = vunpack.c.h.b16 %v1448
    %v1808 = vunpack.c.l.b16 %v1449
    %v1809 = vunpack.c.h.b16 %v1449
    %v1810 = vunpack.c.l.b16 %v1450
    %v1811 = vunpack.c.h.b16 %v1450
    %v1812 = vunpack.c.l.b16 %v1451
    %v1813 = vunpack.c.h.b16 %v1451
    %v1814 = vunpack.c.l.b16 %v1452
    %v1815 = vunpack.c.h.b16 %v1452
    %v1816 = vunpack.c.l.b16 %v1453
    %v1817 = vunpack.c.h.b16 %v1453
    %v1818 = vunpack.c.l.b16 %v1454
    %v1819 = vunpack.c.h.b16 %v1454
    %v1820 = vunpack.c.l.b16 %v1455
    %v1821 = vunpack.c.h.b16 %v1455
    %v1822 = vunpack.c.l.b16 %v1456
    %v1823 = vunpack.c.h.b16 %v1456
    %v1824 = vunpack.c.l.b16 %v1457
    %v1825 = vunpack.c.h.b16 %v1457
    %v1826 = vunpack.c.l.b16 %v1458
    %v1827 = vunpack.c.h.b16 %v1458
    %v1828 = vunpack.c.l.b16 %v1459
    %v1829 = vunpack.c.h.b16 %v1459
    %v1830 = vunpack.c.l.b16 %v1460
    %v1831 = vunpack.c.h.b16 %v1460
    %v1832 = vunpack.c.l.b16 %v1461
    %v1833 = vunpack.c.h.b16 %v1461
    %v1834 = vunpack.c.l.b16 %v1462
    %v1835 = vunpack.c.h.b16 %v1462
    %v1836 = vunpack.c.l.b16 %v1463
    %v1837 = vunpack.c.h.b16 %v1463
    %v1838 = vunpack.c.l.b16 %v1464
    %v1839 = vunpack.c.h.b16 %v1464
    %v1840 = vunpack.c.l.b16 %v1465
    %v1841 = vunpack.c.h.b16 %v1465
    %v1842 = vunpack.c.l.b16 %v1466
    %v1843 = vunpack.c.h.b16 %v1466
    %v1844 = vunpack.c.l.b16 %v1467
    %v1845 = vunpack.c.h.b16 %v1467
    %v1846 = vunpack.c.l.b16 %v1468
    %v1847 = vunpack.c.h.b16 %v1468
    %v1848 = vunpack.c.l.b16 %v1469
    %v1849 = vunpack.c.h.b16 %v1469
    %v1850 = vunpack.c.l.b16 %v1470
    %v1851 = vunpack.c.h.b16 %v1470
    %v1852 = vunpack.c.l.b16 %v1471
    %v1853 = vunpack.c.h.b16 %v1471
    %v1854 = vunpack.c.l.b16 %v1472
    %v1855 = vunpack.c.h.b16 %v1472
    %v1856 = vunpack.c.l.b16 %v1473
    %v1857 = vunpack.c.h.b16 %v1473
    %v1858 = vunpack.c.l.b16 %v1474
    %v1859 = vunpack.c.h.b16 %v1474
    %v1860 = vunpack.c.l.b16 %v1475
    %v1861 = vunpack.c.h.b16 %v1475
    %v1862 = vunpack.c.l.b16 %v1476
    %v1863 = vunpack.c.h.b16 %v1476
    %v1864 = vunpack.c.l.b16 %v1477
    %v1865 = vunpack.c.h.b16 %v1477
    %v1866 = vunpack.c.l.b16 %v1478
    %v1867 = vunpack.c.h.b16 %v1478
    %v1868 = vunpack.c.l.b16 %v1479
    %v1869 = vunpack.c.h.b16 %v1479
    %v1870 = vunpack.c.l.b16 %v1480
    %v1871 = vunpack.c.h.b16 %v1480
    %v1872 = vunpack.c.l.b16 %v1481
    %v1873 = vunpack.c.h.b16 %v1481
    %v1874 = vunpack.c.l.b16 %v1482
    %v1875 = vunpack.c.h.b16 %v1482
    %v1876 = vunpack.c.l.b16 %v1483
    %v1877 = vunpack.c.h.b16 %v1483
    %v1878 = vunpack.c.l.b16 %v1484
    %v1879 = vunpack.c.h.b16 %v1484
    %v1880 = vunpack.c.l.b16 %v1485
    %v1881 = vunpack.c.h.b16 %v1485
    %v1882 = vunpack.c.l.b16 %v1486
    %v1883 = vunpack.c.h.b16 %v1486
    %v1884 = vunpack.c.l.b16 %v1487
    %v1885 = vunpack.c.h.b16 %v1487
    %v1886 = vunpack.c.l.b16 %v1488
    %v1887 = vunpack.c.h.b16 %v1488
    %v1888 = vunpack.c.l.b16 %v1489
    %v1889 = vunpack.c.h.b16 %v1489
    %v1890 = vunpack.c.l.b16 %v1490
    %v1891 = vunpack.c.h.b16 %v1490
    %v1892 = vunpack.c.l.b16 %v1491
    %v1893 = vunpack.c.h.b16 %v1491
    %v1894 = vunpack.c.l.b16 %v1492
    %v1895 = vunpack.c.h.b16 %v1492
    %v1896 = vunpack.c.l.b16 %v1493
    %v1897 = vunpack.c.h.b16 %v1493
    %v1898 = vunpack.c.l.b16 %v1494
    %v1899 = vunpack.c.h.b16 %v1494
    %v1900 = vunpack.c.l.b16 %v1495
    %v1901 = vunpack.c.h.b16 %v1495
    %v1902 = vunpack.c.l.b16 %v1496
    %v1903 = vunpack.c.h.b16 %v1496
    %v1904 = vunpack.c.l.b16 %v1497
    %v1905 = vunpack.c.h.b16 %v1497
    %v1906 = vunpack.c.l.b16 %v1498
    %v1907 = vunpack.c.h.b16 %v1498
    %v1908 = vunpack.c.l.b16 %v1499
    %v1909 = vunpack.c.h.b16 %v1499
    %v1910 = vunpack.c.l.b16 %v1500
    %v1911 = vunpack.c.h.b16 %v1500
    %v1912 = vunpack.c.l.b16 %v1501
    %v1913 = vunpack.c.h.b16 %v1501
    %v1914 = vunpack.c.l.b16 %v1502
    %v1915 = vunpack.c.h.b16 %v1502
    %v1916 = vunpack.c.l.b16 %v1503
    %v1917 = vunpack.c.h.b16 %v1503
    %v1918 = vunpack.c.l.b16 %v1504
    %v1919 = vunpack.c.h.b16 %v1504
    %v1920 = vunpack.c.l.b16 %v1505
    %v1921 = vunpack.c.h.b16 %v1505
    %v1922 = vunpack.c.l.b16 %v1506
    %v1923 = vunpack.c.h.b16 %v1506
    %v1924 = vunpack.c.l.b16 %v1507
    %v1925 = vunpack.c.h.b16 %v1507
    %v1926 = vunpack.c.l.b16 %v1508
    %v1927 = vunpack.c.h.b16 %v1508
    %v1928 = vunpack.c.l.b16 %v1509
    %v1929 = vunpack.c.h.b16 %v1509
    %v1930 = vunpack.c.l.b16 %v1510
    %v1931 = vunpack.c.h.b16 %v1510
    %v1932 = vunpack.c.l.b16 %v1511
    %v1933 = vunpack.c.h.b16 %v1511
    %v1934 = vunpack.c.l.b16 %v1512
    %v1935 = vunpack.c.h.b16 %v1512
    %v1936 = vunpack.c.l.b16 %v1513
    %v1937 = vunpack.c.h.b16 %v1513
    %v1938 = vunpack.c.l.b16 %v1514
    %v1939 = vunpack.c.h.b16 %v1514
    %v1940 = vunpack.c.l.b16 %v1515
    %v1941 = vunpack.c.h.b16 %v1515
    %v1942 = vunpack.c.l.b16 %v1516
    %v1943 = vunpack.c.h.b16 %v1516
    %v1944 = vunpack.c.l.b16 %v1517
    %v1945 = vunpack.c.h.b16 %v1517
    %v1946 = vunpack.c.l.b16 %v1518
    %v1947 = vunpack.c.h.b16 %v1518
    %v1948 = vunpack.c.l.b16 %v1519
    %v1949 = vunpack.c.h.b16 %v1519
    %v1950 = vunpack.c.l.b16 %v1520
    %v1951 = vunpack.c.h.b16 %v1520
    %v1952 = vunpack.c.l.b16 %v1521
    %v1953 = vunpack.c.h.b16 %v1521
    %v1954 = vunpack.c.l.b16 %v1522
    %v1955 = vunpack.c.h.b16 %v1522
    %v1956 = vunpack.c.l.b16 %v1523
    %v1957 = vunpack.c.h.b16 %v1523
    %v1958 = vunpack.c.l.b16 %v1524
    %v1959 = vunpack.c.h.b16 %v1524
    %v1960 = vpack.c.b16 %v1708, %v1704
    %v1961 = vpack.c.b16 %v1709, %v1705
    %v1962 = vpack.c.b16 %v1710, %v1706
    %v1963 = vpack.c.b16 %v1711, %v1707
    %v1964 = vpack.c.b16 %v1716, %v1712
    %v1965 = vpack.c.b16 %v1717, %v1713
    %v1966 = vpack.c.b16 %v1718, %v1714
    %v1967 = vpack.c.b16 %v1719, %v1715
    %v1968 = vpack.c.b16 %v1724, %v1720
    %v1969 = vpack.c.b16 %v1725, %v1721
    %v1970 = vpack.c.b16 %v1726, %v1722
    %v1971 = vpack.c.b16 %v1727, %v1723
    %v1972 = vpack.c.b16 %v1732, %v1728
    %v1973 = vpack.c.b16 %v1733, %v1729
    %v1974 = vpack.c.b16 %v1734, %v1730
    %v1975 = vpack.c.b16 %v1735, %v1731
    %v1976 = vpack.c.b16 %v1740, %v1736
    %v1977 = vpack.c.b16 %v1741, %v1737
    %v1978 = vpack.c.b16 %v1742, %v1738
    %v1979 = vpack.c.b16 %v1743, %v1739
    %v1980 = vpack.c.b16 %v1748, %v1744
    %v1981 = vpack.c.b16 %v1749, %v1745
    %v1982 = vpack.c.b16 %v1750, %v1746
    %v1983 = vpack.c.b16 %v1751, %v1747
    %v1984 = vpack.c.b16 %v1756, %v1752
    %v1985 = vpack.c.b16 %v1757, %v1753
    %v1986 = vpack.c.b16 %v1758, %v1754
    %v1987 = vpack.c.b16 %v1759, %v1755
    %v1988 = vpack.c.b16 %v1764, %v1760
    %v1989 = vpack.c.b16 %v1765, %v1761
    %v1990 = vpack.c.b16 %v1766, %v1762
    %v1991 = vpack.c.b16 %v1767, %v1763
    %v1992 = vpack.c.b16 %v1772, %v1768
    %v1993 = vpack.c.b16 %v1773, %v1769
    %v1994 = vpack.c.b16 %v1774, %v1770
    %v1995 = vpack.c.b16 %v1775, %v1771
    %v1996 = vpack.c.b16 %v1780, %v1776
    %v1997 = vpack.c.b16 %v1781, %v1777
    %v1998 = vpack.c.b16 %v1782, %v1778
    %v1999 = vpack.c.b16 %v1783, %v1779
    %v2000 = vpack.c.b16 %v1788, %v1784
    %v2001 = vpack.c.b16 %v1789, %v1785
    %v2002 = vpack.c.b16 %v1790, %v1786
    %v2003 = vpack.c.b16 %v1791, %v1787
    %v2004 = vpack.c.b16 %v1796, %v1792
    %v2005 = vpack.c.b16 %v1797, %v1793
    %v2006 = vpack.c.b16 %v1798, %v1794
    %v2007 = vpack.c.b16 %v1799, %v1795
    %v2008 = vpack.c.b16 %v1804, %v1800
    %v2009 = vpack.c.b16 %v1805, %v1801
    %v2010 = vpack.c.b16 %v1806, %v1802
    %v2011 = vpack.c.b16 %v1807, %v1803
    %v2012 = vpack.c.b16 %v1812, %v1808
    %v2013 = vpack.c.b16 %v1813, %v1809
    %v2014 = vpack.c.b16 %v1814, %v1810
    %v2015 = vpack.c.b16 %v1815, %v1811
    %v2016 = vpack.c.b16 %v1820, %v1816
    %v2017 = vpack.c.b16 %v1821, %v1817
    %v2018 = vpack.c.b16 %v1822, %v1818
    %v2019 = vpack.c.b16 %v1823, %v1819
    %v2020 = vpack.c.b16 %v1828, %v1824
    %v2021 = vpack.c.b16 %v1829, %v1825
    %v2022 = vpack.c.b16 %v1830, %v1826
    %v2023 = vpack.c.b16 %v1831, %v1827
    %v2024 = vpack.c.b16 %v1836, %v1832
    %v2025 = vpack.c.b16 %v1837, %v1833
    %v2026 = vpack.c.b16 %v1838, %v1834
    %v2027 = vpack.c.b16 %v1839, %v1835
    %v2028 = vpack.c.b16 %v1844, %v1840
    %v2029 = vpack.c.b16 %v1845, %v1841
    %v2030 = vpack.c.b16 %v1846, %v1842
    %v2031 = vpack.c.b16 %v1847, %v1843
    %v2032 = vpack.c.b16 %v1852, %v1848
    %v2033 = vpack.c.b16 %v1853, %v1849
    %v2034 = vpack.c.b16 %v1854, %v1850
    %v2035 = vpack.c.b16 %v1855, %v1851
    %v2036 = vpack.c.b16 %v1860, %v1856
    %v2037 = vpack.c.b16 %v1861, %v1857
    %v2038 = vpack.c.b16 %v1862, %v1858
    %v2039 = vpack.c.b16 %v1863, %v1859
    %v2040 = vpack.c.b16 %v1868, %v1864
    %v2041 = vpack.c.b16 %v1869, %v1865
    %v2042 = vpack.c.b16 %v1870, %v1866
    %v2043 = vpack.c.b16 %v1871, %v1867
    %v2044 = vpack.c.b16 %v1876, %v1872
    %v2045 = vpack.c.b16 %v1877, %v1873
    %v2046 = vpack.c.b16 %v1878, %v1874
    %v2047 = vpack.c.b16 %v1879, %v1875
    %v2048 = vpack.c.b16 %v1884, %v1880
    %v2049 = vpack.c.b16 %v1885, %v1881
    %v2050 = vpack.c.b16 %v1886, %v1882
    %v2051 = vpack.c.b16 %v1887, %v1883
    %v2052 = vpack.c.b16 %v1892, %v1888
    %v2053 = vpack.c.b16 %v1893, %v1889
    %v2054 = vpack.c.b16 %v1894, %v1890
    %v2055 = vpack.c.b16 %v1895, %v1891
    %v2056 = vpack.c.b16 %v1900, %v1896
    %v2057 = vpack.c.b16 %v1901, %v1897
    %v2058 = vpack.c.b16 %v1902, %v1898
    %v2059 = vpack.c.b16 %v1903, %v1899
    %v2060 = vpack.c.b16 %v1908, %v1904
    %v2061 = vpack.c.b16 %v1909, %v1905
    %v2062 = vpack.c.b16 %v1910, %v1906
    %v2063 = vpack.c.b16 %v1911, %v1907
    %v2064 = vpack.c.b16 %v1916, %v1912
    %v2065 = vpack.c.b16 %v1917, %v1913
    %v2066 = vpack.c.b16 %v1918, %v1914
    %v2067 = vpack.c.b16 %v1919, %v1915
    %v2068 = vpack.c.b16 %v1924, %v1920
    %v2069 = vpack.c.b16 %v1925, %v1921
    %v2070 = vpack.c.b16 %v1926, %v1922
    %v2071 = vpack.c.b16 %v1927, %v1923
    %v2072 = vpack.c.b16 %v1932, %v1928
    %v2073 = vpack.c.b16 %v1933, %v1929
    %v2074 = vpack.c.b16 %v1934, %v1930
    %v2075 = vpack.c.b16 %v1935, %v1931
    %v2076 = vpack.c.b16 %v1940, %v1936
    %v2077 = vpack.c.b16 %v1941, %v1937
    %v2078 = vpack.c.b16 %v1942, %v1938
    %v2079 = vpack.c.b16 %v1943, %v1939
    %v2080 = vpack.c.b16 %v1948, %v1944
    %v2081 = vpack.c.b16 %v1949, %v1945
    %v2082 = vpack.c.b16 %v1950, %v1946
    %v2083 = vpack.c.b16 %v1951, %v1947
    %v2084 = vpack.c.b16 %v1956, %v1952
    %v2085 = vpack.c.b16 %v1957, %v1953
    %v2086 = vpack.c.b16 %v1958, %v1954
    %v2087 = vpack.c.b16 %v1959, %v1955
    %2216 = vmatprep.subr.bf16.mxu0 %v1989
    %2217 = vmatpush1.bf16.msra.mxu0 %v1988
    %2218 = vmatprep.subr.bf16.mxu0 %v1985
    %2219 = vmatpush1.bf16.msra.mxu0 %v1984
    %2220 = vmatprep.subr.bf16.mxu0 %v1981
    %2221 = vmatpush1.bf16.msra.mxu0 %v1980
    %2222 = vmatprep.subr.bf16.mxu0 %v1977
    %2223 = vmatpush1.bf16.msra.mxu0 %v1976
    %2224 = vmatprep.subr.bf16.mxu0 %v1973
    %2225 = vmatpush1.bf16.msra.mxu0 %v1972
    %2226 = vmatprep.subr.bf16.mxu0 %v1969
    %2227 = vmatpush1.bf16.msra.mxu0 %v1968
    %2228 = vmatprep.subr.bf16.mxu0 %v1965
    %2229 = vmatpush1.bf16.msra.mxu0 %v1964
    %2230 = vmatprep.subr.bf16.mxu0 %v1961
    %2231 = vmatpush1.bf16.msra.mxu0 %v1960
    %2232 = vmatprep.subr.bf16.mxu0 %v2021
    %2233 = vmatpush2.bf16.msra.mxu0 %v2020
    %2234 = vmatprep.subr.bf16.mxu0 %v2017
    %2235 = vmatpush2.bf16.msra.mxu0 %v2016
    %2236 = vmatprep.subr.bf16.mxu0 %v2013
    %2237 = vmatpush2.bf16.msra.mxu0 %v2012
    %2238 = vmatprep.subr.bf16.mxu0 %v2009
    %2239 = vmatpush2.bf16.msra.mxu0 %v2008
    %2240 = vmatprep.subr.bf16.mxu0 %v2005
    %2241 = vmatpush2.bf16.msra.mxu0 %v2004
    %2242 = vmatprep.subr.bf16.mxu0 %v2001
    %2243 = vmatpush2.bf16.msra.mxu0 %v2000
    %2244 = vmatprep.subr.bf16.mxu0 %v1997
    %2245 = vmatpush2.bf16.msra.mxu0 %v1996
    %2246 = vmatprep.subr.bf16.mxu0 %v1993
    %2247 = vmatpush2.bf16.msra.mxu0 %v1992
    %2248 = vmatprep.mubr.bf16.mxu0 %v1569
    %2249 = vmatmul.mubr.bf16.gmra.mxu0 %v1568
    %v2250 = vpop.f32.mrf.mxu0
    %v2251 = vadd.f32 %v1530, %v2250
    %v2252 = vpop.f32.mrf.mxu0
    %v2253 = vadd.f32 %v1534, %v2252
    %v2254 = vpop.f32.mrf.mxu0
    %v2255 = vpop.f32.mrf.mxu0
    %2256 = vdwg.mxu0
    %2257 = vmatprep.subr.bf16.mxu0 %v2053
    %2258 = vmatpush1.bf16.msra.mxu0 %v2052
    %2259 = vmatprep.subr.bf16.mxu0 %v2049
    %2260 = vmatpush1.bf16.msra.mxu0 %v2048
    %2261 = vmatprep.subr.bf16.mxu0 %v2045
    %2262 = vmatpush1.bf16.msra.mxu0 %v2044
    %2263 = vmatprep.subr.bf16.mxu0 %v2041
    %2264 = vmatpush1.bf16.msra.mxu0 %v2040
    %2265 = vmatprep.subr.bf16.mxu0 %v2037
    %2266 = vmatpush1.bf16.msra.mxu0 %v2036
    %2267 = vmatprep.subr.bf16.mxu0 %v2033
    %2268 = vmatpush1.bf16.msra.mxu0 %v2032
    %2269 = vmatprep.subr.bf16.mxu0 %v2029
    %2270 = vmatpush1.bf16.msra.mxu0 %v2028
    %2271 = vmatprep.subr.bf16.mxu0 %v2025
    %2272 = vmatpush1.bf16.msra.mxu0 %v2024
    %2273 = vmatprep.subr.bf16.mxu0 %v2085
    %2274 = vmatpush2.bf16.msra.mxu0 %v2084
    %2275 = vmatprep.subr.bf16.mxu0 %v2081
    %2276 = vmatpush2.bf16.msra.mxu0 %v2080
    %2277 = vmatprep.subr.bf16.mxu0 %v2077
    %2278 = vmatpush2.bf16.msra.mxu0 %v2076
    %2279 = vmatprep.subr.bf16.mxu0 %v2073
    %2280 = vmatpush2.bf16.msra.mxu0 %v2072
    %2281 = vmatprep.subr.bf16.mxu0 %v2069
    %2282 = vmatpush2.bf16.msra.mxu0 %v2068
    %2283 = vmatprep.subr.bf16.mxu0 %v2065
    %2284 = vmatpush2.bf16.msra.mxu0 %v2064
    %2285 = vmatprep.subr.bf16.mxu0 %v2061
    %2286 = vmatpush2.bf16.msra.mxu0 %v2060
    %2287 = vmatprep.subr.bf16.mxu0 %v2057
    %2288 = vmatpush2.bf16.msra.mxu0 %v2056
    %2289 = vmatprep.mubr.bf16.mxu0 %v1571
    %2290 = vmatmul.mubr.bf16.gmra.mxu0 %v1570
    %v2291 = vpop.f32.mrf.mxu0
    %v2292 = vadd.f32 %v2251, %v2291
    %v2293 = vpop.f32.mrf.mxu0
    %v2294 = vadd.f32 %v2253, %v2293
    %v2295 = vpop.f32.mrf.mxu0
    %v2296 = vpop.f32.mrf.mxu0
    %2297 = vdwg.mxu0
    %2298 = vmatprep.subr.bf16.mxu0 %v1991
    %2299 = vmatpush1.bf16.msra.mxu0 %v1990
    %2300 = vmatprep.subr.bf16.mxu0 %v1987
    %2301 = vmatpush1.bf16.msra.mxu0 %v1986
    %2302 = vmatprep.subr.bf16.mxu0 %v1983
    %2303 = vmatpush1.bf16.msra.mxu0 %v1982
    %2304 = vmatprep.subr.bf16.mxu0 %v1979
    %2305 = vmatpush1.bf16.msra.mxu0 %v1978
    %2306 = vmatprep.subr.bf16.mxu0 %v1975
    %2307 = vmatpush1.bf16.msra.mxu0 %v1974
    %2308 = vmatprep.subr.bf16.mxu0 %v1971
    %2309 = vmatpush1.bf16.msra.mxu0 %v1970
    %2310 = vmatprep.subr.bf16.mxu0 %v1967
    %2311 = vmatpush1.bf16.msra.mxu0 %v1966
    %2312 = vmatprep.subr.bf16.mxu0 %v1963
    %2313 = vmatpush1.bf16.msra.mxu0 %v1962
    %2314 = vmatprep.subr.bf16.mxu0 %v2023
    %2315 = vmatpush2.bf16.msra.mxu0 %v2022
    %2316 = vmatprep.subr.bf16.mxu0 %v2019
    %2317 = vmatpush2.bf16.msra.mxu0 %v2018
    %2318 = vmatprep.subr.bf16.mxu0 %v2015
    %2319 = vmatpush2.bf16.msra.mxu0 %v2014
    %2320 = vmatprep.subr.bf16.mxu0 %v2011
    %2321 = vmatpush2.bf16.msra.mxu0 %v2010
    %2322 = vmatprep.subr.bf16.mxu0 %v2007
    %2323 = vmatpush2.bf16.msra.mxu0 %v2006
    %2324 = vmatprep.subr.bf16.mxu0 %v2003
    %2325 = vmatpush2.bf16.msra.mxu0 %v2002
    %2326 = vmatprep.subr.bf16.mxu0 %v1999
    %2327 = vmatpush2.bf16.msra.mxu0 %v1998
    %2328 = vmatprep.subr.bf16.mxu0 %v1995
    %2329 = vmatpush2.bf16.msra.mxu0 %v1994
    %2330 = vmatprep.mubr.bf16.mxu0 %v1569
    %2331 = vmatmul.mubr.bf16.gmra.mxu0 %v1568
    %v2332 = vpop.f32.mrf.mxu0
    %v2333 = vadd.f32 %v1538, %v2332
    %v2334 = vpop.f32.mrf.mxu0
    %v2335 = vadd.f32 %v1542, %v2334
    %v2336 = vpop.f32.mrf.mxu0
    %v2337 = vpop.f32.mrf.mxu0
    %2338 = vdwg.mxu0
    %2339 = vmatprep.subr.bf16.mxu0 %v2055
    %2340 = vmatpush1.bf16.msra.mxu0 %v2054
    %2341 = vmatprep.subr.bf16.mxu0 %v2051
    %2342 = vmatpush1.bf16.msra.mxu0 %v2050
    %2343 = vmatprep.subr.bf16.mxu0 %v2047
    %2344 = vmatpush1.bf16.msra.mxu0 %v2046
    %2345 = vmatprep.subr.bf16.mxu0 %v2043
    %2346 = vmatpush1.bf16.msra.mxu0 %v2042
    %2347 = vmatprep.subr.bf16.mxu0 %v2039
    %2348 = vmatpush1.bf16.msra.mxu0 %v2038
    %2349 = vmatprep.subr.bf16.mxu0 %v2035
    %2350 = vmatpush1.bf16.msra.mxu0 %v2034
    %2351 = vmatprep.subr.bf16.mxu0 %v2031
    %2352 = vmatpush1.bf16.msra.mxu0 %v2030
    %2353 = vmatprep.subr.bf16.mxu0 %v2027
    %2354 = vmatpush1.bf16.msra.mxu0 %v2026
    %2355 = vmatprep.subr.bf16.mxu0 %v2087
    %2356 = vmatpush2.bf16.msra.mxu0 %v2086
    %2357 = vmatprep.subr.bf16.mxu0 %v2083
    %2358 = vmatpush2.bf16.msra.mxu0 %v2082
    %2359 = vmatprep.subr.bf16.mxu0 %v2079
    %2360 = vmatpush2.bf16.msra.mxu0 %v2078
    %2361 = vmatprep.subr.bf16.mxu0 %v2075
    %2362 = vmatpush2.bf16.msra.mxu0 %v2074
    %2363 = vmatprep.subr.bf16.mxu0 %v2071
    %2364 = vmatpush2.bf16.msra.mxu0 %v2070
    %2365 = vmatprep.subr.bf16.mxu0 %v2067
    %2366 = vmatpush2.bf16.msra.mxu0 %v2066
    %2367 = vmatprep.subr.bf16.mxu0 %v2063
    %2368 = vmatpush2.bf16.msra.mxu0 %v2062
    %2369 = vmatprep.subr.bf16.mxu0 %v2059
    %2370 = vmatpush2.bf16.msra.mxu0 %v2058
    %2371 = vmatprep.mubr.bf16.mxu0 %v1571
    %2372 = vmatmul.mubr.bf16.gmra.mxu0 %v1570
    %v2373 = vpop.f32.mrf.mxu0
    %v2374 = vadd.f32 %v2333, %v2373
    %v2375 = vpop.f32.mrf.mxu0
    %v2376 = vadd.f32 %v2335, %v2375
    %v2377 = vpop.f32.mrf.mxu0
    %v2378 = vpop.f32.mrf.mxu0
    %2379 = vdwg.mxu0
    %v2380 = vmax.f32 %v2292, 0.0
    %v2381 = vmax.f32 %v2294, 0.0
    %v2382 = vmax.f32 %v2374, 0.0
    %v2383 = vmax.f32 %v2376, 0.0
    %v2384 = vpack.c.bf16 %v2380, %v2380
    %v2385 = vpack.c.bf16 %v2381, %v2381
    %v2386 = vpack.c.bf16 %v2382, %v2382
    %v2387 = vpack.c.bf16 %v2383, %v2383
    %v2388 = vld [vmem:[%s7] sm:$0xf]
    %v2389 = vld [vmem:[%s7 + $0x4] sm:$0xf]
    %v2390 = vld [vmem:[%s7 + $0x8] sm:$0xf]
    %v2391 = vld [vmem:[%s7 + $0xc] sm:$0xf]
    %v2392 = vld [vmem:[%s7 + $0x10] sm:$0xf]
    %v2393 = vld [vmem:[%s7 + $0x14] sm:$0xf]
    %v2394 = vld [vmem:[%s7 + $0x18] sm:$0xf]
    %v2395 = vld [vmem:[%s7 + $0x1c] sm:$0xf]
    %v2396 = vld [vmem:[%s7 + $0x20] sm:$0xf]
    %v2397 = vld [vmem:[%s7 + $0x24] sm:$0xf]
    %v2398 = vld [vmem:[%s7 + $0x28] sm:$0xf]
    %v2399 = vld [vmem:[%s7 + $0x2c] sm:$0xf]
    %v2400 = vld [vmem:[%s7 + $0x30] sm:$0xf]
    %v2401 = vld [vmem:[%s7 + $0x34] sm:$0xf]
    %v2402 = vld [vmem:[%s7 + $0x38] sm:$0xf]
    %v2403 = vld [vmem:[%s7 + $0x3c] sm:$0xf]
    %v2404 = vld [vmem:[%s7 + $0x40] sm:$0xf]
    %v2405 = vld [vmem:[%s7 + $0x44] sm:$0xf]
    %v2406 = vld [vmem:[%s7 + $0x48] sm:$0xf]
    %v2407 = vld [vmem:[%s7 + $0x4c] sm:$0xf]
    %v2408 = vld [vmem:[%s7 + $0x50] sm:$0xf]
    %v2409 = vld [vmem:[%s7 + $0x54] sm:$0xf]
    %v2410 = vld [vmem:[%s7 + $0x58] sm:$0xf]
    %v2411 = vld [vmem:[%s7 + $0x5c] sm:$0xf]
    %v2412 = vld [vmem:[%s7 + $0x60] sm:$0xf]
    %v2413 = vld [vmem:[%s7 + $0x64] sm:$0xf]
    %v2414 = vld [vmem:[%s7 + $0x68] sm:$0xf]
    %v2415 = vld [vmem:[%s7 + $0x6c] sm:$0xf]
    %v2416 = vld [vmem:[%s7 + $0x70] sm:$0xf]
    %v2417 = vld [vmem:[%s7 + $0x74] sm:$0xf]
    %v2418 = vld [vmem:[%s7 + $0x78] sm:$0xf]
    %v2419 = vld [vmem:[%s7 + $0x7c] sm:$0xf]
    %v2420 = vld [vmem:[%s7 + $0x80] sm:$0xf]
    %v2421 = vld [vmem:[%s7 + $0x84] sm:$0xf]
    %v2422 = vld [vmem:[%s7 + $0x88] sm:$0xf]
    %v2423 = vld [vmem:[%s7 + $0x8c] sm:$0xf]
    %v2424 = vld [vmem:[%s7 + $0x90] sm:$0xf]
    %v2425 = vld [vmem:[%s7 + $0x94] sm:$0xf]
    %v2426 = vld [vmem:[%s7 + $0x98] sm:$0xf]
    %v2427 = vld [vmem:[%s7 + $0x9c] sm:$0xf]
    %v2428 = vld [vmem:[%s7 + $0xa0] sm:$0xf]
    %v2429 = vld [vmem:[%s7 + $0xa4] sm:$0xf]
    %v2430 = vld [vmem:[%s7 + $0xa8] sm:$0xf]
    %v2431 = vld [vmem:[%s7 + $0xac] sm:$0xf]
    %v2432 = vld [vmem:[%s7 + $0xb0] sm:$0xf]
    %v2433 = vld [vmem:[%s7 + $0xb4] sm:$0xf]
    %v2434 = vld [vmem:[%s7 + $0xb8] sm:$0xf]
    %v2435 = vld [vmem:[%s7 + $0xbc] sm:$0xf]
    %v2436 = vld [vmem:[%s7 + $0xc0] sm:$0xf]
    %v2437 = vld [vmem:[%s7 + $0xc4] sm:$0xf]
    %v2438 = vld [vmem:[%s7 + $0xc8] sm:$0xf]
    %v2439 = vld [vmem:[%s7 + $0xcc] sm:$0xf]
    %v2440 = vld [vmem:[%s7 + $0xd0] sm:$0xf]
    %v2441 = vld [vmem:[%s7 + $0xd4] sm:$0xf]
    %v2442 = vld [vmem:[%s7 + $0xd8] sm:$0xf]
    %v2443 = vld [vmem:[%s7 + $0xdc] sm:$0xf]
    %v2444 = vld [vmem:[%s7 + $0xe0] sm:$0xf]
    %v2445 = vld [vmem:[%s7 + $0xe4] sm:$0xf]
    %v2446 = vld [vmem:[%s7 + $0xe8] sm:$0xf]
    %v2447 = vld [vmem:[%s7 + $0xec] sm:$0xf]
    %v2448 = vld [vmem:[%s7 + $0xf0] sm:$0xf]
    %v2449 = vld [vmem:[%s7 + $0xf4] sm:$0xf]
    %v2450 = vld [vmem:[%s7 + $0xf8] sm:$0xf]
    %v2451 = vld [vmem:[%s7 + $0xfc] sm:$0xf]
    %v2452 = vld [vmem:[%s8] sm:$0x1]
    %v2454 = vlaneseq
    %v2455 = vshrl.u32 %v2454, 7
    %v2456 = vsub.s32 0, %v2455
    %v2457 = vrot.slane %v2452, %v2456
    %v2523 = vunpack.c.l.b16 %v2388
    %v2524 = vunpack.c.l.b16 %v2389
    %v2525 = vunpack.c.l.b16 %v2390
    %v2526 = vunpack.c.l.b16 %v2391
    %v2527 = vunpack.c.l.b16 %v2392
    %v2528 = vunpack.c.l.b16 %v2393
    %v2529 = vunpack.c.l.b16 %v2394
    %v2530 = vunpack.c.l.b16 %v2395
    %v2531 = vunpack.c.l.b16 %v2396
    %v2532 = vunpack.c.l.b16 %v2397
    %v2533 = vunpack.c.l.b16 %v2398
    %v2534 = vunpack.c.l.b16 %v2399
    %v2535 = vunpack.c.l.b16 %v2400
    %v2536 = vunpack.c.l.b16 %v2401
    %v2537 = vunpack.c.l.b16 %v2402
    %v2538 = vunpack.c.l.b16 %v2403
    %v2539 = vunpack.c.l.b16 %v2404
    %v2540 = vunpack.c.l.b16 %v2405
    %v2541 = vunpack.c.l.b16 %v2406
    %v2542 = vunpack.c.l.b16 %v2407
    %v2543 = vunpack.c.l.b16 %v2408
    %v2544 = vunpack.c.l.b16 %v2409
    %v2545 = vunpack.c.l.b16 %v2410
    %v2546 = vunpack.c.l.b16 %v2411
    %v2547 = vunpack.c.l.b16 %v2412
    %v2548 = vunpack.c.l.b16 %v2413
    %v2549 = vunpack.c.l.b16 %v2414
    %v2550 = vunpack.c.l.b16 %v2415
    %v2551 = vunpack.c.l.b16 %v2416
    %v2552 = vunpack.c.l.b16 %v2417
    %v2553 = vunpack.c.l.b16 %v2418
    %v2554 = vunpack.c.l.b16 %v2419
    %v2555 = vunpack.c.l.b16 %v2420
    %v2556 = vunpack.c.l.b16 %v2421
    %v2557 = vunpack.c.l.b16 %v2422
    %v2558 = vunpack.c.l.b16 %v2423
    %v2559 = vunpack.c.l.b16 %v2424
    %v2560 = vunpack.c.l.b16 %v2425
    %v2561 = vunpack.c.l.b16 %v2426
    %v2562 = vunpack.c.l.b16 %v2427
    %v2563 = vunpack.c.l.b16 %v2428
    %v2564 = vunpack.c.l.b16 %v2429
    %v2565 = vunpack.c.l.b16 %v2430
    %v2566 = vunpack.c.l.b16 %v2431
    %v2567 = vunpack.c.l.b16 %v2432
    %v2568 = vunpack.c.l.b16 %v2433
    %v2569 = vunpack.c.l.b16 %v2434
    %v2570 = vunpack.c.l.b16 %v2435
    %v2571 = vunpack.c.l.b16 %v2436
    %v2572 = vunpack.c.l.b16 %v2437
    %v2573 = vunpack.c.l.b16 %v2438
    %v2574 = vunpack.c.l.b16 %v2439
    %v2575 = vunpack.c.l.b16 %v2440
    %v2576 = vunpack.c.l.b16 %v2441
    %v2577 = vunpack.c.l.b16 %v2442
    %v2578 = vunpack.c.l.b16 %v2443
    %v2579 = vunpack.c.l.b16 %v2444
    %v2580 = vunpack.c.l.b16 %v2445
    %v2581 = vunpack.c.l.b16 %v2446
    %v2582 = vunpack.c.l.b16 %v2447
    %v2583 = vunpack.c.l.b16 %v2448
    %v2584 = vunpack.c.l.b16 %v2449
    %v2585 = vunpack.c.l.b16 %v2450
    %v2586 = vunpack.c.l.b16 %v2451
    %v2587 = vpack.c.b16 %v2524, %v2523
    %v2588 = vpack.c.b16 %v2526, %v2525
    %v2589 = vpack.c.b16 %v2528, %v2527
    %v2590 = vpack.c.b16 %v2530, %v2529
    %v2591 = vpack.c.b16 %v2532, %v2531
    %v2592 = vpack.c.b16 %v2534, %v2533
    %v2593 = vpack.c.b16 %v2536, %v2535
    %v2594 = vpack.c.b16 %v2538, %v2537
    %v2595 = vpack.c.b16 %v2540, %v2539
    %v2596 = vpack.c.b16 %v2542, %v2541
    %v2597 = vpack.c.b16 %v2544, %v2543
    %v2598 = vpack.c.b16 %v2546, %v2545
    %v2599 = vpack.c.b16 %v2548, %v2547
    %v2600 = vpack.c.b16 %v2550, %v2549
    %v2601 = vpack.c.b16 %v2552, %v2551
    %v2602 = vpack.c.b16 %v2554, %v2553
    %v2603 = vpack.c.b16 %v2556, %v2555
    %v2604 = vpack.c.b16 %v2558, %v2557
    %v2605 = vpack.c.b16 %v2560, %v2559
    %v2606 = vpack.c.b16 %v2562, %v2561
    %v2607 = vpack.c.b16 %v2564, %v2563
    %v2608 = vpack.c.b16 %v2566, %v2565
    %v2609 = vpack.c.b16 %v2568, %v2567
    %v2610 = vpack.c.b16 %v2570, %v2569
    %v2611 = vpack.c.b16 %v2572, %v2571
    %v2612 = vpack.c.b16 %v2574, %v2573
    %v2613 = vpack.c.b16 %v2576, %v2575
    %v2614 = vpack.c.b16 %v2578, %v2577
    %v2615 = vpack.c.b16 %v2580, %v2579
    %v2616 = vpack.c.b16 %v2582, %v2581
    %v2617 = vpack.c.b16 %v2584, %v2583
    %v2618 = vpack.c.b16 %v2586, %v2585
    %2651 = vmatprep.subr.bf16.mxu0 0
    %2652 = vmatpush1.bf16.msra.mxu0 %v2594
    %2653 = vmatprep.subr.bf16.mxu0 0
    %2654 = vmatpush1.bf16.msra.mxu0 %v2593
    %2655 = vmatprep.subr.bf16.mxu0 0
    %2656 = vmatpush1.bf16.msra.mxu0 %v2592
    %2657 = vmatprep.subr.bf16.mxu0 0
    %2658 = vmatpush1.bf16.msra.mxu0 %v2591
    %2659 = vmatprep.subr.bf16.mxu0 0
    %2660 = vmatpush1.bf16.msra.mxu0 %v2590
    %2661 = vmatprep.subr.bf16.mxu0 0
    %2662 = vmatpush1.bf16.msra.mxu0 %v2589
    %2663 = vmatprep.subr.bf16.mxu0 0
    %2664 = vmatpush1.bf16.msra.mxu0 %v2588
    %2665 = vmatprep.subr.bf16.mxu0 0
    %2666 = vmatpush1.bf16.msra.mxu0 %v2587
    %2667 = vmatprep.subr.bf16.mxu0 0
    %2668 = vmatpush2.bf16.msra.mxu0 %v2602
    %2669 = vmatprep.subr.bf16.mxu0 0
    %2670 = vmatpush2.bf16.msra.mxu0 %v2601
    %2671 = vmatprep.subr.bf16.mxu0 0
    %2672 = vmatpush2.bf16.msra.mxu0 %v2600
    %2673 = vmatprep.subr.bf16.mxu0 0
    %2674 = vmatpush2.bf16.msra.mxu0 %v2599
    %2675 = vmatprep.subr.bf16.mxu0 0
    %2676 = vmatpush2.bf16.msra.mxu0 %v2598
    %2677 = vmatprep.subr.bf16.mxu0 0
    %2678 = vmatpush2.bf16.msra.mxu0 %v2597
    %2679 = vmatprep.subr.bf16.mxu0 0
    %2680 = vmatpush2.bf16.msra.mxu0 %v2596
    %2681 = vmatprep.subr.bf16.mxu0 0
    %2682 = vmatpush2.bf16.msra.mxu0 %v2595
    %2683 = vmatprep.mubr.bf16.mxu0 %v2385
    %2684 = vmatmul.mubr.bf16.gmra.mxu0 %v2384
    %v2685 = vpop.f32.mrf.mxu0
    %v2686 = vadd.f32 %v2457, %v2685
    %v2687 = vpop.f32.mrf.mxu0
    %v2688 = vpop.f32.mrf.mxu0
    %v2689 = vpop.f32.mrf.mxu0
    %2690 = vdwg.mxu0
    %2691 = vmatprep.subr.bf16.mxu0 0
    %2692 = vmatpush1.bf16.msra.mxu0 %v2610
    %2693 = vmatprep.subr.bf16.mxu0 0
    %2694 = vmatpush1.bf16.msra.mxu0 %v2609
    %2695 = vmatprep.subr.bf16.mxu0 0
    %2696 = vmatpush1.bf16.msra.mxu0 %v2608
    %2697 = vmatprep.subr.bf16.mxu0 0
    %2698 = vmatpush1.bf16.msra.mxu0 %v2607
    %2699 = vmatprep.subr.bf16.mxu0 0
    %2700 = vmatpush1.bf16.msra.mxu0 %v2606
    %2701 = vmatprep.subr.bf16.mxu0 0
    %2702 = vmatpush1.bf16.msra.mxu0 %v2605
    %2703 = vmatprep.subr.bf16.mxu0 0
    %2704 = vmatpush1.bf16.msra.mxu0 %v2604
    %2705 = vmatprep.subr.bf16.mxu0 0
    %2706 = vmatpush1.bf16.msra.mxu0 %v2603
    %2707 = vmatprep.subr.bf16.mxu0 0
    %2708 = vmatpush2.bf16.msra.mxu0 %v2618
    %2709 = vmatprep.subr.bf16.mxu0 0
    %2710 = vmatpush2.bf16.msra.mxu0 %v2617
    %2711 = vmatprep.subr.bf16.mxu0 0
    %2712 = vmatpush2.bf16.msra.mxu0 %v2616
    %2713 = vmatprep.subr.bf16.mxu0 0
    %2714 = vmatpush2.bf16.msra.mxu0 %v2615
    %2715 = vmatprep.subr.bf16.mxu0 0
    %2716 = vmatpush2.bf16.msra.mxu0 %v2614
    %2717 = vmatprep.subr.bf16.mxu0 0
    %2718 = vmatpush2.bf16.msra.mxu0 %v2613
    %2719 = vmatprep.subr.bf16.mxu0 0
    %2720 = vmatpush2.bf16.msra.mxu0 %v2612
    %2721 = vmatprep.subr.bf16.mxu0 0
    %2722 = vmatpush2.bf16.msra.mxu0 %v2611
    %2723 = vmatprep.mubr.bf16.mxu0 %v2387
    %2724 = vmatmul.mubr.bf16.gmra.mxu0 %v2386
    %v2725 = vpop.f32.mrf.mxu0
    %v2726 = vadd.f32 %v2686, %v2725
    %v2727 = vpop.f32.mrf.mxu0
    %v2728 = vpop.f32.mrf.mxu0
    %v2729 = vpop.f32.mrf.mxu0
    %2730 = vdwg.mxu0
    %vm2731 = vcmp.ge.f32.partialorder %v2726, 0.0
    %v2732 = vstv %s58
    %v2733 = vmul.f32 %v2732, %v2726
    %v2734 = vsel %vm2731, %v2726, %v2733
    %v2735 = vpack.c.bf16 %v2734, %v2734
    %v2736 = vld [vmem:[%s13] sm:$0xff]
    %v2737 = vld [vmem:[%s13 + $0x8] sm:$0xff]
    %v2738 = vld [vmem:[%s13 + $0x10] sm:$0xff]
    %v2739 = vld [vmem:[%s13 + $0x18] sm:$0xff]
    %v2740 = vld [vmem:[%s13 + $0x20] sm:$0xff]
    %v2741 = vld [vmem:[%s13 + $0x28] sm:$0xff]
    %v2742 = vld [vmem:[%s13 + $0x30] sm:$0xff]
    %v2743 = vld [vmem:[%s13 + $0x38] sm:$0xff]
    %v2744 = vld [vmem:[%s13 + $0x40] sm:$0xff]
    %v2745 = vld [vmem:[%s13 + $0x48] sm:$0xff]
    %v2746 = vld [vmem:[%s13 + $0x50] sm:$0xff]
    %v2747 = vld [vmem:[%s13 + $0x58] sm:$0xff]
    %v2748 = vld [vmem:[%s13 + $0x60] sm:$0xff]
    %v2749 = vld [vmem:[%s13 + $0x68] sm:$0xff]
    %v2750 = vld [vmem:[%s13 + $0x70] sm:$0xff]
    %v2751 = vld [vmem:[%s13 + $0x78] sm:$0xff]
    %v2752 = vld [vmem:[%s14] sm:$0x3]
    %v2754 = vlaneseq
    %v2755 = vshrl.u32 %v2754, 7
    %v2756 = vsub.s32 0, %v2755
    %v2757 = vrot.slane %v2752, %v2756
    %v2758 = vlaneseq
    %v2759 = vshrl.u32 %v2758, 7
    %v2760 = vsub.s32 1, %v2759
    %v2761 = vrot.slane %v2752, %v2760
    %v2780 = vunpack.c.l.b16 %v2736
    %v2781 = vunpack.c.h.b16 %v2736
    %v2782 = vunpack.c.l.b16 %v2737
    %v2783 = vunpack.c.h.b16 %v2737
    %v2784 = vunpack.c.l.b16 %v2738
    %v2785 = vunpack.c.h.b16 %v2738
    %v2786 = vunpack.c.l.b16 %v2739
    %v2787 = vunpack.c.h.b16 %v2739
    %v2788 = vunpack.c.l.b16 %v2740
    %v2789 = vunpack.c.h.b16 %v2740
    %v2790 = vunpack.c.l.b16 %v2741
    %v2791 = vunpack.c.h.b16 %v2741
    %v2792 = vunpack.c.l.b16 %v2742
    %v2793 = vunpack.c.h.b16 %v2742
    %v2794 = vunpack.c.l.b16 %v2743
    %v2795 = vunpack.c.h.b16 %v2743
    %v2796 = vunpack.c.l.b16 %v2744
    %v2797 = vunpack.c.h.b16 %v2744
    %v2798 = vunpack.c.l.b16 %v2745
    %v2799 = vunpack.c.h.b16 %v2745
    %v2800 = vunpack.c.l.b16 %v2746
    %v2801 = vunpack.c.h.b16 %v2746
    %v2802 = vunpack.c.l.b16 %v2747
    %v2803 = vunpack.c.h.b16 %v2747
    %v2804 = vunpack.c.l.b16 %v2748
    %v2805 = vunpack.c.h.b16 %v2748
    %v2806 = vunpack.c.l.b16 %v2749
    %v2807 = vunpack.c.h.b16 %v2749
    %v2808 = vunpack.c.l.b16 %v2750
    %v2809 = vunpack.c.h.b16 %v2750
    %v2810 = vunpack.c.l.b16 %v2751
    %v2811 = vunpack.c.h.b16 %v2751
    %v2812 = vpack.c.b16 %v2782, %v2780
    %v2813 = vpack.c.b16 %v2783, %v2781
    %v2814 = vpack.c.b16 %v2786, %v2784
    %v2815 = vpack.c.b16 %v2787, %v2785
    %v2816 = vpack.c.b16 %v2790, %v2788
    %v2817 = vpack.c.b16 %v2791, %v2789
    %v2818 = vpack.c.b16 %v2794, %v2792
    %v2819 = vpack.c.b16 %v2795, %v2793
    %v2820 = vpack.c.b16 %v2798, %v2796
    %v2821 = vpack.c.b16 %v2799, %v2797
    %v2822 = vpack.c.b16 %v2802, %v2800
    %v2823 = vpack.c.b16 %v2803, %v2801
    %v2824 = vpack.c.b16 %v2806, %v2804
    %v2825 = vpack.c.b16 %v2807, %v2805
    %v2826 = vpack.c.b16 %v2810, %v2808
    %v2827 = vpack.c.b16 %v2811, %v2809
    %2844 = vmatprep.subr.bf16.mxu0 %v2827
    %2845 = vmatpush1.bf16.msra.mxu0 %v2826
    %2846 = vmatprep.subr.bf16.mxu0 %v2825
    %2847 = vmatpush1.bf16.msra.mxu0 %v2824
    %2848 = vmatprep.subr.bf16.mxu0 %v2823
    %2849 = vmatpush1.bf16.msra.mxu0 %v2822
    %2850 = vmatprep.subr.bf16.mxu0 %v2821
    %2851 = vmatpush1.bf16.msra.mxu0 %v2820
    %2852 = vmatprep.subr.bf16.mxu0 %v2819
    %2853 = vmatpush1.bf16.msra.mxu0 %v2818
    %2854 = vmatprep.subr.bf16.mxu0 %v2817
    %2855 = vmatpush1.bf16.msra.mxu0 %v2816
    %2856 = vmatprep.subr.bf16.mxu0 %v2815
    %2857 = vmatpush1.bf16.msra.mxu0 %v2814
    %2858 = vmatprep.subr.bf16.mxu0 %v2813
    %2859 = vmatpush1.bf16.msra.mxu0 %v2812
    %2860 = vmatprep.subr.bf16.mxu0 0
    %2861 = vmatpush2.bf16.msra.mxu0 0
    %2862 = vmatprep.subr.bf16.mxu0 0
    %2863 = vmatpush2.bf16.msra.mxu0 0
    %2864 = vmatprep.subr.bf16.mxu0 0
    %2865 = vmatpush2.bf16.msra.mxu0 0
    %2866 = vmatprep.subr.bf16.mxu0 0
    %2867 = vmatpush2.bf16.msra.mxu0 0
    %2868 = vmatprep.subr.bf16.mxu0 0
    %2869 = vmatpush2.bf16.msra.mxu0 0
    %2870 = vmatprep.subr.bf16.mxu0 0
    %2871 = vmatpush2.bf16.msra.mxu0 0
    %2872 = vmatprep.subr.bf16.mxu0 0
    %2873 = vmatpush2.bf16.msra.mxu0 0
    %2874 = vmatprep.subr.bf16.mxu0 0
    %2875 = vmatpush2.bf16.msra.mxu0 0
    %2876 = vmatprep.mubr.bf16.mxu0 0
    %2877 = vmatmul.mubr.bf16.gmra.mxu0 %v2735
    %v2878 = vpop.f32.mrf.mxu0
    %v2879 = vadd.f32 %v2757, %v2878
    %v2880 = vpop.f32.mrf.mxu0
    %v2881 = vadd.f32 %v2761, %v2880
    %v2882 = vpop.f32.mrf.mxu0
    %v2883 = vpop.f32.mrf.mxu0
    %2884 = vdwg.mxu0
    %v2887 = vcombine.low %v2879, %v2881
    %v2889 = vunpack.c.l.s4 1966171168
    %v2890 = vunpack.c.0.s8 %v2889
    %v2891 = vlaneseq
    %v2892 = vshrl.u32 %v2891, 7
    %v2893 = vsub.s32 %v2890, %v2892
    %v2894 = vrot.slane %v2887, %v2893
    %v2895 = vcombine.high %v2894, %v2894
    %v2897 = vunpack.c.l.s4 1966171168
    %v2898 = vunpack.c.0.s8 %v2897
    %v2899 = vlaneseq
    %v2900 = vshrl.u32 %v2899, 7
    %v2901 = vsub.s32 %v2898, %v2900
    %v2902 = vrot.slane %v2894, %v2901
    %v2904 = vunpack.c.l.s4 1966171168
    %v2905 = vunpack.c.0.s8 %v2904
    %v2906 = vlaneseq
    %v2907 = vshrl.u32 %v2906, 7
    %v2908 = vsub.s32 %v2905, %v2907
    %v2909 = vrot.slane %v2895, %v2908
    %v2912 = vlaneseq
    %vm2913 = vcmp.ge.s32.totalorder %v2912, 0
    %vm2914 = vcmp.lt.s32.totalorder %v2912, 256
    %vm2915 = vmand %vm2913, %vm2914
    %2916 = vst.msk [vmem:[%s17] sm:$0x3] %vm2915, %v2902
    %2917 = vst.msk [vmem:[%s17 + $0x2] sm:$0x3] %vm2915, %v2909
    %v2918 = vld [vmem:[%s9] sm:$0xf]
    %v2919 = vld [vmem:[%s9 + $0x4] sm:$0xf]
    %v2920 = vld [vmem:[%s9 + $0x8] sm:$0xf]
    %v2921 = vld [vmem:[%s9 + $0xc] sm:$0xf]
    %v2922 = vld [vmem:[%s9 + $0x10] sm:$0xf]
    %v2923 = vld [vmem:[%s9 + $0x14] sm:$0xf]
    %v2924 = vld [vmem:[%s9 + $0x18] sm:$0xf]
    %v2925 = vld [vmem:[%s9 + $0x1c] sm:$0xf]
    %v2926 = vld [vmem:[%s9 + $0x20] sm:$0xf]
    %v2927 = vld [vmem:[%s9 + $0x24] sm:$0xf]
    %v2928 = vld [vmem:[%s9 + $0x28] sm:$0xf]
    %v2929 = vld [vmem:[%s9 + $0x2c] sm:$0xf]
    %v2930 = vld [vmem:[%s9 + $0x30] sm:$0xf]
    %v2931 = vld [vmem:[%s9 + $0x34] sm:$0xf]
    %v2932 = vld [vmem:[%s9 + $0x38] sm:$0xf]
    %v2933 = vld [vmem:[%s9 + $0x3c] sm:$0xf]
    %v2934 = vld [vmem:[%s10] sm:$0x1]
    %v2936 = vlaneseq
    %v2937 = vshrl.u32 %v2936, 7
    %v2938 = vsub.s32 0, %v2937
    %v2939 = vrot.slane %v2934, %v2938
    %v2957 = vunpack.c.l.b16 %v2918
    %v2958 = vunpack.c.l.b16 %v2919
    %v2959 = vunpack.c.l.b16 %v2920
    %v2960 = vunpack.c.l.b16 %v2921
    %v2961 = vunpack.c.l.b16 %v2922
    %v2962 = vunpack.c.l.b16 %v2923
    %v2963 = vunpack.c.l.b16 %v2924
    %v2964 = vunpack.c.l.b16 %v2925
    %v2965 = vunpack.c.l.b16 %v2926
    %v2966 = vunpack.c.l.b16 %v2927
    %v2967 = vunpack.c.l.b16 %v2928
    %v2968 = vunpack.c.l.b16 %v2929
    %v2969 = vunpack.c.l.b16 %v2930
    %v2970 = vunpack.c.l.b16 %v2931
    %v2971 = vunpack.c.l.b16 %v2932
    %v2972 = vunpack.c.l.b16 %v2933
    %v2973 = vpack.c.b16 %v2958, %v2957
    %v2974 = vpack.c.b16 %v2960, %v2959
    %v2975 = vpack.c.b16 %v2962, %v2961
    %v2976 = vpack.c.b16 %v2964, %v2963
    %v2977 = vpack.c.b16 %v2966, %v2965
    %v2978 = vpack.c.b16 %v2968, %v2967
    %v2979 = vpack.c.b16 %v2970, %v2969
    %v2980 = vpack.c.b16 %v2972, %v2971
    %2989 = vmatprep.subr.bf16.mxu0 0
    %2990 = vmatpush1.bf16.msra.mxu0 %v2980
    %2991 = vmatprep.subr.bf16.mxu0 0
    %2992 = vmatpush1.bf16.msra.mxu0 %v2979
    %2993 = vmatprep.subr.bf16.mxu0 0
    %2994 = vmatpush1.bf16.msra.mxu0 %v2978
    %2995 = vmatprep.subr.bf16.mxu0 0
    %2996 = vmatpush1.bf16.msra.mxu0 %v2977
    %2997 = vmatprep.subr.bf16.mxu0 0
    %2998 = vmatpush1.bf16.msra.mxu0 %v2976
    %2999 = vmatprep.subr.bf16.mxu0 0
    %3000 = vmatpush1.bf16.msra.mxu0 %v2975
    %3001 = vmatprep.subr.bf16.mxu0 0
    %3002 = vmatpush1.bf16.msra.mxu0 %v2974
    %3003 = vmatprep.subr.bf16.mxu0 0
    %3004 = vmatpush1.bf16.msra.mxu0 %v2973
    %3005 = vmatprep.subr.bf16.mxu0 0
    %3006 = vmatpush2.bf16.msra.mxu0 0
    %3007 = vmatprep.subr.bf16.mxu0 0
    %3008 = vmatpush2.bf16.msra.mxu0 0
    %3009 = vmatprep.subr.bf16.mxu0 0
    %3010 = vmatpush2.bf16.msra.mxu0 0
    %3011 = vmatprep.subr.bf16.mxu0 0
    %3012 = vmatpush2.bf16.msra.mxu0 0
    %3013 = vmatprep.subr.bf16.mxu0 0
    %3014 = vmatpush2.bf16.msra.mxu0 0
    %3015 = vmatprep.subr.bf16.mxu0 0
    %3016 = vmatpush2.bf16.msra.mxu0 0
    %3017 = vmatprep.subr.bf16.mxu0 0
    %3018 = vmatpush2.bf16.msra.mxu0 0
    %3019 = vmatprep.subr.bf16.mxu0 0
    %3020 = vmatpush2.bf16.msra.mxu0 0
    %3021 = vmatprep.mubr.bf16.mxu0 0
    %3022 = vmatmul.mubr.bf16.gmra.mxu0 %v2735
    %v3023 = vpop.f32.mrf.mxu0
    %v3024 = vadd.f32 %v2939, %v3023
    %v3025 = vpop.f32.mrf.mxu0
    %v3026 = vpop.f32.mrf.mxu0
    %v3027 = vpop.f32.mrf.mxu0
    %3028 = vdwg.mxu0
    %vm3029 = vcmp.ge.f32.partialorder %v3024, 0.0
    %v3030 = vmul.f32 %v2732, %v3024
    %v3031 = vsel %vm3029, %v3024, %v3030
    %v3032 = vpack.c.bf16 %v3031, %v3031
    %v3033 = vld [vmem:[%s11] sm:$0xf]
    %v3034 = vld [vmem:[%s11 + $0x4] sm:$0xf]
    %v3035 = vld [vmem:[%s11 + $0x8] sm:$0xf]
    %v3036 = vld [vmem:[%s11 + $0xc] sm:$0xf]
    %v3037 = vld [vmem:[%s11 + $0x10] sm:$0xf]
    %v3038 = vld [vmem:[%s11 + $0x14] sm:$0xf]
    %v3039 = vld [vmem:[%s11 + $0x18] sm:$0xf]
    %v3040 = vld [vmem:[%s11 + $0x1c] sm:$0xf]
    %v3041 = vld [vmem:[%s11 + $0x20] sm:$0xf]
    %v3042 = vld [vmem:[%s11 + $0x24] sm:$0xf]
    %v3043 = vld [vmem:[%s11 + $0x28] sm:$0xf]
    %v3044 = vld [vmem:[%s11 + $0x2c] sm:$0xf]
    %v3045 = vld [vmem:[%s11 + $0x30] sm:$0xf]
    %v3046 = vld [vmem:[%s11 + $0x34] sm:$0xf]
    %v3047 = vld [vmem:[%s11 + $0x38] sm:$0xf]
    %v3048 = vld [vmem:[%s11 + $0x3c] sm:$0xf]
    %v3049 = vld [vmem:[%s12] sm:$0x1]
    %v3051 = vlaneseq
    %v3052 = vshrl.u32 %v3051, 7
    %v3053 = vsub.s32 0, %v3052
    %v3054 = vrot.slane %v3049, %v3053
    %v3072 = vunpack.c.l.b16 %v3033
    %v3073 = vunpack.c.l.b16 %v3034
    %v3074 = vunpack.c.l.b16 %v3035
    %v3075 = vunpack.c.l.b16 %v3036
    %v3076 = vunpack.c.l.b16 %v3037
    %v3077 = vunpack.c.l.b16 %v3038
    %v3078 = vunpack.c.l.b16 %v3039
    %v3079 = vunpack.c.l.b16 %v3040
    %v3080 = vunpack.c.l.b16 %v3041
    %v3081 = vunpack.c.l.b16 %v3042
    %v3082 = vunpack.c.l.b16 %v3043
    %v3083 = vunpack.c.l.b16 %v3044
    %v3084 = vunpack.c.l.b16 %v3045
    %v3085 = vunpack.c.l.b16 %v3046
    %v3086 = vunpack.c.l.b16 %v3047
    %v3087 = vunpack.c.l.b16 %v3048
    %v3088 = vpack.c.b16 %v3073, %v3072
    %v3089 = vpack.c.b16 %v3075, %v3074
    %v3090 = vpack.c.b16 %v3077, %v3076
    %v3091 = vpack.c.b16 %v3079, %v3078
    %v3092 = vpack.c.b16 %v3081, %v3080
    %v3093 = vpack.c.b16 %v3083, %v3082
    %v3094 = vpack.c.b16 %v3085, %v3084
    %v3095 = vpack.c.b16 %v3087, %v3086
    %3104 = vmatprep.subr.bf16.mxu0 0
    %3105 = vmatpush1.bf16.msra.mxu0 %v3095
    %3106 = vmatprep.subr.bf16.mxu0 0
    %3107 = vmatpush1.bf16.msra.mxu0 %v3094
    %3108 = vmatprep.subr.bf16.mxu0 0
    %3109 = vmatpush1.bf16.msra.mxu0 %v3093
    %3110 = vmatprep.subr.bf16.mxu0 0
    %3111 = vmatpush1.bf16.msra.mxu0 %v3092
    %3112 = vmatprep.subr.bf16.mxu0 0
    %3113 = vmatpush1.bf16.msra.mxu0 %v3091
    %3114 = vmatprep.subr.bf16.mxu0 0
    %3115 = vmatpush1.bf16.msra.mxu0 %v3090
    %3116 = vmatprep.subr.bf16.mxu0 0
    %3117 = vmatpush1.bf16.msra.mxu0 %v3089
    %3118 = vmatprep.subr.bf16.mxu0 0
    %3119 = vmatpush1.bf16.msra.mxu0 %v3088
    %3120 = vmatprep.subr.bf16.mxu0 0
    %3121 = vmatpush2.bf16.msra.mxu0 0
    %3122 = vmatprep.subr.bf16.mxu0 0
    %3123 = vmatpush2.bf16.msra.mxu0 0
    %3124 = vmatprep.subr.bf16.mxu0 0
    %3125 = vmatpush2.bf16.msra.mxu0 0
    %3126 = vmatprep.subr.bf16.mxu0 0
    %3127 = vmatpush2.bf16.msra.mxu0 0
    %3128 = vmatprep.subr.bf16.mxu0 0
    %3129 = vmatpush2.bf16.msra.mxu0 0
    %3130 = vmatprep.subr.bf16.mxu0 0
    %3131 = vmatpush2.bf16.msra.mxu0 0
    %3132 = vmatprep.subr.bf16.mxu0 0
    %3133 = vmatpush2.bf16.msra.mxu0 0
    %3134 = vmatprep.subr.bf16.mxu0 0
    %3135 = vmatpush2.bf16.msra.mxu0 0
    %3136 = vmatprep.mubr.bf16.mxu0 0
    %3137 = vmatmul.mubr.bf16.gmra.mxu0 %v3032
    %v3138 = vpop.f32.mrf.mxu0
    %v3139 = vadd.f32 %v3054, %v3138
    %v3140 = vpop.f32.mrf.mxu0
    %v3141 = vpop.f32.mrf.mxu0
    %v3142 = vpop.f32.mrf.mxu0
    %3143 = vdwg.mxu0
    %v3144 = vlaneseq
    %v3145 = vand.u32 %v3144, 127
    %vm3146 = vcmp.lt.s32.totalorder %v3145, 50
    %v3147 = vsel %vm3146, %v3139, -1e+30
    %vm3148 = vcmask 1041408
    %v3149 = vsel %vm3148, %v3147, -inf
    %3150 = vmax.xlane.f32.xlu0 %v3149
    %v3151 = vpop.xlane.xlu0 %3150
    %v3152 = vsub.f32 %v3147, %v3151
    %v3153 = vmul.f32 %v3152, 1.442695
    %v3154 = vpow.pop %v3153
    %v3155 = vsel %vm3148, %v3154, 0.0
    %3156 = vadd.xlane.f32.xlu0 %v3155
    %v3157 = vpop.xlane.xlu0 %3156
    %v3158 = vlog2.pop %v3157
    %v3159 = vmul.f32 %v3158, 0.6931472
    %v3160 = vsub.f32 %v3152, %v3159
    %3161 = vst [vmem:[#allocation3] sm:$0x3] %v3160
    // Predicated region
    $region66: #{tsdnet_forward.2} parent=1 // pred_check
      _
    $region67: #{tsdnet_forward.2} parent=1 // pred_check_branch
      %3163 = sbr.rel (0) target = $region69
    $region68: #{tsdnet_forward.2} parent=1 // pred_region
      %s3165 = ssub.s32 32, 32
      %3166 = vsyncadd [#allocation4], %s3165
      %s3168 = sshll.u32 [#allocation3], 4
      %s3169 = int_to_ptr.vmem [resolvable:$true] %s3168
      %3171 = dma.vmem_to_hbm [thread:$0]  %s3169, 32, %s16, [#allocation4]
    $region69: #{tsdnet_forward.2} parent=1 // pred_fallthru
      _
    // Predicated region
    $region70: #{tsdnet_forward.2} parent=1 // pred_check
      _
    $region71: #{tsdnet_forward.2} parent=1 // pred_check_branch
      %3173 = sbr.rel (0) target = $region73
    $region72: #{tsdnet_forward.2} parent=1 // pred_region
      _
    $region73: #{tsdnet_forward.2} parent=1 // pred_fallthru
      _
    // Predicated region
    $region74: #{tsdnet_forward.2} parent=1 // pred_check
      _
    $region75: #{tsdnet_forward.2} parent=1 // pred_check_branch
      %3175 = sbr.rel (0) target = $region77
    $region76: #{tsdnet_forward.2} parent=1 // pred_region
      %3176 = dma.done [#allocation4], 32
    $region77: #{tsdnet_forward.2} parent=1 // pred_fallthru
      _
    // Predicated region
    $region78: #{tsdnet_forward.2} parent=1 // pred_check
      _
    $region79: #{tsdnet_forward.2} parent=1 // pred_check_branch
      %3178 = sbr.rel (0) target = $region81
    $region80: #{tsdnet_forward.2} parent=1 // pred_region
      _
    $region81: #{tsdnet_forward.2} parent=1 // pred_fallthru
      _
    %3179 = vsyncpa [#allocation4], 1

// kernel: tsdnet_forward.3
$region0: #{tsdnet_forward.3}
  #allocation0 [shape = 'u32[]', space=smem, size = 0x4, offset = 0x4, fixed_abs, tag = 'smem constant byte address 0x4 - core index']
  #allocation1 [shape = 'u32[144,128]{1,0:T(1,128)}', space=vmem, size = 0x12000, scoped, tag = 'internal scratch']
  #allocation2 [shape = 'f32[1,1]{1,0:T(1,128)S(6)}', space=smem, size = 0x200, scoped, tag = 'scoped memory for tsdnet_forward.3']
  %s0 = inlined_call_operand.vmem [shape: bf16[2,24,1024], index: 0, kind: input, shape index: {}]
  %s1 = inlined_call_operand.vmem [shape: f32[2,1,256], index: 1, kind: input, shape index: {}]
  %s2 = inlined_call_operand.vmem [shape: bf16[1024,128], index: 2, kind: input, shape index: {}]
  %s3 = inlined_call_operand.vmem [shape: f32[1,128], index: 3, kind: input, shape index: {}]
  %s4 = inlined_call_operand.vmem [shape: bf16[128,256], index: 4, kind: input, shape index: {}]
  %s5 = inlined_call_operand.vmem [shape: f32[1,256], index: 5, kind: input, shape index: {}]
  %s6 = inlined_call_operand.<no memory space> [shape: f32[1,1], index: 6, kind: input, shape index: {}]
  %s7 = inlined_call_operand.vmem [shape: f32[2,24,1], index: 7, kind: output, shape index: {}]
  %s8 = sld [smem:[#allocation0]]
  $region61: #{tsdnet_forward.3} parent=0
    _
  %s10 = ssub.s32 1, %s8
  %s11 = scalar_select 0, %s10, %s8
  %12 = sst [smem:[#allocation2]] %s6
  loop: start=0, step=1, limit=4
  $region2: #{tsdnet_forward.3} parent=0 // loop_pre_header
    _
  $region3: #{tsdnet_forward.3} parent=0 // loop_header
    %s14 = sphi 0, %s18
    %p15 = scmp.ge.s32.totalorder %s14, 4
    %s21 = sphi 0, %s33
    %s22 = sphi 0, %s29
    %s23 = sphi 0, %s21
    %s24 = sphi 0, %s22
    %s25 = sphi 0, %s23
    %s26 = sphi 0, %s24
    %s38 = sphi 0, %s40
    %s41 = sphi 0, %s38
    %s42 = sphi 0, %s41
    %s58 = sphi 0, %s42
    %s64 = sphi 0, %s66
    %s67 = sphi 0, %s64
    %s68 = sphi 0, %s67
    %s84 = sphi 0, %s68
    %s88 = sphi 0, %s88
    %s90 = sphi 0, %s88
    %s91 = sphi 0, %s90
    %s105 = sphi 0, %s91
    %s109 = sphi 0, %s109
    %s111 = sphi 0, %s109
    %s112 = sphi 0, %s111
    %s126 = sphi 0, %s112
    %s130 = sphi 0, %s130
    %s132 = sphi 0, %s130
    %s133 = sphi 0, %s132
    %s147 = sphi 0, %s133
    %s151 = sphi 0, %s151
    %s153 = sphi 0, %s151
    %s154 = sphi 0, %s153
    %s168 = sphi 0, %s154
    %s172 = sphi 0, %s172
    %s174 = sphi 0, %s172
    %s175 = sphi 0, %s174
    %s189 = sphi 0, %s175
    %s197 = sphi 0, %s199
    %s200 = sphi 0, %s197
    %s201 = sphi 0, %s200
    %s217 = sphi 0, %s201
  $region4: #{tsdnet_forward.3} parent=0 // loop_header_branch
    %17 = sbr.rel (%p15) target = $region8
  $region5: #{tsdnet_forward.3} parent=0 // loop_body
    %s19 = ssub.s32 %s14, 1
    %s20 = ssub.s32 %s14, 2
    %s27 = sadd.s32 1, %s22
    %p28 = scmp.ge.s32.totalorder %s27, 1
    %s29 = scalar_select %p28, 0, %s27
    %s30 = sadd.s32 1, %s21
    %s31 = scalar_select %p28, %s30, %s21
    %p32 = scmp.ge.s32.totalorder %s31, 2
    %s33 = scalar_select %p32, 0, %s31
    %s34 = ssub.s32 %s21, %s33
    %s35 = ssub.s32 %s22, %s29
    %s36 = sor.u32 %s34, %s35
    %p37 = scmp.eq.s32.totalorder %s36, 0
    %s39 = sadd.s32 %s38, 1
    %s40 = scalar_select %p37, %s38, %s39
    %p43 = pneg %p37
    %p44 = scmp.eq.s32.totalorder %s14, 1
    %p45 = por %p43, %p44
    %p46 = scmp.ne.s32.totalorder %s38, %s41
    %p47 = scmp.eq.s32.totalorder %s14, 0
    %p48 = por %p46, %p47
    %p49 = scmp.ne.s32.totalorder %s38, %s41
    %p50 = scmp.eq.s32.totalorder %s19, 1
    %p51 = por %p49, %p50
    %p52 = scmp.ne.s32.totalorder %s41, %s42
    %p53 = scmp.eq.s32.totalorder %s19, 0
    %p54 = por %p52, %p53
    %p55 = scmp.ne.s32.totalorder %s41, %s42
    %p56 = scmp.eq.s32.totalorder %s20, 1
    %p57 = por %p55, %p56
    %p59 = scmp.ne.s32.totalorder %s42, %s58
    %p60 = scmp.eq.s32.totalorder %s20, 0
    %p61 = por %p59, %p60
    %s62 = ssub.s32 %s21, %s33
    %p63 = scmp.eq.s32.totalorder %s62, 0
    %s65 = sadd.s32 %s64, 1
    %s66 = scalar_select %p63, %s64, %s65
    %p69 = pneg %p63
    %p70 = scmp.eq.s32.totalorder %s14, 1
    %p71 = por %p69, %p70
    %p72 = scmp.ne.s32.totalorder %s64, %s67
    %p73 = scmp.eq.s32.totalorder %s14, 0
    %p74 = por %p72, %p73
    %p75 = scmp.ne.s32.totalorder %s64, %s67
    %p76 = scmp.eq.s32.totalorder %s19, 1
    %p77 = por %p75, %p76
    %p78 = scmp.ne.s32.totalorder %s67, %s68
    %p79 = scmp.eq.s32.totalorder %s19, 0
    %p80 = por %p78, %p79
    %p81 = scmp.ne.s32.totalorder %s67, %s68
    %p82 = scmp.eq.s32.totalorder %s20, 1
    %p83 = por %p81, %p82
    %p85 = scmp.ne.s32.totalorder %s68, %s84
    %p86 = scmp.eq.s32.totalorder %s20, 0
    %p87 = por %p85, %p86
    %s89 = sadd.s32 %s88, 1
    %p92 = scmp.eq.s32.totalorder %s14, 1
    %p93 = scmp.ne.s32.totalorder %s88, %s90
    %p94 = scmp.eq.s32.totalorder %s14, 0
    %p95 = por %p93, %p94
    %p96 = scmp.ne.s32.totalorder %s88, %s90
    %p97 = scmp.eq.s32.totalorder %s19, 1
    %p98 = por %p96, %p97
    %p99 = scmp.ne.s32.totalorder %s90, %s91
    %p100 = scmp.eq.s32.totalorder %s19, 0
    %p101 = por %p99, %p100
    %p102 = scmp.ne.s32.totalorder %s90, %s91
    %p103 = scmp.eq.s32.totalorder %s20, 1
    %p104 = por %p102, %p103
    %p106 = scmp.ne.s32.totalorder %s91, %s105
    %p107 = scmp.eq.s32.totalorder %s20, 0
    %p108 = por %p106, %p107
    %s110 = sadd.s32 %s109, 1
    %p113 = scmp.eq.s32.totalorder %s14, 1
    %p114 = scmp.ne.s32.totalorder %s109, %s111
    %p115 = scmp.eq.s32.totalorder %s14, 0
    %p116 = por %p114, %p115
    %p117 = scmp.ne.s32.totalorder %s109, %s111
    %p118 = scmp.eq.s32.totalorder %s19, 1
    %p119 = por %p117, %p118
    %p120 = scmp.ne.s32.totalorder %s111, %s112
    %p121 = scmp.eq.s32.totalorder %s19, 0
    %p122 = por %p120, %p121
    %p123 = scmp.ne.s32.totalorder %s111, %s112
    %p124 = scmp.eq.s32.totalorder %s20, 1
    %p125 = por %p123, %p124
    %p127 = scmp.ne.s32.totalorder %s112, %s126
    %p128 = scmp.eq.s32.totalorder %s20, 0
    %p129 = por %p127, %p128
    %s131 = sadd.s32 %s130, 1
    %p134 = scmp.eq.s32.totalorder %s14, 1
    %p135 = scmp.ne.s32.totalorder %s130, %s132
    %p136 = scmp.eq.s32.totalorder %s14, 0
    %p137 = por %p135, %p136
    %p138 = scmp.ne.s32.totalorder %s130, %s132
    %p139 = scmp.eq.s32.totalorder %s19, 1
    %p140 = por %p138, %p139
    %p141 = scmp.ne.s32.totalorder %s132, %s133
    %p142 = scmp.eq.s32.totalorder %s19, 0
    %p143 = por %p141, %p142
    %p144 = scmp.ne.s32.totalorder %s132, %s133
    %p145 = scmp.eq.s32.totalorder %s20, 1
    %p146 = por %p144, %p145
    %p148 = scmp.ne.s32.totalorder %s133, %s147
    %p149 = scmp.eq.s32.totalorder %s20, 0
    %p150 = por %p148, %p149
    %s152 = sadd.s32 %s151, 1
    %p155 = scmp.eq.s32.totalorder %s14, 1
    %p156 = scmp.ne.s32.totalorder %s151, %s153
    %p157 = scmp.eq.s32.totalorder %s14, 0
    %p158 = por %p156, %p157
    %p159 = scmp.ne.s32.totalorder %s151, %s153
    %p160 = scmp.eq.s32.totalorder %s19, 1
    %p161 = por %p159, %p160
    %p162 = scmp.ne.s32.totalorder %s153, %s154
    %p163 = scmp.eq.s32.totalorder %s19, 0
    %p164 = por %p162, %p163
    %p165 = scmp.ne.s32.totalorder %s153, %s154
    %p166 = scmp.eq.s32.totalorder %s20, 1
    %p167 = por %p165, %p166
    %p169 = scmp.ne.s32.totalorder %s154, %s168
    %p170 = scmp.eq.s32.totalorder %s20, 0
    %p171 = por %p169, %p170
    %s173 = sadd.s32 %s172, 1
    %p176 = scmp.eq.s32.totalorder %s14, 1
    %p177 = scmp.ne.s32.totalorder %s172, %s174
    %p178 = scmp.eq.s32.totalorder %s14, 0
    %p179 = por %p177, %p178
    %p180 = scmp.ne.s32.totalorder %s172, %s174
    %p181 = scmp.eq.s32.totalorder %s19, 1
    %p182 = por %p180, %p181
    %p183 = scmp.ne.s32.totalorder %s174, %s175
    %p184 = scmp.eq.s32.totalorder %s19, 0
    %p185 = por %p183, %p184
    %p186 = scmp.ne.s32.totalorder %s174, %s175
    %p187 = scmp.eq.s32.totalorder %s20, 1
    %p188 = por %p186, %p187
    %p190 = scmp.ne.s32.totalorder %s175, %s189
    %p191 = scmp.eq.s32.totalorder %s20, 0
    %p192 = por %p190, %p191
    %s193 = ssub.s32 %s21, %s33
    %s194 = ssub.s32 %s22, %s29
    %s195 = sor.u32 %s193, %s194
    %p196 = scmp.eq.s32.totalorder %s195, 0
    %s198 = sadd.s32 %s197, 1
    %s199 = scalar_select %p196, %s197, %s198
    %p202 = pneg %p196
    %p203 = scmp.eq.s32.totalorder %s14, 1
    %p204 = por %p202, %p203
    %p205 = scmp.ne.s32.totalorder %s197, %s200
    %p206 = scmp.eq.s32.totalorder %s14, 0
    %p207 = por %p205, %p206
    %p208 = scmp.ne.s32.totalorder %s197, %s200
    %p209 = scmp.eq.s32.totalorder %s19, 1
    %p210 = por %p208, %p209
    %p211 = scmp.ne.s32.totalorder %s200, %s201
    %p212 = scmp.eq.s32.totalorder %s19, 0
    %p213 = por %p211, %p212
    %p214 = scmp.ne.s32.totalorder %s200, %s201
    %p215 = scmp.eq.s32.totalorder %s20, 1
    %p216 = por %p214, %p215
    %p218 = scmp.ne.s32.totalorder %s201, %s217
    %p219 = scmp.eq.s32.totalorder %s20, 0
    %p220 = por %p218, %p219
    %p221 = scmp.le.s32.totalorder 1, %s14
    %p222 = scmp.lt.s32.totalorder %s14, 3
    %p223 = pnand %p221, %p222
    %p224 = pneg %p223
    // Predicated region
    $region9: #{tsdnet_forward.3} parent=5 // pred_check
      _
    $region10: #{tsdnet_forward.3} parent=5 // pred_check_branch
      %226 = sbr.rel (%p223) target = $region12
    $region11: #{tsdnet_forward.3} parent=5 // pred_region
      %s227 = ssub.s32 %s14, 1
      // Predicated region
      $region13: #{tsdnet_forward.3} parent=11 // pred_check
        %p228 = pneg %p101
      $region14: #{tsdnet_forward.3} parent=11 // pred_check_branch
        %230 = sbr.rel (%p228) target = $region16
      $region15: #{tsdnet_forward.3} parent=11 // pred_region
        _
      $region16: #{tsdnet_forward.3} parent=11 // pred_fallthru
        _
      // Predicated region
      $region17: #{tsdnet_forward.3} parent=11 // pred_check
        %p231 = pneg %p122
      $region18: #{tsdnet_forward.3} parent=11 // pred_check_branch
        %233 = sbr.rel (%p231) target = $region20
      $region19: #{tsdnet_forward.3} parent=11 // pred_region
        _
      $region20: #{tsdnet_forward.3} parent=11 // pred_fallthru
        _
      // Predicated region
      $region21: #{tsdnet_forward.3} parent=11 // pred_check
        %p234 = pneg %p143
      $region22: #{tsdnet_forward.3} parent=11 // pred_check_branch
        %236 = sbr.rel (%p234) target = $region24
      $region23: #{tsdnet_forward.3} parent=11 // pred_region
        _
      $region24: #{tsdnet_forward.3} parent=11 // pred_fallthru
        _
      // Predicated region
      $region25: #{tsdnet_forward.3} parent=11 // pred_check
        %p237 = pneg %p164
      $region26: #{tsdnet_forward.3} parent=11 // pred_check_branch
        %239 = sbr.rel (%p237) target = $region28
      $region27: #{tsdnet_forward.3} parent=11 // pred_region
        _
      $region28: #{tsdnet_forward.3} parent=11 // pred_fallthru
        _
      // Predicated region
      $region29: #{tsdnet_forward.3} parent=11 // pred_check
        %p240 = pneg %p185
      $region30: #{tsdnet_forward.3} parent=11 // pred_check_branch
        %242 = sbr.rel (%p240) target = $region32
      $region31: #{tsdnet_forward.3} parent=11 // pred_region
        _
      $region32: #{tsdnet_forward.3} parent=11 // pred_fallthru
        _
    $region12: #{tsdnet_forward.3} parent=5 // pred_fallthru
      _
    %p243 = scmp.lt.s32.totalorder %s14, 2
    // Predicated region
    $region33: #{tsdnet_forward.3} parent=5 // pred_check
      %p244 = pneg %p243
    $region34: #{tsdnet_forward.3} parent=5 // pred_check_branch
      %246 = sbr.rel (%p244) target = $region36
    $region35: #{tsdnet_forward.3} parent=5 // pred_region
      // Predicated region
      $region37: #{tsdnet_forward.3} parent=35 // pred_check
        %p247 = pneg %p48
      $region38: #{tsdnet_forward.3} parent=35 // pred_check_branch
        %249 = sbr.rel (%p247) target = $region40
      $region39: #{tsdnet_forward.3} parent=35 // pred_region
        %s250 = smul.u32 3, %s22
        %p251 = scmp.lt.s32.totalorder %s21, 1
        %s252 = scalar_select %p251, %s21, 1
        %p253 = scmp.lt.s32.totalorder %s250, 2
        %s254 = scalar_select %p253, %s250, 2
        %s255 = smul.addr %s254, 8
        %s256 = smul.addr %s252, 24
        %s257 = sadd.s32 %s255, %s256
        %s258 = smul.addr %s257, 4
        %s259 = scalar_lea.vmem %s0, %s258
        %s260 = smul.u32 3, %s22
      $region40: #{tsdnet_forward.3} parent=35 // pred_fallthru
        _
      // Predicated region
      $region41: #{tsdnet_forward.3} parent=35 // pred_check
        %p261 = pneg %p74
      $region42: #{tsdnet_forward.3} parent=35 // pred_check_branch
        %263 = sbr.rel (%p261) target = $region44
      $region43: #{tsdnet_forward.3} parent=35 // pred_region
        %p264 = scmp.lt.s32.totalorder %s21, 1
        %s265 = scalar_select %p264, %s21, 1
        %s266 = smul.addr %s265, 2
        %s267 = scalar_lea.vmem %s1, %s266
      $region44: #{tsdnet_forward.3} parent=35 // pred_fallthru
        _
    $region36: #{tsdnet_forward.3} parent=5 // pred_fallthru
      _
    %p268 = scmp.le.s32.totalorder 1, %s14
    %p269 = scmp.lt.s32.totalorder %s14, 3
    %p270 = pnand %p268, %p269
    %p271 = pneg %p270
    // Predicated region
    $region45: #{tsdnet_forward.3} parent=5 // pred_check
      _
    $region46: #{tsdnet_forward.3} parent=5 // pred_check_branch
      %273 = sbr.rel (%p270) target = $region48
    $region47: #{tsdnet_forward.3} parent=5 // pred_region
      %s274 = ssub.s32 %s14, 1
      %s275 = smul.u32 3, %s24
      %p276 = scmp.lt.s32.totalorder %s23, 1
      %s277 = scalar_select %p276, %s23, 1
      %p278 = scmp.lt.s32.totalorder %s275, 2
      %s279 = scalar_select %p278, %s275, 2
      %s280 = smul.addr %s279, 8
      %s281 = smul.addr %s277, 24
      %s282 = sadd.s32 %s280, %s281
      %s283 = smul.addr %s282, 4
      %s284 = scalar_lea.vmem %s0, %s283
      %p285 = pneg %p54
      %p286 = pneg %p51
      %p287 = scmp.lt.s32.totalorder %s23, 1
      %s288 = scalar_select %p287, %s23, 1
      %s289 = smul.addr %s288, 2
      %s290 = scalar_lea.vmem %s1, %s289
      %p291 = pneg %p80
      %p292 = pneg %p77
      %p293 = pneg %p101
      %p294 = pneg %p98
      %p295 = pneg %p122
      %p296 = pneg %p119
      %p297 = pneg %p143
      %p298 = pneg %p140
      %p299 = pneg %p164
      %p300 = pneg %p161
      %p301 = pneg %p185
      %p302 = pneg %p182
      %p303 = pneg %p213
      %p304 = pneg %p210
      %s305 = smul.u32 3, %s24
      %p306 = scmp.lt.s32.totalorder %s23, 1
      %s307 = scalar_select %p306, %s23, 1
      %p308 = scmp.lt.s32.totalorder %s305, 2
      %s309 = scalar_select %p308, %s305, 2
      %s310 = smul.addr %s307, 3
      %s311 = sadd.s32 %s309, %s310
      %s312 = smul.addr %s311, 8
      %s313 = scalar_lea.vmem %s7, %s312
      %s314 = smul.u32 3, %s24
      %p315 = scmp.lt.s32.totalorder %s23, 1
      %s316 = scalar_select %p315, %s23, 1
      %p317 = scmp.lt.s32.totalorder %s314, 2
      %s318 = scalar_select %p317, %s314, 2
      %s319 = smul.addr %s318, 8
      %s320 = smul.addr %s316, 24
      %s321 = sadd.s32 %s319, %s320
      %s322 = smul.addr %s321, 4
      %s323 = scalar_lea.vmem %s0, %s322
      %s324 = smul.u32 3, %s24
      %p325 = scmp.lt.s32.totalorder %s23, 1
      %s326 = scalar_select %p325, %s23, 1
      %s327 = smul.addr %s326, 2
      %s328 = scalar_lea.vmem %s1, %s327
      %s329 = smul.u32 3, %s24
      %p330 = scmp.lt.s32.totalorder %s23, 1
      %s331 = scalar_select %p330, %s23, 1
      %p332 = scmp.lt.s32.totalorder %s329, 2
      %s333 = scalar_select %p332, %s329, 2
      %s334 = smul.addr %s331, 3
      %s335 = sadd.s32 %s333, %s334
      %s336 = smul.addr %s335, 8
      %s337 = scalar_lea.vmem %s7, %s336
      %s338 = smul.u32 3, %s24
      %v340 = vld [vmem:[%s323] sm:$0xff]
      %v341 = vld [vmem:[%s323 + $0x8] sm:$0xff]
      %v342 = vld [vmem:[%s323 + $0x10] sm:$0xff]
      %v343 = vld [vmem:[%s323 + $0x18] sm:$0xff]
      %v344 = vld [vmem:[%s323 + $0x20] sm:$0xff]
      %v345 = vld [vmem:[%s323 + $0x28] sm:$0xff]
      %v346 = vld [vmem:[%s323 + $0x30] sm:$0xff]
      %v347 = vld [vmem:[%s323 + $0x38] sm:$0xff]
      %v348 = vld [vmem:[%s323 + $0x40] sm:$0xff]
      %v349 = vld [vmem:[%s323 + $0x48] sm:$0xff]
      %v350 = vld [vmem:[%s323 + $0x50] sm:$0xff]
      %v351 = vld [vmem:[%s323 + $0x58] sm:$0xff]
      %v352 = vld [vmem:[%s2] sm:$0xf]
      %v353 = vld [vmem:[%s2 + $0x4] sm:$0xf]
      %v354 = vld [vmem:[%s2 + $0x8] sm:$0xf]
      %v355 = vld [vmem:[%s2 + $0xc] sm:$0xf]
      %v356 = vld [vmem:[%s2 + $0x10] sm:$0xf]
      %v357 = vld [vmem:[%s2 + $0x14] sm:$0xf]
      %v358 = vld [vmem:[%s2 + $0x18] sm:$0xf]
      %v359 = vld [vmem:[%s2 + $0x1c] sm:$0xf]
      %v360 = vld [vmem:[%s2 + $0x20] sm:$0xf]
      %v361 = vld [vmem:[%s2 + $0x24] sm:$0xf]
      %v362 = vld [vmem:[%s2 + $0x28] sm:$0xf]
      %v363 = vld [vmem:[%s2 + $0x2c] sm:$0xf]
      %v364 = vld [vmem:[%s2 + $0x30] sm:$0xf]
      %v365 = vld [vmem:[%s2 + $0x34] sm:$0xf]
      %v366 = vld [vmem:[%s2 + $0x38] sm:$0xf]
      %v367 = vld [vmem:[%s2 + $0x3c] sm:$0xf]
      %v368 = vld [vmem:[%s2 + $0x40] sm:$0xf]
      %v369 = vld [vmem:[%s2 + $0x44] sm:$0xf]
      %v370 = vld [vmem:[%s2 + $0x48] sm:$0xf]
      %v371 = vld [vmem:[%s2 + $0x4c] sm:$0xf]
      %v372 = vld [vmem:[%s2 + $0x50] sm:$0xf]
      %v373 = vld [vmem:[%s2 + $0x54] sm:$0xf]
      %v374 = vld [vmem:[%s2 + $0x58] sm:$0xf]
      %v375 = vld [vmem:[%s2 + $0x5c] sm:$0xf]
      %v376 = vld [vmem:[%s2 + $0x60] sm:$0xf]
      %v377 = vld [vmem:[%s2 + $0x64] sm:$0xf]
      %v378 = vld [vmem:[%s2 + $0x68] sm:$0xf]
      %v379 = vld [vmem:[%s2 + $0x6c] sm:$0xf]
      %v380 = vld [vmem:[%s2 + $0x70] sm:$0xf]
      %v381 = vld [vmem:[%s2 + $0x74] sm:$0xf]
      %v382 = vld [vmem:[%s2 + $0x78] sm:$0xf]
      %v383 = vld [vmem:[%s2 + $0x7c] sm:$0xf]
      %v384 = vld [vmem:[%s2 + $0x80] sm:$0xf]
      %v385 = vld [vmem:[%s2 + $0x84] sm:$0xf]
      %v386 = vld [vmem:[%s2 + $0x88] sm:$0xf]
      %v387 = vld [vmem:[%s2 + $0x8c] sm:$0xf]
      %v388 = vld [vmem:[%s2 + $0x90] sm:$0xf]
      %v389 = vld [vmem:[%s2 + $0x94] sm:$0xf]
      %v390 = vld [vmem:[%s2 + $0x98] sm:$0xf]
      %v391 = vld [vmem:[%s2 + $0x9c] sm:$0xf]
      %v392 = vld [vmem:[%s2 + $0xa0] sm:$0xf]
      %v393 = vld [vmem:[%s2 + $0xa4] sm:$0xf]
      %v394 = vld [vmem:[%s2 + $0xa8] sm:$0xf]
      %v395 = vld [vmem:[%s2 + $0xac] sm:$0xf]
      %v396 = vld [vmem:[%s2 + $0xb0] sm:$0xf]
      %v397 = vld [vmem:[%s2 + $0xb4] sm:$0xf]
      %v398 = vld [vmem:[%s2 + $0xb8] sm:$0xf]
      %v399 = vld [vmem:[%s2 + $0xbc] sm:$0xf]
      %v400 = vld [vmem:[%s2 + $0xc0] sm:$0xf]
      %v401 = vld [vmem:[%s2 + $0xc4] sm:$0xf]
      %v402 = vld [vmem:[%s2 + $0xc8] sm:$0xf]
      %v403 = vld [vmem:[%s2 + $0xcc] sm:$0xf]
      %v404 = vld [vmem:[%s2 + $0xd0] sm:$0xf]
      %v405 = vld [vmem:[%s2 + $0xd4] sm:$0xf]
      %v406 = vld [vmem:[%s2 + $0xd8] sm:$0xf]
      %v407 = vld [vmem:[%s2 + $0xdc] sm:$0xf]
      %v408 = vld [vmem:[%s2 + $0xe0] sm:$0xf]
      %v409 = vld [vmem:[%s2 + $0xe4] sm:$0xf]
      %v410 = vld [vmem:[%s2 + $0xe8] sm:$0xf]
      %v411 = vld [vmem:[%s2 + $0xec] sm:$0xf]
      %v412 = vld [vmem:[%s2 + $0xf0] sm:$0xf]
      %v413 = vld [vmem:[%s2 + $0xf4] sm:$0xf]
      %v414 = vld [vmem:[%s2 + $0xf8] sm:$0xf]
      %v415 = vld [vmem:[%s2 + $0xfc] sm:$0xf]
      %v416 = vld [vmem:[%s2 + $0x100] sm:$0xf]
      %v417 = vld [vmem:[%s2 + $0x104] sm:$0xf]
      %v418 = vld [vmem:[%s2 + $0x108] sm:$0xf]
      %v419 = vld [vmem:[%s2 + $0x10c] sm:$0xf]
      %v420 = vld [vmem:[%s2 + $0x110] sm:$0xf]
      %v421 = vld [vmem:[%s2 + $0x114] sm:$0xf]
      %v422 = vld [vmem:[%s2 + $0x118] sm:$0xf]
      %v423 = vld [vmem:[%s2 + $0x11c] sm:$0xf]
      %v424 = vld [vmem:[%s2 + $0x120] sm:$0xf]
      %v425 = vld [vmem:[%s2 + $0x124] sm:$0xf]
      %v426 = vld [vmem:[%s2 + $0x128] sm:$0xf]
      %v427 = vld [vmem:[%s2 + $0x12c] sm:$0xf]
      %v428 = vld [vmem:[%s2 + $0x130] sm:$0xf]
      %v429 = vld [vmem:[%s2 + $0x134] sm:$0xf]
      %v430 = vld [vmem:[%s2 + $0x138] sm:$0xf]
      %v431 = vld [vmem:[%s2 + $0x13c] sm:$0xf]
      %v432 = vld [vmem:[%s2 + $0x140] sm:$0xf]
      %v433 = vld [vmem:[%s2 + $0x144] sm:$0xf]
      %v434 = vld [vmem:[%s2 + $0x148] sm:$0xf]
      %v435 = vld [vmem:[%s2 + $0x14c] sm:$0xf]
      %v436 = vld [vmem:[%s2 + $0x150] sm:$0xf]
      %v437 = vld [vmem:[%s2 + $0x154] sm:$0xf]
      %v438 = vld [vmem:[%s2 + $0x158] sm:$0xf]
      %v439 = vld [vmem:[%s2 + $0x15c] sm:$0xf]
      %v440 = vld [vmem:[%s2 + $0x160] sm:$0xf]
      %v441 = vld [vmem:[%s2 + $0x164] sm:$0xf]
      %v442 = vld [vmem:[%s2 + $0x168] sm:$0xf]
      %v443 = vld [vmem:[%s2 + $0x16c] sm:$0xf]
      %v444 = vld [vmem:[%s2 + $0x170] sm:$0xf]
      %v445 = vld [vmem:[%s2 + $0x174] sm:$0xf]
      %v446 = vld [vmem:[%s2 + $0x178] sm:$0xf]
      %v447 = vld [vmem:[%s2 + $0x17c] sm:$0xf]
      %v448 = vld [vmem:[%s2 + $0x180] sm:$0xf]
      %v449 = vld [vmem:[%s2 + $0x184] sm:$0xf]
      %v450 = vld [vmem:[%s2 + $0x188] sm:$0xf]
      %v451 = vld [vmem:[%s2 + $0x18c] sm:$0xf]
      %v452 = vld [vmem:[%s2 + $0x190] sm:$0xf]
      %v453 = vld [vmem:[%s2 + $0x194] sm:$0xf]
      %v454 = vld [vmem:[%s2 + $0x198] sm:$0xf]
      %v455 = vld [vmem:[%s2 + $0x19c] sm:$0xf]
      %v456 = vld [vmem:[%s2 + $0x1a0] sm:$0xf]
      %v457 = vld [vmem:[%s2 + $0x1a4] sm:$0xf]
      %v458 = vld [vmem:[%s2 + $0x1a8] sm:$0xf]
      %v459 = vld [vmem:[%s2 + $0x1ac] sm:$0xf]
      %v460 = vld [vmem:[%s2 + $0x1b0] sm:$0xf]
      %v461 = vld [vmem:[%s2 + $0x1b4] sm:$0xf]
      %v462 = vld [vmem:[%s2 + $0x1b8] sm:$0xf]
      %v463 = vld [vmem:[%s2 + $0x1bc] sm:$0xf]
      %v464 = vld [vmem:[%s2 + $0x1c0] sm:$0xf]
      %v465 = vld [vmem:[%s2 + $0x1c4] sm:$0xf]
      %v466 = vld [vmem:[%s2 + $0x1c8] sm:$0xf]
      %v467 = vld [vmem:[%s2 + $0x1cc] sm:$0xf]
      %v468 = vld [vmem:[%s2 + $0x1d0] sm:$0xf]
      %v469 = vld [vmem:[%s2 + $0x1d4] sm:$0xf]
      %v470 = vld [vmem:[%s2 + $0x1d8] sm:$0xf]
      %v471 = vld [vmem:[%s2 + $0x1dc] sm:$0xf]
      %v472 = vld [vmem:[%s2 + $0x1e0] sm:$0xf]
      %v473 = vld [vmem:[%s2 + $0x1e4] sm:$0xf]
      %v474 = vld [vmem:[%s2 + $0x1e8] sm:$0xf]
      %v475 = vld [vmem:[%s2 + $0x1ec] sm:$0xf]
      %v476 = vld [vmem:[%s2 + $0x1f0] sm:$0xf]
      %v477 = vld [vmem:[%s2 + $0x1f4] sm:$0xf]
      %v478 = vld [vmem:[%s2 + $0x1f8] sm:$0xf]
      %v479 = vld [vmem:[%s2 + $0x1fc] sm:$0xf]
      %v480 = vld [vmem:[%s3] sm:$0x1]
      %v482 = vlaneseq
      %v483 = vshrl.u32 %v482, 7
      %v484 = vsub.s32 0, %v483
      %v485 = vrot.slane %v480, %v484
      %v499 = vunpack.c.l.b16 %v340
      %v500 = vunpack.c.h.b16 %v340
      %v501 = vunpack.c.l.b16 %v341
      %v502 = vunpack.c.h.b16 %v341
      %v503 = vunpack.c.l.b16 %v342
      %v504 = vunpack.c.h.b16 %v342
      %v505 = vunpack.c.l.b16 %v343
      %v506 = vunpack.c.h.b16 %v343
      %v507 = vunpack.c.l.b16 %v344
      %v508 = vunpack.c.h.b16 %v344
      %v509 = vunpack.c.l.b16 %v345
      %v510 = vunpack.c.h.b16 %v345
      %v511 = vunpack.c.l.b16 %v346
      %v512 = vunpack.c.h.b16 %v346
      %v513 = vunpack.c.l.b16 %v347
      %v514 = vunpack.c.h.b16 %v347
      %v515 = vunpack.c.l.b16 %v348
      %v516 = vunpack.c.h.b16 %v348
      %v517 = vunpack.c.l.b16 %v349
      %v518 = vunpack.c.h.b16 %v349
      %v519 = vunpack.c.l.b16 %v350
      %v520 = vunpack.c.h.b16 %v350
      %v521 = vunpack.c.l.b16 %v351
      %v522 = vunpack.c.h.b16 %v351
      %v523 = vpack.c.b16 %v507, %v499
      %v524 = vpack.c.b16 %v508, %v500
      %v525 = vpack.c.b16 %v509, %v501
      %v526 = vpack.c.b16 %v510, %v502
      %v527 = vpack.c.b16 %v511, %v503
      %v528 = vpack.c.b16 %v512, %v504
      %v529 = vpack.c.b16 %v513, %v505
      %v530 = vpack.c.b16 %v514, %v506
      %v531 = vpack.c.b16 %v515, %v515
      %v532 = vpack.c.b16 %v516, %v516
      %v533 = vpack.c.b16 %v517, %v517
      %v534 = vpack.c.b16 %v518, %v518
      %v535 = vpack.c.b16 %v519, %v519
      %v536 = vpack.c.b16 %v520, %v520
      %v537 = vpack.c.b16 %v521, %v521
      %v538 = vpack.c.b16 %v522, %v522
      %v683 = vunpack.c.l.b16 %v352
      %v684 = vunpack.c.l.b16 %v353
      %v685 = vunpack.c.l.b16 %v354
      %v686 = vunpack.c.l.b16 %v355
      %v687 = vunpack.c.l.b16 %v356
      %v688 = vunpack.c.l.b16 %v357
      %v689 = vunpack.c.l.b16 %v358
      %v690 = vunpack.c.l.b16 %v359
      %v691 = vunpack.c.l.b16 %v360
      %v692 = vunpack.c.l.b16 %v361
      %v693 = vunpack.c.l.b16 %v362
      %v694 = vunpack.c.l.b16 %v363
      %v695 = vunpack.c.l.b16 %v364
      %v696 = vunpack.c.l.b16 %v365
      %v697 = vunpack.c.l.b16 %v366
      %v698 = vunpack.c.l.b16 %v367
      %v699 = vunpack.c.l.b16 %v368
      %v700 = vunpack.c.l.b16 %v369
      %v701 = vunpack.c.l.b16 %v370
      %v702 = vunpack.c.l.b16 %v371
      %v703 = vunpack.c.l.b16 %v372
      %v704 = vunpack.c.l.b16 %v373
      %v705 = vunpack.c.l.b16 %v374
      %v706 = vunpack.c.l.b16 %v375
      %v707 = vunpack.c.l.b16 %v376
      %v708 = vunpack.c.l.b16 %v377
      %v709 = vunpack.c.l.b16 %v378
      %v710 = vunpack.c.l.b16 %v379
      %v711 = vunpack.c.l.b16 %v380
      %v712 = vunpack.c.l.b16 %v381
      %v713 = vunpack.c.l.b16 %v382
      %v714 = vunpack.c.l.b16 %v383
      %v715 = vunpack.c.l.b16 %v384
      %v716 = vunpack.c.l.b16 %v385
      %v717 = vunpack.c.l.b16 %v386
      %v718 = vunpack.c.l.b16 %v387
      %v719 = vunpack.c.l.b16 %v388
      %v720 = vunpack.c.l.b16 %v389
      %v721 = vunpack.c.l.b16 %v390
      %v722 = vunpack.c.l.b16 %v391
      %v723 = vunpack.c.l.b16 %v392
      %v724 = vunpack.c.l.b16 %v393
      %v725 = vunpack.c.l.b16 %v394
      %v726 = vunpack.c.l.b16 %v395
      %v727 = vunpack.c.l.b16 %v396
      %v728 = vunpack.c.l.b16 %v397
      %v729 = vunpack.c.l.b16 %v398
      %v730 = vunpack.c.l.b16 %v399
      %v731 = vunpack.c.l.b16 %v400
      %v732 = vunpack.c.l.b16 %v401
      %v733 = vunpack.c.l.b16 %v402
      %v734 = vunpack.c.l.b16 %v403
      %v735 = vunpack.c.l.b16 %v404
      %v736 = vunpack.c.l.b16 %v405
      %v737 = vunpack.c.l.b16 %v406
      %v738 = vunpack.c.l.b16 %v407
      %v739 = vunpack.c.l.b16 %v408
      %v740 = vunpack.c.l.b16 %v409
      %v741 = vunpack.c.l.b16 %v410
      %v742 = vunpack.c.l.b16 %v411
      %v743 = vunpack.c.l.b16 %v412
      %v744 = vunpack.c.l.b16 %v413
      %v745 = vunpack.c.l.b16 %v414
      %v746 = vunpack.c.l.b16 %v415
      %v747 = vunpack.c.l.b16 %v416
      %v748 = vunpack.c.l.b16 %v417
      %v749 = vunpack.c.l.b16 %v418
      %v750 = vunpack.c.l.b16 %v419
      %v751 = vunpack.c.l.b16 %v420
      %v752 = vunpack.c.l.b16 %v421
      %v753 = vunpack.c.l.b16 %v422
      %v754 = vunpack.c.l.b16 %v423
      %v755 = vunpack.c.l.b16 %v424
      %v756 = vunpack.c.l.b16 %v425
      %v757 = vunpack.c.l.b16 %v426
      %v758 = vunpack.c.l.b16 %v427
      %v759 = vunpack.c.l.b16 %v428
      %v760 = vunpack.c.l.b16 %v429
      %v761 = vunpack.c.l.b16 %v430
      %v762 = vunpack.c.l.b16 %v431
      %v763 = vunpack.c.l.b16 %v432
      %v764 = vunpack.c.l.b16 %v433
      %v765 = vunpack.c.l.b16 %v434
      %v766 = vunpack.c.l.b16 %v435
      %v767 = vunpack.c.l.b16 %v436
      %v768 = vunpack.c.l.b16 %v437
      %v769 = vunpack.c.l.b16 %v438
      %v770 = vunpack.c.l.b16 %v439
      %v771 = vunpack.c.l.b16 %v440
      %v772 = vunpack.c.l.b16 %v441
      %v773 = vunpack.c.l.b16 %v442
      %v774 = vunpack.c.l.b16 %v443
      %v775 = vunpack.c.l.b16 %v444
      %v776 = vunpack.c.l.b16 %v445
      %v777 = vunpack.c.l.b16 %v446
      %v778 = vunpack.c.l.b16 %v447
      %v779 = vunpack.c.l.b16 %v448
      %v780 = vunpack.c.l.b16 %v449
      %v781 = vunpack.c.l.b16 %v450
      %v782 = vunpack.c.l.b16 %v451
      %v783 = vunpack.c.l.b16 %v452
      %v784 = vunpack.c.l.b16 %v453
      %v785 = vunpack.c.l.b16 %v454
      %v786 = vunpack.c.l.b16 %v455
      %v787 = vunpack.c.l.b16 %v456
      %v788 = vunpack.c.l.b16 %v457
      %v789 = vunpack.c.l.b16 %v458
      %v790 = vunpack.c.l.b16 %v459
      %v791 = vunpack.c.l.b16 %v460
      %v792 = vunpack.c.l.b16 %v461
      %v793 = vunpack.c.l.b16 %v462
      %v794 = vunpack.c.l.b16 %v463
      %v795 = vunpack.c.l.b16 %v464
      %v796 = vunpack.c.l.b16 %v465
      %v797 = vunpack.c.l.b16 %v466
      %v798 = vunpack.c.l.b16 %v467
      %v799 = vunpack.c.l.b16 %v468
      %v800 = vunpack.c.l.b16 %v469
      %v801 = vunpack.c.l.b16 %v470
      %v802 = vunpack.c.l.b16 %v471
      %v803 = vunpack.c.l.b16 %v472
      %v804 = vunpack.c.l.b16 %v473
      %v805 = vunpack.c.l.b16 %v474
      %v806 = vunpack.c.l.b16 %v475
      %v807 = vunpack.c.l.b16 %v476
      %v808 = vunpack.c.l.b16 %v477
      %v809 = vunpack.c.l.b16 %v478
      %v810 = vunpack.c.l.b16 %v479
      %v811 = vpack.c.b16 %v684, %v683
      %v812 = vpack.c.b16 %v686, %v685
      %v813 = vpack.c.b16 %v688, %v687
      %v814 = vpack.c.b16 %v690, %v689
      %v815 = vpack.c.b16 %v692, %v691
      %v816 = vpack.c.b16 %v694, %v693
      %v817 = vpack.c.b16 %v696, %v695
      %v818 = vpack.c.b16 %v698, %v697
      %v819 = vpack.c.b16 %v700, %v699
      %v820 = vpack.c.b16 %v702, %v701
      %v821 = vpack.c.b16 %v704, %v703
      %v822 = vpack.c.b16 %v706, %v705
      %v823 = vpack.c.b16 %v708, %v707
      %v824 = vpack.c.b16 %v710, %v709
      %v825 = vpack.c.b16 %v712, %v711
      %v826 = vpack.c.b16 %v714, %v713
      %v827 = vpack.c.b16 %v716, %v715
      %v828 = vpack.c.b16 %v718, %v717
      %v829 = vpack.c.b16 %v720, %v719
      %v830 = vpack.c.b16 %v722, %v721
      %v831 = vpack.c.b16 %v724, %v723
      %v832 = vpack.c.b16 %v726, %v725
      %v833 = vpack.c.b16 %v728, %v727
      %v834 = vpack.c.b16 %v730, %v729
      %v835 = vpack.c.b16 %v732, %v731
      %v836 = vpack.c.b16 %v734, %v733
      %v837 = vpack.c.b16 %v736, %v735
      %v838 = vpack.c.b16 %v738, %v737
      %v839 = vpack.c.b16 %v740, %v739
      %v840 = vpack.c.b16 %v742, %v741
      %v841 = vpack.c.b16 %v744, %v743
      %v842 = vpack.c.b16 %v746, %v745
      %v843 = vpack.c.b16 %v748, %v747
      %v844 = vpack.c.b16 %v750, %v749
      %v845 = vpack.c.b16 %v752, %v751
      %v846 = vpack.c.b16 %v754, %v753
      %v847 = vpack.c.b16 %v756, %v755
      %v848 = vpack.c.b16 %v758, %v757
      %v849 = vpack.c.b16 %v760, %v759
      %v850 = vpack.c.b16 %v762, %v761
      %v851 = vpack.c.b16 %v764, %v763
      %v852 = vpack.c.b16 %v766, %v765
      %v853 = vpack.c.b16 %v768, %v767
      %v854 = vpack.c.b16 %v770, %v769
      %v855 = vpack.c.b16 %v772, %v771
      %v856 = vpack.c.b16 %v774, %v773
      %v857 = vpack.c.b16 %v776, %v775
      %v858 = vpack.c.b16 %v778, %v777
      %v859 = vpack.c.b16 %v780, %v779
      %v860 = vpack.c.b16 %v782, %v781
      %v861 = vpack.c.b16 %v784, %v783
      %v862 = vpack.c.b16 %v786, %v785
      %v863 = vpack.c.b16 %v788, %v787
      %v864 = vpack.c.b16 %v790, %v789
      %v865 = vpack.c.b16 %v792, %v791
      %v866 = vpack.c.b16 %v794, %v793
      %v867 = vpack.c.b16 %v796, %v795
      %v868 = vpack.c.b16 %v798, %v797
      %v869 = vpack.c.b16 %v800, %v799
      %v870 = vpack.c.b16 %v802, %v801
      %v871 = vpack.c.b16 %v804, %v803
      %v872 = vpack.c.b16 %v806, %v805
      %v873 = vpack.c.b16 %v808, %v807
      %v874 = vpack.c.b16 %v810, %v809
      %939 = vmatprep.subr.bf16.mxu0 0
      %940 = vmatpush1.bf16.msra.mxu0 %v818
      %941 = vmatprep.subr.bf16.mxu0 0
      %942 = vmatpush1.bf16.msra.mxu0 %v817
      %943 = vmatprep.subr.bf16.mxu0 0
      %944 = vmatpush1.bf16.msra.mxu0 %v816
      %945 = vmatprep.subr.bf16.mxu0 0
      %946 = vmatpush1.bf16.msra.mxu0 %v815
      %947 = vmatprep.subr.bf16.mxu0 0
      %948 = vmatpush1.bf16.msra.mxu0 %v814
      %949 = vmatprep.subr.bf16.mxu0 0
      %950 = vmatpush1.bf16.msra.mxu0 %v813
      %951 = vmatprep.subr.bf16.mxu0 0
      %952 = vmatpush1.bf16.msra.mxu0 %v812
      %953 = vmatprep.subr.bf16.mxu0 0
      %954 = vmatpush1.bf16.msra.mxu0 %v811
      %955 = vmatprep.subr.bf16.mxu0 0
      %956 = vmatpush2.bf16.msra.mxu0 %v826
      %957 = vmatprep.subr.bf16.mxu0 0
      %958 = vmatpush2.bf16.msra.mxu0 %v825
      %959 = vmatprep.subr.bf16.mxu0 0
      %960 = vmatpush2.bf16.msra.mxu0 %v824
      %961 = vmatprep.subr.bf16.mxu0 0
      %962 = vmatpush2.bf16.msra.mxu0 %v823
      %963 = vmatprep.subr.bf16.mxu0 0
      %964 = vmatpush2.bf16.msra.mxu0 %v822
      %965 = vmatprep.subr.bf16.mxu0 0
      %966 = vmatpush2.bf16.msra.mxu0 %v821
      %967 = vmatprep.subr.bf16.mxu0 0
      %968 = vmatpush2.bf16.msra.mxu0 %v820
      %969 = vmatprep.subr.bf16.mxu0 0
      %970 = vmatpush2.bf16.msra.mxu0 %v819
      %971 = vmatprep.mubr.bf16.mxu0 %v524
      %972 = vmatmul.mubr.bf16.gmra.mxu0 %v523
      %v973 = vpop.f32.mrf.mxu0
      %v974 = vadd.f32 %v485, %v973
      %v975 = vpop.f32.mrf.mxu0
      %v976 = vpop.f32.mrf.mxu0
      %v977 = vadd.f32 %v485, %v976
      %v978 = vpop.f32.mrf.mxu0
      %979 = vmatprep.mubr.bf16.mxu0 %v532
      %980 = vmatmul.mubr.bf16.gmra.mxu0 %v531
      %v981 = vpop.f32.mrf.mxu0
      %v982 = vadd.f32 %v485, %v981
      %v983 = vpop.f32.mrf.mxu0
      %v984 = vpop.f32.mrf.mxu0
      %v985 = vpop.f32.mrf.mxu0
      %986 = vdwg.mxu0
      %987 = vmatprep.subr.bf16.mxu0 0
      %988 = vmatpush1.bf16.msra.mxu0 %v834
      %989 = vmatprep.subr.bf16.mxu0 0
      %990 = vmatpush1.bf16.msra.mxu0 %v833
      %991 = vmatprep.subr.bf16.mxu0 0
      %992 = vmatpush1.bf16.msra.mxu0 %v832
      %993 = vmatprep.subr.bf16.mxu0 0
      %994 = vmatpush1.bf16.msra.mxu0 %v831
      %995 = vmatprep.subr.bf16.mxu0 0
      %996 = vmatpush1.bf16.msra.mxu0 %v830
      %997 = vmatprep.subr.bf16.mxu0 0
      %998 = vmatpush1.bf16.msra.mxu0 %v829
      %999 = vmatprep.subr.bf16.mxu0 0
      %1000 = vmatpush1.bf16.msra.mxu0 %v828
      %1001 = vmatprep.subr.bf16.mxu0 0
      %1002 = vmatpush1.bf16.msra.mxu0 %v827
      %1003 = vmatprep.subr.bf16.mxu0 0
      %1004 = vmatpush2.bf16.msra.mxu0 %v842
      %1005 = vmatprep.subr.bf16.mxu0 0
      %1006 = vmatpush2.bf16.msra.mxu0 %v841
      %1007 = vmatprep.subr.bf16.mxu0 0
      %1008 = vmatpush2.bf16.msra.mxu0 %v840
      %1009 = vmatprep.subr.bf16.mxu0 0
      %1010 = vmatpush2.bf16.msra.mxu0 %v839
      %1011 = vmatprep.subr.bf16.mxu0 0
      %1012 = vmatpush2.bf16.msra.mxu0 %v838
      %1013 = vmatprep.subr.bf16.mxu0 0
      %1014 = vmatpush2.bf16.msra.mxu0 %v837
      %1015 = vmatprep.subr.bf16.mxu0 0
      %1016 = vmatpush2.bf16.msra.mxu0 %v836
      %1017 = vmatprep.subr.bf16.mxu0 0
      %1018 = vmatpush2.bf16.msra.mxu0 %v835
      %1019 = vmatprep.mubr.bf16.mxu0 %v526
      %1020 = vmatmul.mubr.bf16.gmra.mxu0 %v525
      %v1021 = vpop.f32.mrf.mxu0
      %v1022 = vadd.f32 %v974, %v1021
      %v1023 = vpop.f32.mrf.mxu0
      %v1024 = vpop.f32.mrf.mxu0
      %v1025 = vadd.f32 %v977, %v1024
      %v1026 = vpop.f32.mrf.mxu0
      %1027 = vmatprep.mubr.bf16.mxu0 %v534
      %1028 = vmatmul.mubr.bf16.gmra.mxu0 %v533
      %v1029 = vpop.f32.mrf.mxu0
      %v1030 = vadd.f32 %v982, %v1029
      %v1031 = vpop.f32.mrf.mxu0
      %v1032 = vpop.f32.mrf.mxu0
      %v1033 = vpop.f32.mrf.mxu0
      %1034 = vdwg.mxu0
      %1035 = vmatprep.subr.bf16.mxu0 0
      %1036 = vmatpush1.bf16.msra.mxu0 %v850
      %1037 = vmatprep.subr.bf16.mxu0 0
      %1038 = vmatpush1.bf16.msra.mxu0 %v849
      %1039 = vmatprep.subr.bf16.mxu0 0
      %1040 = vmatpush1.bf16.msra.mxu0 %v848
      %1041 = vmatprep.subr.bf16.mxu0 0
      %1042 = vmatpush1.bf16.msra.mxu0 %v847
      %1043 = vmatprep.subr.bf16.mxu0 0
      %1044 = vmatpush1.bf16.msra.mxu0 %v846
      %1045 = vmatprep.subr.bf16.mxu0 0
      %1046 = vmatpush1.bf16.msra.mxu0 %v845
      %1047 = vmatprep.subr.bf16.mxu0 0
      %1048 = vmatpush1.bf16.msra.mxu0 %v844
      %1049 = vmatprep.subr.bf16.mxu0 0
      %1050 = vmatpush1.bf16.msra.mxu0 %v843
      %1051 = vmatprep.subr.bf16.mxu0 0
      %1052 = vmatpush2.bf16.msra.mxu0 %v858
      %1053 = vmatprep.subr.bf16.mxu0 0
      %1054 = vmatpush2.bf16.msra.mxu0 %v857
      %1055 = vmatprep.subr.bf16.mxu0 0
      %1056 = vmatpush2.bf16.msra.mxu0 %v856
      %1057 = vmatprep.subr.bf16.mxu0 0
      %1058 = vmatpush2.bf16.msra.mxu0 %v855
      %1059 = vmatprep.subr.bf16.mxu0 0
      %1060 = vmatpush2.bf16.msra.mxu0 %v854
      %1061 = vmatprep.subr.bf16.mxu0 0
      %1062 = vmatpush2.bf16.msra.mxu0 %v853
      %1063 = vmatprep.subr.bf16.mxu0 0
      %1064 = vmatpush2.bf16.msra.mxu0 %v852
      %1065 = vmatprep.subr.bf16.mxu0 0
      %1066 = vmatpush2.bf16.msra.mxu0 %v851
      %1067 = vmatprep.mubr.bf16.mxu0 %v528
      %1068 = vmatmul.mubr.bf16.gmra.mxu0 %v527
      %v1069 = vpop.f32.mrf.mxu0
      %v1070 = vadd.f32 %v1022, %v1069
      %v1071 = vpop.f32.mrf.mxu0
      %v1072 = vpop.f32.mrf.mxu0
      %v1073 = vadd.f32 %v1025, %v1072
      %v1074 = vpop.f32.mrf.mxu0
      %1075 = vmatprep.mubr.bf16.mxu0 %v536
      %1076 = vmatmul.mubr.bf16.gmra.mxu0 %v535
      %v1077 = vpop.f32.mrf.mxu0
      %v1078 = vadd.f32 %v1030, %v1077
      %v1079 = vpop.f32.mrf.mxu0
      %v1080 = vpop.f32.mrf.mxu0
      %v1081 = vpop.f32.mrf.mxu0
      %1082 = vdwg.mxu0
      %1083 = vmatprep.subr.bf16.mxu0 0
      %1084 = vmatpush1.bf16.msra.mxu0 %v866
      %1085 = vmatprep.subr.bf16.mxu0 0
      %1086 = vmatpush1.bf16.msra.mxu0 %v865
      %1087 = vmatprep.subr.bf16.mxu0 0
      %1088 = vmatpush1.bf16.msra.mxu0 %v864
      %1089 = vmatprep.subr.bf16.mxu0 0
      %1090 = vmatpush1.bf16.msra.mxu0 %v863
      %1091 = vmatprep.subr.bf16.mxu0 0
      %1092 = vmatpush1.bf16.msra.mxu0 %v862
      %1093 = vmatprep.subr.bf16.mxu0 0
      %1094 = vmatpush1.bf16.msra.mxu0 %v861
      %1095 = vmatprep.subr.bf16.mxu0 0
      %1096 = vmatpush1.bf16.msra.mxu0 %v860
      %1097 = vmatprep.subr.bf16.mxu0 0
      %1098 = vmatpush1.bf16.msra.mxu0 %v859
      %1099 = vmatprep.subr.bf16.mxu0 0
      %1100 = vmatpush2.bf16.msra.mxu0 %v874
      %1101 = vmatprep.subr.bf16.mxu0 0
      %1102 = vmatpush2.bf16.msra.mxu0 %v873
      %1103 = vmatprep.subr.bf16.mxu0 0
      %1104 = vmatpush2.bf16.msra.mxu0 %v872
      %1105 = vmatprep.subr.bf16.mxu0 0
      %1106 = vmatpush2.bf16.msra.mxu0 %v871
      %1107 = vmatprep.subr.bf16.mxu0 0
      %1108 = vmatpush2.bf16.msra.mxu0 %v870
      %1109 = vmatprep.subr.bf16.mxu0 0
      %1110 = vmatpush2.bf16.msra.mxu0 %v869
      %1111 = vmatprep.subr.bf16.mxu0 0
      %1112 = vmatpush2.bf16.msra.mxu0 %v868
      %1113 = vmatprep.subr.bf16.mxu0 0
      %1114 = vmatpush2.bf16.msra.mxu0 %v867
      %1115 = vmatprep.mubr.bf16.mxu0 %v530
      %1116 = vmatmul.mubr.bf16.gmra.mxu0 %v529
      %v1117 = vpop.f32.mrf.mxu0
      %v1118 = vadd.f32 %v1070, %v1117
      %v1119 = vpop.f32.mrf.mxu0
      %v1120 = vpop.f32.mrf.mxu0
      %v1121 = vadd.f32 %v1073, %v1120
      %v1122 = vpop.f32.mrf.mxu0
      %1123 = vmatprep.mubr.bf16.mxu0 %v538
      %1124 = vmatmul.mubr.bf16.gmra.mxu0 %v537
      %v1125 = vpop.f32.mrf.mxu0
      %v1126 = vadd.f32 %v1078, %v1125
      %v1127 = vpop.f32.mrf.mxu0
      %v1128 = vpop.f32.mrf.mxu0
      %v1129 = vpop.f32.mrf.mxu0
      %1130 = vdwg.mxu0
      %v1131 = vmax.f32 %v1118, 0.0
      %v1132 = vmax.f32 %v1121, 0.0
      %v1133 = vmax.f32 %v1126, 0.0
      %v1134 = vadd.f32 %v1131, 0.0001
      %v1135 = vadd.f32 %v1132, 0.0001
      %v1136 = vadd.f32 %v1133, 0.0001
      %v1137 = vlog2.pop %v1134
      %v1138 = vmul.f32 %v1137, 0.6931472
      %v1139 = vlog2.pop %v1135
      %v1140 = vmul.f32 %v1139, 0.6931472
      %v1141 = vlog2.pop %v1136
      %v1142 = vmul.f32 %v1141, 0.6931472
      %v1143 = vpack.c.bf16 %v1140, %v1138
      %v1144 = vpack.c.bf16 %v1142, %v1142
      %v1145 = vld [vmem:[%s4] sm:$0xff]
      %v1146 = vld [vmem:[%s4 + $0x8] sm:$0xff]
      %v1147 = vld [vmem:[%s4 + $0x10] sm:$0xff]
      %v1148 = vld [vmem:[%s4 + $0x18] sm:$0xff]
      %v1149 = vld [vmem:[%s4 + $0x20] sm:$0xff]
      %v1150 = vld [vmem:[%s4 + $0x28] sm:$0xff]
      %v1151 = vld [vmem:[%s4 + $0x30] sm:$0xff]
      %v1152 = vld [vmem:[%s4 + $0x38] sm:$0xff]
      %v1153 = vld [vmem:[%s4 + $0x40] sm:$0xff]
      %v1154 = vld [vmem:[%s4 + $0x48] sm:$0xff]
      %v1155 = vld [vmem:[%s4 + $0x50] sm:$0xff]
      %v1156 = vld [vmem:[%s4 + $0x58] sm:$0xff]
      %v1157 = vld [vmem:[%s4 + $0x60] sm:$0xff]
      %v1158 = vld [vmem:[%s4 + $0x68] sm:$0xff]
      %v1159 = vld [vmem:[%s4 + $0x70] sm:$0xff]
      %v1160 = vld [vmem:[%s4 + $0x78] sm:$0xff]
      %v1161 = vld [vmem:[%s328] sm:$0x3]
      %v1163 = vlaneseq
      %v1164 = vshrl.u32 %v1163, 7
      %v1165 = vsub.s32 0, %v1164
      %v1166 = vrot.slane %v1161, %v1165
      %v1167 = vlaneseq
      %v1168 = vshrl.u32 %v1167, 7
      %v1169 = vsub.s32 1, %v1168
      %v1170 = vrot.slane %v1161, %v1169
      %v1189 = vunpack.c.l.b16 %v1145
      %v1190 = vunpack.c.h.b16 %v1145
      %v1191 = vunpack.c.l.b16 %v1146
      %v1192 = vunpack.c.h.b16 %v1146
      %v1193 = vunpack.c.l.b16 %v1147
      %v1194 = vunpack.c.h.b16 %v1147
      %v1195 = vunpack.c.l.b16 %v1148
      %v1196 = vunpack.c.h.b16 %v1148
      %v1197 = vunpack.c.l.b16 %v1149
      %v1198 = vunpack.c.h.b16 %v1149
      %v1199 = vunpack.c.l.b16 %v1150
      %v1200 = vunpack.c.h.b16 %v1150
      %v1201 = vunpack.c.l.b16 %v1151
      %v1202 = vunpack.c.h.b16 %v1151
      %v1203 = vunpack.c.l.b16 %v1152
      %v1204 = vunpack.c.h.b16 %v1152
      %v1205 = vunpack.c.l.b16 %v1153
      %v1206 = vunpack.c.h.b16 %v1153
      %v1207 = vunpack.c.l.b16 %v1154
      %v1208 = vunpack.c.h.b16 %v1154
      %v1209 = vunpack.c.l.b16 %v1155
      %v1210 = vunpack.c.h.b16 %v1155
      %v1211 = vunpack.c.l.b16 %v1156
      %v1212 = vunpack.c.h.b16 %v1156
      %v1213 = vunpack.c.l.b16 %v1157
      %v1214 = vunpack.c.h.b16 %v1157
      %v1215 = vunpack.c.l.b16 %v1158
      %v1216 = vunpack.c.h.b16 %v1158
      %v1217 = vunpack.c.l.b16 %v1159
      %v1218 = vunpack.c.h.b16 %v1159
      %v1219 = vunpack.c.l.b16 %v1160
      %v1220 = vunpack.c.h.b16 %v1160
      %v1221 = vpack.c.b16 %v1191, %v1189
      %v1222 = vpack.c.b16 %v1192, %v1190
      %v1223 = vpack.c.b16 %v1195, %v1193
      %v1224 = vpack.c.b16 %v1196, %v1194
      %v1225 = vpack.c.b16 %v1199, %v1197
      %v1226 = vpack.c.b16 %v1200, %v1198
      %v1227 = vpack.c.b16 %v1203, %v1201
      %v1228 = vpack.c.b16 %v1204, %v1202
      %v1229 = vpack.c.b16 %v1207, %v1205
      %v1230 = vpack.c.b16 %v1208, %v1206
      %v1231 = vpack.c.b16 %v1211, %v1209
      %v1232 = vpack.c.b16 %v1212, %v1210
      %v1233 = vpack.c.b16 %v1215, %v1213
      %v1234 = vpack.c.b16 %v1216, %v1214
      %v1235 = vpack.c.b16 %v1219, %v1217
      %v1236 = vpack.c.b16 %v1220, %v1218
      %1253 = vmatprep.subr.bf16.mxu0 %v1236
      %1254 = vmatpush1.bf16.msra.mxu0 %v1235
      %1255 = vmatprep.subr.bf16.mxu0 %v1234
      %1256 = vmatpush1.bf16.msra.mxu0 %v1233
      %1257 = vmatprep.subr.bf16.mxu0 %v1232
      %1258 = vmatpush1.bf16.msra.mxu0 %v1231
      %1259 = vmatprep.subr.bf16.mxu0 %v1230
      %1260 = vmatpush1.bf16.msra.mxu0 %v1229
      %1261 = vmatprep.subr.bf16.mxu0 %v1228
      %1262 = vmatpush1.bf16.msra.mxu0 %v1227
      %1263 = vmatprep.subr.bf16.mxu0 %v1226
      %1264 = vmatpush1.bf16.msra.mxu0 %v1225
      %1265 = vmatprep.subr.bf16.mxu0 %v1224
      %1266 = vmatpush1.bf16.msra.mxu0 %v1223
      %1267 = vmatprep.subr.bf16.mxu0 %v1222
      %1268 = vmatpush1.bf16.msra.mxu0 %v1221
      %1269 = vmatprep.subr.bf16.mxu0 0
      %1270 = vmatpush2.bf16.msra.mxu0 0
      %1271 = vmatprep.subr.bf16.mxu0 0
      %1272 = vmatpush2.bf16.msra.mxu0 0
      %1273 = vmatprep.subr.bf16.mxu0 0
      %1274 = vmatpush2.bf16.msra.mxu0 0
      %1275 = vmatprep.subr.bf16.mxu0 0
      %1276 = vmatpush2.bf16.msra.mxu0 0
      %1277 = vmatprep.subr.bf16.mxu0 0
      %1278 = vmatpush2.bf16.msra.mxu0 0
      %1279 = vmatprep.subr.bf16.mxu0 0
      %1280 = vmatpush2.bf16.msra.mxu0 0
      %1281 = vmatprep.subr.bf16.mxu0 0
      %1282 = vmatpush2.bf16.msra.mxu0 0
      %1283 = vmatprep.subr.bf16.mxu0 0
      %1284 = vmatpush2.bf16.msra.mxu0 0
      %1285 = vmatprep.mubr.bf16.mxu0 0
      %1286 = vmatmul.mubr.bf16.gmra.mxu0 %v1143
      %v1287 = vpop.f32.mrf.mxu0
      %v1288 = vadd.f32 %v1166, %v1287
      %v1289 = vpop.f32.mrf.mxu0
      %v1290 = vadd.f32 %v1170, %v1289
      %v1291 = vpop.f32.mrf.mxu0
      %v1292 = vadd.f32 %v1166, %v1291
      %v1293 = vpop.f32.mrf.mxu0
      %v1294 = vadd.f32 %v1170, %v1293
      %1295 = vmatprep.mubr.bf16.mxu0 0
      %1296 = vmatmul.mubr.bf16.gmra.mxu0 %v1144
      %v1297 = vpop.f32.mrf.mxu0
      %v1298 = vadd.f32 %v1166, %v1297
      %v1299 = vpop.f32.mrf.mxu0
      %v1300 = vadd.f32 %v1170, %v1299
      %v1301 = vpop.f32.mrf.mxu0
      %v1302 = vpop.f32.mrf.mxu0
      %1303 = vdwg.mxu0
      %v1304 = vmax.f32 %v1288, 0.0
      %v1305 = vmax.f32 %v1290, 0.0
      %v1306 = vmax.f32 %v1292, 0.0
      %v1307 = vmax.f32 %v1294, 0.0
      %v1308 = vmax.f32 %v1298, 0.0
      %v1309 = vmax.f32 %v1300, 0.0
      %v1310 = vld [vmem:[%s5] sm:$0x3]
      %v1312 = vlaneseq
      %v1313 = vshrl.u32 %v1312, 7
      %v1314 = vsub.s32 0, %v1313
      %v1315 = vrot.slane %v1310, %v1314
      %v1316 = vlaneseq
      %v1317 = vshrl.u32 %v1316, 7
      %v1318 = vsub.s32 1, %v1317
      %v1319 = vrot.slane %v1310, %v1318
      %v1322 = vmul.f32 %v1304, %v1315
      %v1323 = vmul.f32 %v1305, %v1319
      %v1324 = vmul.f32 %v1306, %v1315
      %v1325 = vmul.f32 %v1307, %v1319
      %v1326 = vmul.f32 %v1308, %v1315
      %v1327 = vmul.f32 %v1309, %v1319
      %v1328 = vadd.f32 %v1322, %v1323
      %1329 = vadd.xlane.f32.xlu0 %v1328
      %v1330 = vpop.xlane.xlu0 %1329
      %v1331 = vadd.f32 %v1324, %v1325
      %1332 = vadd.xlane.f32.xlu0 %v1331
      %v1333 = vpop.xlane.xlu0 %1332
      %v1334 = vadd.f32 %v1326, %v1327
      %1335 = vadd.xlane.f32.xlu0 %v1334
      %v1336 = vpop.xlane.xlu0 %1335
      %s1337 = sld [smem:[#allocation2]]
      %v1338 = vstv %s1337
      %v1339 = vadd.f32 %v1330, %v1338
      %v1340 = vadd.f32 %v1333, %v1338
      %v1341 = vadd.f32 %v1336, %v1338
      %v1342 = vxor.u32 %v1339, 2147483648
      %v1343 = vxor.u32 %v1340, 2147483648
      %v1344 = vxor.u32 %v1341, 2147483648
      %v1345 = vmul.f32 %v1342, 1.442695
      %v1346 = vpow.pop %v1345
      %v1347 = vmul.f32 %v1343, 1.442695
      %v1348 = vpow.pop %v1347
      %v1349 = vmul.f32 %v1344, 1.442695
      %v1350 = vpow.pop %v1349
      %v1351 = vadd.f32 %v1346, 1.0
      %v1352 = vadd.f32 %v1348, 1.0
      %v1353 = vadd.f32 %v1350, 1.0
      %v1354 = vrcp.pop %v1351
      %v1355 = vmul.f32 1.0, %v1354
      %v1356 = vrcp.pop %v1352
      %v1357 = vmul.f32 1.0, %v1356
      %v1358 = vrcp.pop %v1353
      %v1359 = vmul.f32 1.0, %v1358
      %vm1360 = vcmask 7168
      %1361 = vst.msk [vmem:[%s337] sm:$0xff] %vm1360, %v1355
      %1362 = vst.msk [vmem:[%s337 + $0x8] sm:$0xff] %vm1360, %v1357
      %1363 = vst.msk [vmem:[%s337 + $0x10] sm:$0xff] %vm1360, %v1359
      %s1364 = smul.u32 3, %s24
      %p1365 = scmp.lt.s32.totalorder %s23, 1
      %s1366 = scalar_select %p1365, %s23, 1
      %p1367 = scmp.lt.s32.totalorder %s1364, 2
      %s1368 = scalar_select %p1367, %s1364, 2
      %s1369 = smul.addr %s1366, 3
      %s1370 = sadd.s32 %s1368, %s1369
      %s1371 = smul.addr %s1370, 8
      %s1372 = scalar_lea.vmem %s7, %s1371
      // Predicated region
      $region49: #{tsdnet_forward.3} parent=47 // pred_check
        %p1373 = pneg %p210
      $region50: #{tsdnet_forward.3} parent=47 // pred_check_branch
        %1375 = sbr.rel (%p1373) target = $region52
      $region51: #{tsdnet_forward.3} parent=47 // pred_region
        %s1376 = smul.u32 3, %s24
      $region52: #{tsdnet_forward.3} parent=47 // pred_fallthru
        _
    $region48: #{tsdnet_forward.3} parent=5 // pred_fallthru
      _
    %p1377 = scmp.le.s32.totalorder 2, %s14
    // Predicated region
    $region53: #{tsdnet_forward.3} parent=5 // pred_check
      %p1378 = pneg %p1377
    $region54: #{tsdnet_forward.3} parent=5 // pred_check_branch
      %1380 = sbr.rel (%p1378) target = $region56
    $region55: #{tsdnet_forward.3} parent=5 // pred_region
      %s1381 = ssub.s32 %s14, 2
      // Predicated region
      $region57: #{tsdnet_forward.3} parent=55 // pred_check
        %p1382 = pneg %p216
      $region58: #{tsdnet_forward.3} parent=55 // pred_check_branch
        %1384 = sbr.rel (%p1382) target = $region60
      $region59: #{tsdnet_forward.3} parent=55 // pred_region
        %s1385 = smul.u32 3, %s26
        %p1386 = scmp.lt.s32.totalorder %s25, 1
        %s1387 = scalar_select %p1386, %s25, 1
        %p1388 = scmp.lt.s32.totalorder %s1385, 2
        %s1389 = scalar_select %p1388, %s1385, 2
        %s1390 = smul.addr %s1387, 3
        %s1391 = sadd.s32 %s1389, %s1390
        %s1392 = smul.addr %s1391, 8
        %s1393 = scalar_lea.vmem %s7, %s1392
      $region60: #{tsdnet_forward.3} parent=55 // pred_fallthru
        _
    $region56: #{tsdnet_forward.3} parent=5 // pred_fallthru
      _
  $region6: #{tsdnet_forward.3} parent=0 // loop_footer
    %s18 = sadd.s32 1, %s14
  $region7: #{tsdnet_forward.3} parent=0 // loop_footer_branch
    %13 = sbr.rel target = $region3
  $region8: #{tsdnet_forward.3} parent=0 // loop_exit
    _

</llo_original>
